<compile_context>
chip_gen: v7x
topology: tpu7x:2x2x1
jax: 0.10.0
libtpu: 0.0.40
codegen_flags: <defaults>
</compile_context>

<pallas_src>
import functools

import jax
import jax.numpy as jnp
from jax import lax
from jax.experimental import pallas as pl
from jax.experimental.pallas import tpu as pltpu


def _round_up(x, m):
    return (x + m - 1) // m * m


# ----------------------------------------------------------------------------
# Pallas kernel: fused double conv + FiLM + ReLU for one batch element
# ----------------------------------------------------------------------------
def _double_conv_kernel(x_ref, w1_ref, w2_ref, s1_ref, t1_ref, s2_ref, t2_ref,
                        mask_ref, o_ref, yg_ref, *, wp, nf, guard):
    """x_ref:  (1, CIN_P, LIN)   bf16   guarded flat zero-padded input image
       w1_ref: (9, COUT_P, CIN_P) bf16  per-tap conv1 matrices
       w2_ref: (9, COUT_P, COUT_P) bf16 per-tap conv2 matrices
       s?_ref: (1, COUT_P, 1)    f32   scale + 1          (per batch, channel)
       t?_ref: (1, COUT_P, 1)    f32   bias*(scale+1)+shift
       mask_ref: (1, NF)         f32   interior mask over padded flat grid
       o_ref:  (1, COUT_P, NF)   f32   conv2 output on the padded flat grid
       yg_ref: (COUT_P, LIN)     bf16  VMEM scratch holding guarded y1
    """
    offsets = [(dh - 1) * wp + (dw - 1) for dh in range(3) for dw in range(3)]
    cout_p = o_ref.shape[1]

    # ---- conv1: 9 shifted bf16 matmuls, f32 accumulation ----
    x = x_ref[0]                                              # (CIN_P, LIN)
    acc = jnp.zeros((cout_p, nf), jnp.float32)
    for k, off in enumerate(offsets):
        acc = acc + jnp.dot(w1_ref[k],
                            x[:, guard + off:guard + off + nf],
                            preferred_element_type=jnp.float32)
    # FiLM with folded conv bias: relu(acc*(scale+1) + (bias*(scale+1)+shift))
    y1 = jnp.maximum(acc * s1_ref[0] + t1_ref[0], 0.0)
    # zero the padded ring / tail so y1 acts as conv2's zero-padded input
    y1 = y1 * mask_ref[...]

    # stash guarded y1 in VMEM (never round-trips through HBM)
    yg_ref[...] = jnp.zeros(yg_ref.shape, yg_ref.dtype)
    yg_ref[:, guard:guard + nf] = y1.astype(yg_ref.dtype)

    # ---- conv2: same structure ----
    y = yg_ref[...]                                           # (COUT_P, LIN)
    acc2 = jnp.zeros((cout_p, nf), jnp.float32)
    for k, off in enumerate(offsets):
        acc2 = acc2 + jnp.dot(w2_ref[k],
                              y[:, guard + off:guard + off + nf],
                              preferred_element_type=jnp.float32)
    y2 = jnp.maximum(acc2 * s2_ref[0] + t2_ref[0], 0.0)
    o_ref[0] = y2.astype(o_ref.dtype)


# ----------------------------------------------------------------------------
# Wrapper
# ----------------------------------------------------------------------------
def conditional_double_conv(x_nchw, time, params, *, compute_dtype=jnp.bfloat16):
    """Forward pass of ConditionalDoubleConv. x: (B, Cin, H, W), time: (B, T)."""
    B, Cin, H, W = x_nchw.shape
    Cout = params["conv1_w"].shape[0]
    Hp, Wp = H + 2, W + 2

    CIN_P = _round_up(max(Cin, 16), 16)        # channels on sublanes (bf16 pack=16)
    COUT_P = _round_up(max(Cout, 16), 16)
    NF = Hp * Wp                               # flattened padded spatial
    NF_PAD = _round_up(NF, 128)                # lane-dense compute / store width
    GUARD = _round_up(Wp + 1, 128)             # guard so all 9 shifts stay in-bounds
    LIN = _round_up(GUARD + Wp + 1 + NF_PAD, 128)

    # ---- time MLP: SimpleGate + Linear (plain XLA; too small for Pallas) ----
    ta, tb = jnp.split(time, 2, axis=1)
    temb = (ta * tb) @ params["mlp_w"].T + params["mlp_b"]
    # torch .chunk(4, dim=1) ordering: shift1, scale1, shift2, scale2
    shift1 = temb[:, 0 * Cout:1 * Cout]
    scale1 = temb[:, 1 * Cout:2 * Cout]
    shift2 = temb[:, 2 * Cout:3 * Cout]
    scale2 = temb[:, 3 * Cout:4 * Cout]

    def film_terms(scale, shift, bias):
        s = scale + 1.0                                   # (B, Cout)
        t = bias[None, :] * s + shift                     # fold conv bias into shift
        pad = ((0, 0), (0, COUT_P - Cout))
        s = jnp.pad(s, pad).reshape(B, COUT_P, 1).astype(jnp.float32)
        t = jnp.pad(t, pad).reshape(B, COUT_P, 1).astype(jnp.float32)
        return s, t

    s1, t1e = film_terms(scale1, shift1, params["conv1_b"])
    s2, t2e = film_terms(scale2, shift2, params["conv2_b"])

    # ---- input: NCHW -> channel-padded, spatially-padded, flattened, guarded ----
    xp = jnp.pad(x_nchw, ((0, 0), (0, CIN_P - Cin), (1, 1), (1, 1)))
    xf = xp.reshape(B, CIN_P, NF)
    xf = jnp.pad(xf, ((0, 0), (0, 0), (GUARD, LIN - GUARD - NF)))
    xf = xf.astype(compute_dtype)

    # ---- conv weights: (Cout, Cin, 3, 3) -> (9, COUT_P, CIN_P) per-tap matrices ----
    def prep_w(w, cin_p):
        co, ci = w.shape[:2]
        w9 = jnp.transpose(w, (2, 3, 0, 1)).reshape(9, co, ci)   # k = dh*3 + dw
        w9 = jnp.pad(w9, ((0, 0), (0, COUT_P - co), (0, cin_p - ci)))
        return w9.astype(compute_dtype)

    w1 = prep_w(params["conv1_w"], CIN_P)
    w2 = prep_w(params["conv2_w"], COUT_P)

    # ---- interior mask over the flattened padded grid ----
    m = jnp.arange(NF_PAD)
    hh, ww = m // Wp, m % Wp
    mask = (m < NF) & (hh >= 1) & (hh <= H) & (ww >= 1) & (ww <= W)
    mask = mask.astype(jnp.float32).reshape(1, NF_PAD)

    kernel = functools.partial(_double_conv_kernel, wp=Wp, nf=NF_PAD, guard=GUARD)

    out = pl.pallas_call(
        kernel,
        out_shape=jax.ShapeDtypeStruct((B, COUT_P, NF_PAD), jnp.float32),
        grid_spec=pltpu.PrefetchScalarGridSpec(
            num_scalar_prefetch=0,
            grid=(B,),
            in_specs=[
                pl.BlockSpec((1, CIN_P, LIN), lambda b: (b, 0, 0)),
                pl.BlockSpec((9, COUT_P, CIN_P), lambda b: (0, 0, 0)),   # resident
                pl.BlockSpec((9, COUT_P, COUT_P), lambda b: (0, 0, 0)),  # resident
                pl.BlockSpec((1, COUT_P, 1), lambda b: (b, 0, 0)),
                pl.BlockSpec((1, COUT_P, 1), lambda b: (b, 0, 0)),
                pl.BlockSpec((1, COUT_P, 1), lambda b: (b, 0, 0)),
                pl.BlockSpec((1, COUT_P, 1), lambda b: (b, 0, 0)),
                pl.BlockSpec((1, NF_PAD), lambda b: (0, 0)),             # resident
            ],
            out_specs=pl.BlockSpec((1, COUT_P, NF_PAD), lambda b: (b, 0, 0)),
            scratch_shapes=[pltpu.VMEM((COUT_P, LIN), compute_dtype)],
        ),
        compiler_params=pltpu.CompilerParams(
            dimension_semantics=("parallel",),     # shard batch across TCs (v7x)
            vmem_limit_bytes=64 * 1024 * 1024,
        ),
    )(xf, w1, w2, s1, t1e, s2, t2e, mask)

    # un-flatten: (B, COUT_P, NF_PAD) -> NCHW interior (no transposes needed)
    out = out[:, :Cout, :NF].reshape(B, Cout, Hp, Wp)[:, :, 1:H + 1, 1:W + 1]
    return out


# ----------------------------------------------------------------------------
# Pure-JAX reference (f32) for correctness check
# ----------------------------------------------------------------------------
def _ref_forward(x, time, params):
    Cout = params["conv1_w"].shape[0]
    ta, tb = jnp.split(time, 2, axis=1)
    temb = (ta * tb) @ params["mlp_w"].T + params["mlp_b"]
    shift1, scale1, shift2, scale2 = jnp.split(temb, 4, axis=1)

    def conv(x, w, b):
        y = lax.conv_general_dilated(
            x, w, (1, 1), "SAME", dimension_numbers=("NCHW", "OIHW", "NCHW"))
        return y + b[None, :, None, None]

    y = conv(x, params["conv1_w"], params["conv1_b"])
    y = y * (scale1[:, :, None, None] + 1.0) + shift1[:, :, None, None]
    y = jnp.maximum(y, 0.0)
    y = conv(y, params["conv2_w"], params["conv2_b"])
    y = y * (scale2[:, :, None, None] + 1.0) + shift2[:, :, None, None]
    y = jnp.maximum(y, 0.0)
    return y


# ----------------------------------------------------------------------------
# Main
# ----------------------------------------------------------------------------
if __name__ == "__main__":
    B, Cin, Cout, H, W = 2, 4, 8, 16, 16
    time_emb_dim = 32

    key = jax.random.PRNGKey(0)
    keys = jax.random.split(key, 8)

    params = {
        "mlp_w": 0.1 * jax.random.normal(keys[0], (4 * Cout, time_emb_dim // 2), jnp.float32),
        "mlp_b": 0.1 * jax.random.normal(keys[1], (4 * Cout,), jnp.float32),
        "conv1_w": 0.1 * jax.random.normal(keys[2], (Cout, Cin, 3, 3), jnp.float32),
        "conv1_b": 0.1 * jax.random.normal(keys[3], (Cout,), jnp.float32),
        "conv2_w": 0.1 * jax.random.normal(keys[4], (Cout, Cout, 3, 3), jnp.float32),
        "conv2_b": 0.1 * jax.random.normal(keys[5], (Cout,), jnp.float32),
        # beta / gamma exist as nn.Parameters in the module but are unused in forward()
        "beta": jnp.zeros((1, Cout, 1, 1), jnp.float32),
        "gamma": jnp.zeros((1, Cout, 1, 1), jnp.float32),
    }

    x = jax.random.normal(keys[6], (B, Cin, H, W), jnp.float32)
    time = jax.random.normal(keys[7], (B, time_emb_dim), jnp.float32)

    out = jax.block_until_ready(conditional_double_conv(x, time, params))
    ref = jax.block_until_ready(_ref_forward(x, time, params))

    assert out.shape == (B, Cout, H, W)
    max_err = float(jnp.max(jnp.abs(out - ref)))
    # bf16 matmul path (f32 accumulation) -> loosen tolerance vs. f32 reference
    assert jnp.allclose(out, ref, rtol=5e-2, atol=5e-2), f"mismatch vs. reference (max_err={max_err})"

    print("KERNEL_OK")
</pallas_src>

<mosaic_0001>
module attributes {stable_mosaic.version = 11 : i64} {
  func.func @_double_conv_kernel(%arg0: i32, %arg1: memref<1x16x640xbf16, #tpu.memory_space<vmem>>, %arg2: memref<9x16x16xbf16, #tpu.memory_space<vmem>>, %arg3: memref<9x16x16xbf16, #tpu.memory_space<vmem>>, %arg4: memref<1x16x1xf32, #tpu.memory_space<vmem>>, %arg5: memref<1x16x1xf32, #tpu.memory_space<vmem>>, %arg6: memref<1x16x1xf32, #tpu.memory_space<vmem>>, %arg7: memref<1x16x1xf32, #tpu.memory_space<vmem>>, %arg8: memref<1x384xf32, #tpu.memory_space<vmem>>, %arg9: memref<1x16x384xf32, #tpu.memory_space<vmem>>, %arg10: memref<16x640xbf16, #tpu.memory_space<vmem>>) attributes {dimension_semantics = [#tpu.dimension_semantics<parallel>], iteration_bounds = array<i64: 2>, scalar_prefetch = 0 : i64, scratch_operands = 1 : i64, tpu.core_type = #tpu.core_type<tc>, window_params = [{transform_indices = @transform_0, window_bounds = array<i64: 1, 16, 640>}, {pipeline_mode = #tpu.pipeline_mode<synchronous>, transform_indices = @transform_1, window_bounds = array<i64: 9, 16, 16>}, {pipeline_mode = #tpu.pipeline_mode<synchronous>, transform_indices = @transform_2, window_bounds = array<i64: 9, 16, 16>}, {transform_indices = @transform_3, window_bounds = array<i64: 1, 16, 1>}, {transform_indices = @transform_4, window_bounds = array<i64: 1, 16, 1>}, {transform_indices = @transform_5, window_bounds = array<i64: 1, 16, 1>}, {transform_indices = @transform_6, window_bounds = array<i64: 1, 16, 1>}, {pipeline_mode = #tpu.pipeline_mode<synchronous>, transform_indices = @transform_7, window_bounds = array<i64: 1, 384>}, {transform_indices = @transform_8, window_bounds = array<i64: 1, 16, 384>}]} {
    %c0 = arith.constant 0 : index
    %c0_0 = arith.constant 0 : index
    %c0_1 = arith.constant 0 : index
    %0 = vector.load %arg1[%c0, %c0_0, %c0_1] : memref<1x16x640xbf16, #tpu.memory_space<vmem>>, vector<1x16x640xbf16>
    %1 = vector.shape_cast %0 : vector<1x16x640xbf16> to vector<16x640xbf16>
    %cst = arith.constant 0.000000e+00 : f32
    %2 = vector.broadcast %cst : f32 to vector<16x384xf32>
    %c0_2 = arith.constant 0 : index
    %c0_3 = arith.constant 0 : index
    %c0_4 = arith.constant 0 : index
    %3 = vector.load %arg2[%c0_2, %c0_3, %c0_4] : memref<9x16x16xbf16, #tpu.memory_space<vmem>>, vector<1x16x16xbf16>
    %4 = vector.shape_cast %3 : vector<1x16x16xbf16> to vector<16x16xbf16>
    %5 = vector.extract_strided_slice %1 {offsets = [0, 109], sizes = [16, 384], strides = [1, 1]} : vector<16x640xbf16> to vector<16x384xbf16>
    %cst_5 = arith.constant dense<0.000000e+00> : vector<16x384xf32>
    %6 = tpu.matmul %4, %5, %cst_5 {dimension_numbers = #tpu.dot_dimension_numbers<[1], [0], [0], [1], [0, 0, 1, 1], [], []>} : vector<16x16xbf16>, vector<16x384xbf16>, vector<16x384xf32> -> vector<16x384xf32>
    %7 = arith.addf %2, %6 : vector<16x384xf32>
    %c1 = arith.constant 1 : index
    %c0_6 = arith.constant 0 : index
    %c0_7 = arith.constant 0 : index
    %8 = vector.load %arg2[%c1, %c0_6, %c0_7] : memref<9x16x16xbf16, #tpu.memory_space<vmem>>, vector<1x16x16xbf16>
    %9 = vector.shape_cast %8 : vector<1x16x16xbf16> to vector<16x16xbf16>
    %10 = vector.extract_strided_slice %1 {offsets = [0, 110], sizes = [16, 384], strides = [1, 1]} : vector<16x640xbf16> to vector<16x384xbf16>
    %cst_8 = arith.constant dense<0.000000e+00> : vector<16x384xf32>
    %11 = tpu.matmul %9, %10, %cst_8 {dimension_numbers = #tpu.dot_dimension_numbers<[1], [0], [0], [1], [0, 0, 1, 1], [], []>} : vector<16x16xbf16>, vector<16x384xbf16>, vector<16x384xf32> -> vector<16x384xf32>
    %12 = arith.addf %7, %11 : vector<16x384xf32>
    %c2 = arith.constant 2 : index
    %c0_9 = arith.constant 0 : index
    %c0_10 = arith.constant 0 : index
    %13 = vector.load %arg2[%c2, %c0_9, %c0_10] : memref<9x16x16xbf16, #tpu.memory_space<vmem>>, vector<1x16x16xbf16>
    %14 = vector.shape_cast %13 : vector<1x16x16xbf16> to vector<16x16xbf16>
    %15 = vector.extract_strided_slice %1 {offsets = [0, 111], sizes = [16, 384], strides = [1, 1]} : vector<16x640xbf16> to vector<16x384xbf16>
    %cst_11 = arith.constant dense<0.000000e+00> : vector<16x384xf32>
    %16 = tpu.matmul %14, %15, %cst_11 {dimension_numbers = #tpu.dot_dimension_numbers<[1], [0], [0], [1], [0, 0, 1, 1], [], []>} : vector<16x16xbf16>, vector<16x384xbf16>, vector<16x384xf32> -> vector<16x384xf32>
    %17 = arith.addf %12, %16 : vector<16x384xf32>
    %c3 = arith.constant 3 : index
    %c0_12 = arith.constant 0 : index
    %c0_13 = arith.constant 0 : index
    %18 = vector.load %arg2[%c3, %c0_12, %c0_13] : memref<9x16x16xbf16, #tpu.memory_space<vmem>>, vector<1x16x16xbf16>
    %19 = vector.shape_cast %18 : vector<1x16x16xbf16> to vector<16x16xbf16>
    %20 = vector.extract_strided_slice %1 {offsets = [0, 127], sizes = [16, 384], strides = [1, 1]} : vector<16x640xbf16> to vector<16x384xbf16>
    %cst_14 = arith.constant dense<0.000000e+00> : vector<16x384xf32>
    %21 = tpu.matmul %19, %20, %cst_14 {dimension_numbers = #tpu.dot_dimension_numbers<[1], [0], [0], [1], [0, 0, 1, 1], [], []>} : vector<16x16xbf16>, vector<16x384xbf16>, vector<16x384xf32> -> vector<16x384xf32>
    %22 = arith.addf %17, %21 : vector<16x384xf32>
    %c4 = arith.constant 4 : index
    %c0_15 = arith.constant 0 : index
    %c0_16 = arith.constant 0 : index
    %23 = vector.load %arg2[%c4, %c0_15, %c0_16] : memref<9x16x16xbf16, #tpu.memory_space<vmem>>, vector<1x16x16xbf16>
    %24 = vector.shape_cast %23 : vector<1x16x16xbf16> to vector<16x16xbf16>
    %25 = vector.extract_strided_slice %1 {offsets = [0, 128], sizes = [16, 384], strides = [1, 1]} : vector<16x640xbf16> to vector<16x384xbf16>
    %cst_17 = arith.constant dense<0.000000e+00> : vector<16x384xf32>
    %26 = tpu.matmul %24, %25, %cst_17 {dimension_numbers = #tpu.dot_dimension_numbers<[1], [0], [0], [1], [0, 0, 1, 1], [], []>} : vector<16x16xbf16>, vector<16x384xbf16>, vector<16x384xf32> -> vector<16x384xf32>
    %27 = arith.addf %22, %26 : vector<16x384xf32>
    %c5 = arith.constant 5 : index
    %c0_18 = arith.constant 0 : index
    %c0_19 = arith.constant 0 : index
    %28 = vector.load %arg2[%c5, %c0_18, %c0_19] : memref<9x16x16xbf16, #tpu.memory_space<vmem>>, vector<1x16x16xbf16>
    %29 = vector.shape_cast %28 : vector<1x16x16xbf16> to vector<16x16xbf16>
    %30 = vector.extract_strided_slice %1 {offsets = [0, 129], sizes = [16, 384], strides = [1, 1]} : vector<16x640xbf16> to vector<16x384xbf16>
    %cst_20 = arith.constant dense<0.000000e+00> : vector<16x384xf32>
    %31 = tpu.matmul %29, %30, %cst_20 {dimension_numbers = #tpu.dot_dimension_numbers<[1], [0], [0], [1], [0, 0, 1, 1], [], []>} : vector<16x16xbf16>, vector<16x384xbf16>, vector<16x384xf32> -> vector<16x384xf32>
    %32 = arith.addf %27, %31 : vector<16x384xf32>
    %c6 = arith.constant 6 : index
    %c0_21 = arith.constant 0 : index
    %c0_22 = arith.constant 0 : index
    %33 = vector.load %arg2[%c6, %c0_21, %c0_22] : memref<9x16x16xbf16, #tpu.memory_space<vmem>>, vector<1x16x16xbf16>
    %34 = vector.shape_cast %33 : vector<1x16x16xbf16> to vector<16x16xbf16>
    %35 = vector.extract_strided_slice %1 {offsets = [0, 145], sizes = [16, 384], strides = [1, 1]} : vector<16x640xbf16> to vector<16x384xbf16>
    %cst_23 = arith.constant dense<0.000000e+00> : vector<16x384xf32>
    %36 = tpu.matmul %34, %35, %cst_23 {dimension_numbers = #tpu.dot_dimension_numbers<[1], [0], [0], [1], [0, 0, 1, 1], [], []>} : vector<16x16xbf16>, vector<16x384xbf16>, vector<16x384xf32> -> vector<16x384xf32>
    %37 = arith.addf %32, %36 : vector<16x384xf32>
    %c7 = arith.constant 7 : index
    %c0_24 = arith.constant 0 : index
    %c0_25 = arith.constant 0 : index
    %38 = vector.load %arg2[%c7, %c0_24, %c0_25] : memref<9x16x16xbf16, #tpu.memory_space<vmem>>, vector<1x16x16xbf16>
    %39 = vector.shape_cast %38 : vector<1x16x16xbf16> to vector<16x16xbf16>
    %40 = vector.extract_strided_slice %1 {offsets = [0, 146], sizes = [16, 384], strides = [1, 1]} : vector<16x640xbf16> to vector<16x384xbf16>
    %cst_26 = arith.constant dense<0.000000e+00> : vector<16x384xf32>
    %41 = tpu.matmul %39, %40, %cst_26 {dimension_numbers = #tpu.dot_dimension_numbers<[1], [0], [0], [1], [0, 0, 1, 1], [], []>} : vector<16x16xbf16>, vector<16x384xbf16>, vector<16x384xf32> -> vector<16x384xf32>
    %42 = arith.addf %37, %41 : vector<16x384xf32>
    %c8 = arith.constant 8 : index
    %c0_27 = arith.constant 0 : index
    %c0_28 = arith.constant 0 : index
    %43 = vector.load %arg2[%c8, %c0_27, %c0_28] : memref<9x16x16xbf16, #tpu.memory_space<vmem>>, vector<1x16x16xbf16>
    %44 = vector.shape_cast %43 : vector<1x16x16xbf16> to vector<16x16xbf16>
    %45 = vector.extract_strided_slice %1 {offsets = [0, 147], sizes = [16, 384], strides = [1, 1]} : vector<16x640xbf16> to vector<16x384xbf16>
    %cst_29 = arith.constant dense<0.000000e+00> : vector<16x384xf32>
    %46 = tpu.matmul %44, %45, %cst_29 {dimension_numbers = #tpu.dot_dimension_numbers<[1], [0], [0], [1], [0, 0, 1, 1], [], []>} : vector<16x16xbf16>, vector<16x384xbf16>, vector<16x384xf32> -> vector<16x384xf32>
    %47 = arith.addf %42, %46 : vector<16x384xf32>
    %c0_30 = arith.constant 0 : index
    %c0_31 = arith.constant 0 : index
    %c0_32 = arith.constant 0 : index
    %48 = vector.load %arg4[%c0_30, %c0_31, %c0_32] : memref<1x16x1xf32, #tpu.memory_space<vmem>>, vector<1x16x1xf32>
    %49 = vector.shape_cast %48 : vector<1x16x1xf32> to vector<16x1xf32>
    %50 = vector.broadcast %49 : vector<16x1xf32> to vector<16x384xf32>
    %51 = arith.mulf %47, %50 : vector<16x384xf32>
    %c0_33 = arith.constant 0 : index
    %c0_34 = arith.constant 0 : index
    %c0_35 = arith.constant 0 : index
    %52 = vector.load %arg5[%c0_33, %c0_34, %c0_35] : memref<1x16x1xf32, #tpu.memory_space<vmem>>, vector<1x16x1xf32>
    %53 = vector.shape_cast %52 : vector<1x16x1xf32> to vector<16x1xf32>
    %54 = vector.broadcast %53 : vector<16x1xf32> to vector<16x384xf32>
    %55 = arith.addf %51, %54 : vector<16x384xf32>
    %cst_36 = arith.constant 0.000000e+00 : f32
    %56 = vector.broadcast %cst_36 : f32 to vector<16x384xf32>
    %57 = arith.maximumf %55, %56 : vector<16x384xf32>
    %c0_37 = arith.constant 0 : index
    %c0_38 = arith.constant 0 : index
    %58 = vector.load %arg8[%c0_37, %c0_38] : memref<1x384xf32, #tpu.memory_space<vmem>>, vector<1x384xf32>
    %59 = vector.broadcast %58 : vector<1x384xf32> to vector<16x384xf32>
    %60 = arith.mulf %57, %59 : vector<16x384xf32>
    %cst_39 = arith.constant 0.000000e+00 : bf16
    %61 = vector.broadcast %cst_39 : bf16 to vector<16x640xbf16>
    %c0_40 = arith.constant 0 : index
    %c0_41 = arith.constant 0 : index
    %62 = vector.load %arg10[%c0_40, %c0_41] : memref<16x640xbf16, #tpu.memory_space<vmem>>, vector<16x640xbf16>
    tpu.vector_store %arg10[%c0_40, %c0_41], %61 {strides = array<i32>} : memref<16x640xbf16, #tpu.memory_space<vmem>>, vector<16x640xbf16>,
    %63 = arith.truncf %60 : vector<16x384xf32> to vector<16x384xbf16>
    %c0_42 = arith.constant 0 : index
    %c128 = arith.constant 128 : index
    %64 = vector.load %arg10[%c0_42, %c128] : memref<16x640xbf16, #tpu.memory_space<vmem>>, vector<16x384xbf16>
    tpu.vector_store %arg10[%c0_42, %c128], %63 {strides = array<i32>} : memref<16x640xbf16, #tpu.memory_space<vmem>>, vector<16x384xbf16>,
    %c0_43 = arith.constant 0 : index
    %c0_44 = arith.constant 0 : index
    %65 = vector.load %arg10[%c0_43, %c0_44] : memref<16x640xbf16, #tpu.memory_space<vmem>>, vector<16x640xbf16>
    %cst_45 = arith.constant 0.000000e+00 : f32
    %66 = vector.broadcast %cst_45 : f32 to vector<16x384xf32>
    %c0_46 = arith.constant 0 : index
    %c0_47 = arith.constant 0 : index
    %c0_48 = arith.constant 0 : index
    %67 = vector.load %arg3[%c0_46, %c0_47, %c0_48] : memref<9x16x16xbf16, #tpu.memory_space<vmem>>, vector<1x16x16xbf16>
    %68 = vector.shape_cast %67 : vector<1x16x16xbf16> to vector<16x16xbf16>
    %69 = vector.extract_strided_slice %65 {offsets = [0, 109], sizes = [16, 384], strides = [1, 1]} : vector<16x640xbf16> to vector<16x384xbf16>
    %cst_49 = arith.constant dense<0.000000e+00> : vector<16x384xf32>
    %70 = tpu.matmul %68, %69, %cst_49 {dimension_numbers = #tpu.dot_dimension_numbers<[1], [0], [0], [1], [0, 0, 1, 1], [], []>} : vector<16x16xbf16>, vector<16x384xbf16>, vector<16x384xf32> -> vector<16x384xf32>
    %71 = arith.addf %66, %70 : vector<16x384xf32>
    %c1_50 = arith.constant 1 : index
    %c0_51 = arith.constant 0 : index
    %c0_52 = arith.constant 0 : index
    %72 = vector.load %arg3[%c1_50, %c0_51, %c0_52] : memref<9x16x16xbf16, #tpu.memory_space<vmem>>, vector<1x16x16xbf16>
    %73 = vector.shape_cast %72 : vector<1x16x16xbf16> to vector<16x16xbf16>
    %74 = vector.extract_strided_slice %65 {offsets = [0, 110], sizes = [16, 384], strides = [1, 1]} : vector<16x640xbf16> to vector<16x384xbf16>
    %cst_53 = arith.constant dense<0.000000e+00> : vector<16x384xf32>
    %75 = tpu.matmul %73, %74, %cst_53 {dimension_numbers = #tpu.dot_dimension_numbers<[1], [0], [0], [1], [0, 0, 1, 1], [], []>} : vector<16x16xbf16>, vector<16x384xbf16>, vector<16x384xf32> -> vector<16x384xf32>
    %76 = arith.addf %71, %75 : vector<16x384xf32>
    %c2_54 = arith.constant 2 : index
    %c0_55 = arith.constant 0 : index
    %c0_56 = arith.constant 0 : index
    %77 = vector.load %arg3[%c2_54, %c0_55, %c0_56] : memref<9x16x16xbf16, #tpu.memory_space<vmem>>, vector<1x16x16xbf16>
    %78 = vector.shape_cast %77 : vector<1x16x16xbf16> to vector<16x16xbf16>
    %79 = vector.extract_strided_slice %65 {offsets = [0, 111], sizes = [16, 384], strides = [1, 1]} : vector<16x640xbf16> to vector<16x384xbf16>
    %cst_57 = arith.constant dense<0.000000e+00> : vector<16x384xf32>
    %80 = tpu.matmul %78, %79, %cst_57 {dimension_numbers = #tpu.dot_dimension_numbers<[1], [0], [0], [1], [0, 0, 1, 1], [], []>} : vector<16x16xbf16>, vector<16x384xbf16>, vector<16x384xf32> -> vector<16x384xf32>
    %81 = arith.addf %76, %80 : vector<16x384xf32>
    %c3_58 = arith.constant 3 : index
    %c0_59 = arith.constant 0 : index
    %c0_60 = arith.constant 0 : index
    %82 = vector.load %arg3[%c3_58, %c0_59, %c0_60] : memref<9x16x16xbf16, #tpu.memory_space<vmem>>, vector<1x16x16xbf16>
    %83 = vector.shape_cast %82 : vector<1x16x16xbf16> to vector<16x16xbf16>
    %84 = vector.extract_strided_slice %65 {offsets = [0, 127], sizes = [16, 384], strides = [1, 1]} : vector<16x640xbf16> to vector<16x384xbf16>
    %cst_61 = arith.constant dense<0.000000e+00> : vector<16x384xf32>
    %85 = tpu.matmul %83, %84, %cst_61 {dimension_numbers = #tpu.dot_dimension_numbers<[1], [0], [0], [1], [0, 0, 1, 1], [], []>} : vector<16x16xbf16>, vector<16x384xbf16>, vector<16x384xf32> -> vector<16x384xf32>
    %86 = arith.addf %81, %85 : vector<16x384xf32>
    %c4_62 = arith.constant 4 : index
    %c0_63 = arith.constant 0 : index
    %c0_64 = arith.constant 0 : index
    %87 = vector.load %arg3[%c4_62, %c0_63, %c0_64] : memref<9x16x16xbf16, #tpu.memory_space<vmem>>, vector<1x16x16xbf16>
    %88 = vector.shape_cast %87 : vector<1x16x16xbf16> to vector<16x16xbf16>
    %89 = vector.extract_strided_slice %65 {offsets = [0, 128], sizes = [16, 384], strides = [1, 1]} : vector<16x640xbf16> to vector<16x384xbf16>
    %cst_65 = arith.constant dense<0.000000e+00> : vector<16x384xf32>
    %90 = tpu.matmul %88, %89, %cst_65 {dimension_numbers = #tpu.dot_dimension_numbers<[1], [0], [0], [1], [0, 0, 1, 1], [], []>} : vector<16x16xbf16>, vector<16x384xbf16>, vector<16x384xf32> -> vector<16x384xf32>
    %91 = arith.addf %86, %90 : vector<16x384xf32>
    %c5_66 = arith.constant 5 : index
    %c0_67 = arith.constant 0 : index
    %c0_68 = arith.constant 0 : index
    %92 = vector.load %arg3[%c5_66, %c0_67, %c0_68] : memref<9x16x16xbf16, #tpu.memory_space<vmem>>, vector<1x16x16xbf16>
    %93 = vector.shape_cast %92 : vector<1x16x16xbf16> to vector<16x16xbf16>
    %94 = vector.extract_strided_slice %65 {offsets = [0, 129], sizes = [16, 384], strides = [1, 1]} : vector<16x640xbf16> to vector<16x384xbf16>
    %cst_69 = arith.constant dense<0.000000e+00> : vector<16x384xf32>
    %95 = tpu.matmul %93, %94, %cst_69 {dimension_numbers = #tpu.dot_dimension_numbers<[1], [0], [0], [1], [0, 0, 1, 1], [], []>} : vector<16x16xbf16>, vector<16x384xbf16>, vector<16x384xf32> -> vector<16x384xf32>
    %96 = arith.addf %91, %95 : vector<16x384xf32>
    %c6_70 = arith.constant 6 : index
    %c0_71 = arith.constant 0 : index
    %c0_72 = arith.constant 0 : index
    %97 = vector.load %arg3[%c6_70, %c0_71, %c0_72] : memref<9x16x16xbf16, #tpu.memory_space<vmem>>, vector<1x16x16xbf16>
    %98 = vector.shape_cast %97 : vector<1x16x16xbf16> to vector<16x16xbf16>
    %99 = vector.extract_strided_slice %65 {offsets = [0, 145], sizes = [16, 384], strides = [1, 1]} : vector<16x640xbf16> to vector<16x384xbf16>
    %cst_73 = arith.constant dense<0.000000e+00> : vector<16x384xf32>
    %100 = tpu.matmul %98, %99, %cst_73 {dimension_numbers = #tpu.dot_dimension_numbers<[1], [0], [0], [1], [0, 0, 1, 1], [], []>} : vector<16x16xbf16>, vector<16x384xbf16>, vector<16x384xf32> -> vector<16x384xf32>
    %101 = arith.addf %96, %100 : vector<16x384xf32>
    %c7_74 = arith.constant 7 : index
    %c0_75 = arith.constant 0 : index
    %c0_76 = arith.constant 0 : index
    %102 = vector.load %arg3[%c7_74, %c0_75, %c0_76] : memref<9x16x16xbf16, #tpu.memory_space<vmem>>, vector<1x16x16xbf16>
    %103 = vector.shape_cast %102 : vector<1x16x16xbf16> to vector<16x16xbf16>
    %104 = vector.extract_strided_slice %65 {offsets = [0, 146], sizes = [16, 384], strides = [1, 1]} : vector<16x640xbf16> to vector<16x384xbf16>
    %cst_77 = arith.constant dense<0.000000e+00> : vector<16x384xf32>
    %105 = tpu.matmul %103, %104, %cst_77 {dimension_numbers = #tpu.dot_dimension_numbers<[1], [0], [0], [1], [0, 0, 1, 1], [], []>} : vector<16x16xbf16>, vector<16x384xbf16>, vector<16x384xf32> -> vector<16x384xf32>
    %106 = arith.addf %101, %105 : vector<16x384xf32>
    %c8_78 = arith.constant 8 : index
    %c0_79 = arith.constant 0 : index
    %c0_80 = arith.constant 0 : index
    %107 = vector.load %arg3[%c8_78, %c0_79, %c0_80] : memref<9x16x16xbf16, #tpu.memory_space<vmem>>, vector<1x16x16xbf16>
    %108 = vector.shape_cast %107 : vector<1x16x16xbf16> to vector<16x16xbf16>
    %109 = vector.extract_strided_slice %65 {offsets = [0, 147], sizes = [16, 384], strides = [1, 1]} : vector<16x640xbf16> to vector<16x384xbf16>
    %cst_81 = arith.constant dense<0.000000e+00> : vector<16x384xf32>
    %110 = tpu.matmul %108, %109, %cst_81 {dimension_numbers = #tpu.dot_dimension_numbers<[1], [0], [0], [1], [0, 0, 1, 1], [], []>} : vector<16x16xbf16>, vector<16x384xbf16>, vector<16x384xf32> -> vector<16x384xf32>
    %111 = arith.addf %106, %110 : vector<16x384xf32>
    %c0_82 = arith.constant 0 : index
    %c0_83 = arith.constant 0 : index
    %c0_84 = arith.constant 0 : index
    %112 = vector.load %arg6[%c0_82, %c0_83, %c0_84] : memref<1x16x1xf32, #tpu.memory_space<vmem>>, vector<1x16x1xf32>
    %113 = vector.shape_cast %112 : vector<1x16x1xf32> to vector<16x1xf32>
    %114 = vector.broadcast %113 : vector<16x1xf32> to vector<16x384xf32>
    %115 = arith.mulf %111, %114 : vector<16x384xf32>
    %c0_85 = arith.constant 0 : index
    %c0_86 = arith.constant 0 : index
    %c0_87 = arith.constant 0 : index
    %116 = vector.load %arg7[%c0_85, %c0_86, %c0_87] : memref<1x16x1xf32, #tpu.memory_space<vmem>>, vector<1x16x1xf32>
    %117 = vector.shape_cast %116 : vector<1x16x1xf32> to vector<16x1xf32>
    %118 = vector.broadcast %117 : vector<16x1xf32> to vector<16x384xf32>
    %119 = arith.addf %115, %118 : vector<16x384xf32>
    %cst_88 = arith.constant 0.000000e+00 : f32
    %120 = vector.broadcast %cst_88 : f32 to vector<16x384xf32>
    %121 = arith.maximumf %119, %120 : vector<16x384xf32>
    %c0_89 = arith.constant 0 : index
    %c0_90 = arith.constant 0 : index
    %c0_91 = arith.constant 0 : index
    %122 = vector.load %arg9[%c0_89, %c0_90, %c0_91] : memref<1x16x384xf32, #tpu.memory_space<vmem>>, vector<1x16x384xf32>
    %123 = vector.shape_cast %122 : vector<1x16x384xf32> to vector<16x384xf32>
    %124 = vector.shape_cast %121 : vector<16x384xf32> to vector<1x16x384xf32>
    tpu.vector_store %arg9[%c0_89, %c0_90, %c0_91], %124 {strides = array<i32>} : memref<1x16x384xf32, #tpu.memory_space<vmem>>, vector<1x16x384xf32>,
    return
  }
  func.func @transform_0(%arg0: i32) -> (i32, i32, i32) {
    %c0_i32 = arith.constant 0 : i32
    %c0_i32_0 = arith.constant 0 : i32
    %c0_i32_1 = arith.constant 0 : i32
    return %arg0, %c0_i32, %c0_i32_0 : i32, i32, i32
  }
  func.func @transform_1(%arg0: i32) -> (i32, i32, i32) {
    %c0_i32 = arith.constant 0 : i32
    %c0_i32_0 = arith.constant 0 : i32
    %c0_i32_1 = arith.constant 0 : i32
    %c0_i32_2 = arith.constant 0 : i32
    return %c0_i32, %c0_i32_0, %c0_i32_1 : i32, i32, i32
  }
  func.func @transform_2(%arg0: i32) -> (i32, i32, i32) {
    %c0_i32 = arith.constant 0 : i32
    %c0_i32_0 = arith.constant 0 : i32
    %c0_i32_1 = arith.constant 0 : i32
    %c0_i32_2 = arith.constant 0 : i32
    return %c0_i32, %c0_i32_0, %c0_i32_1 : i32, i32, i32
  }
  func.func @transform_3(%arg0: i32) -> (i32, i32, i32) {
    %c0_i32 = arith.constant 0 : i32
    %c0_i32_0 = arith.constant 0 : i32
    %c0_i32_1 = arith.constant 0 : i32
    return %arg0, %c0_i32, %c0_i32_0 : i32, i32, i32
  }
  func.func @transform_4(%arg0: i32) -> (i32, i32, i32) {
    %c0_i32 = arith.constant 0 : i32
    %c0_i32_0 = arith.constant 0 : i32
    %c0_i32_1 = arith.constant 0 : i32
    return %arg0, %c0_i32, %c0_i32_0 : i32, i32, i32
  }
  func.func @transform_5(%arg0: i32) -> (i32, i32, i32) {
    %c0_i32 = arith.constant 0 : i32
    %c0_i32_0 = arith.constant 0 : i32
    %c0_i32_1 = arith.constant 0 : i32
    return %arg0, %c0_i32, %c0_i32_0 : i32, i32, i32
  }
  func.func @transform_6(%arg0: i32) -> (i32, i32, i32) {
    %c0_i32 = arith.constant 0 : i32
    %c0_i32_0 = arith.constant 0 : i32
    %c0_i32_1 = arith.constant 0 : i32
    return %arg0, %c0_i32, %c0_i32_0 : i32, i32, i32
  }
  func.func @transform_7(%arg0: i32) -> (i32, i32) {
    %c0_i32 = arith.constant 0 : i32
    %c0_i32_0 = arith.constant 0 : i32
    %c0_i32_1 = arith.constant 0 : i32
    return %c0_i32, %c0_i32_0 : i32, i32
  }
  func.func @transform_8(%arg0: i32) -> (i32, i32, i32) {
    %c0_i32 = arith.constant 0 : i32
    %c0_i32_0 = arith.constant 0 : i32
    %c0_i32_1 = arith.constant 0 : i32
    return %arg0, %c0_i32, %c0_i32_0 : i32, i32, i32
  }
}

</mosaic_0001>

<llo_original>
// kernel: tpu_custom_call.1
$region0: #{tpu_custom_call.1}
  #allocation0 [shape = 'u32[]', space=smem, size = 0x4, offset = 0x4, fixed_abs, tag = 'smem constant byte address 0x4 - core index']
  #allocation1 [shape = 'u32[144,128]{1,0:T(1,128)}', space=vmem, size = 0x12000, scoped, tag = 'internal scratch']
  #allocation2 [shape = 'bf16[16,640]{1,0:T(16,128)(2,1)}', space=vmem, size = 0x5000, scoped, tag = 'scratch operand']
  %s0 = inlined_call_operand.hbm [shape: bf16[2,16,640], index: 0, kind: input, shape index: {}]
  %s1 = inlined_call_operand.hbm [shape: bf16[9,16,16], index: 1, kind: input, shape index: {}]
  %s2 = inlined_call_operand.hbm [shape: bf16[9,16,16], index: 2, kind: input, shape index: {}]
  %s3 = inlined_call_operand.hbm [shape: f32[2,16,1], index: 3, kind: input, shape index: {}]
  %s4 = inlined_call_operand.hbm [shape: f32[2,16,1], index: 4, kind: input, shape index: {}]
  %s5 = inlined_call_operand.hbm [shape: f32[2,16,1], index: 5, kind: input, shape index: {}]
  %s6 = inlined_call_operand.hbm [shape: f32[2,16,1], index: 6, kind: input, shape index: {}]
  %s7 = inlined_call_operand.hbm [shape: f32[1,384], index: 7, kind: input, shape index: {}]
  %s8 = inlined_call_operand.hbm [shape: f32[2,16,384], index: 8, kind: output, shape index: {}]
  %s9 = sld [smem:[#allocation0]]
  $region97: #{tpu_custom_call.1} parent=0
    _
  %s11 = ssub.s32 1, %s9
  %s12 = scalar_select 0, %s11, %s9
  $region1: #{tpu_custom_call.1} parent=0
    #allocation3 [shape = 'u8[40960]{0}', space=vmem, size = 0xa000, scoped, tag = 'input window, operand 0']
    #allocation4 [shape = 's32[2]{0}', space=sflag, size = 0x8, scoped, tag = 'scoped memory for tpu_custom_call.1']
    #allocation5 [shape = 's32[2]{0}', space=sflag, size = 0x8, scoped, tag = 'scoped memory for tpu_custom_call.1']
    #allocation6 [shape = 'u8[36864]{0}', space=vmem, size = 0x9000, scoped, tag = 'input window, operand 1, single buffered']
    #allocation7 [shape = 's32[1]{0}', space=sflag, size = 0x4, scoped, tag = 'scoped memory for tpu_custom_call.1']
    #allocation8 [shape = 'u8[36864]{0}', space=vmem, size = 0x9000, scoped, tag = 'input window, operand 2, single buffered']
    #allocation9 [shape = 'u8[16384]{0}', space=vmem, size = 0x4000, scoped, tag = 'input window, operand 3']
    #allocation10 [shape = 's32[2]{0}', space=sflag, size = 0x8, scoped, tag = 'scoped memory for tpu_custom_call.1']
    #allocation11 [shape = 'u8[16384]{0}', space=vmem, size = 0x4000, scoped, tag = 'input window, operand 4']
    #allocation12 [shape = 'u8[16384]{0}', space=vmem, size = 0x4000, scoped, tag = 'input window, operand 5']
    #allocation13 [shape = 's32[2]{0}', space=sflag, size = 0x8, scoped, tag = 'scoped memory for tpu_custom_call.1']
    #allocation14 [shape = 'u8[16384]{0}', space=vmem, size = 0x4000, scoped, tag = 'input window, operand 6']
    #allocation15 [shape = 'u8[1536]{0}', space=vmem, size = 0x800, scoped, tag = 'input window, operand 7, single buffered']
    #allocation16 [shape = 's32[1]{0}', space=sflag, size = 0x4, scoped, tag = 'scoped memory for tpu_custom_call.1']
    #allocation17 [shape = 'u8[49152]{0}', space=vmem, size = 0xc000, scoped, tag = 'output window, operand 0']
    %13 = vsyncpa [#allocation4], 0
    %s14 = scalar_lea.sflag [#allocation4], 1
    %15 = vsyncpa %s14, 0
    %16 = vsyncpa [#allocation7], 0
    %17 = vsyncpa [#allocation10], 0
    %s18 = scalar_lea.sflag [#allocation10], 1
    %19 = vsyncpa %s18, 0
    %20 = vsyncpa [#allocation13], 0
    %s21 = scalar_lea.sflag [#allocation13], 1
    %22 = vsyncpa %s21, 0
    %23 = vsyncpa [#allocation16], 0
    %24 = vsyncpa [#allocation5], 0
    %s25 = scalar_lea.sflag [#allocation5], 1
    %26 = vsyncpa %s25, 0
    loop: start=0, step=1, limit=4
    $region2: #{tpu_custom_call.1} parent=1 // loop_pre_header
      _
    $region3: #{tpu_custom_call.1} parent=1 // loop_header
      %s28 = sphi 0, %s32
      %p29 = scmp.ge.s32.totalorder %s28, 4
      %s38 = sphi 0, %s40
      %s41 = sphi 0, %s38
      %s42 = sphi 0, %s41
      %s58 = sphi 0, %s42
      %s62 = sphi 0, %s62
      %s64 = sphi 0, %s62
      %s65 = sphi 0, %s64
      %s79 = sphi 0, %s65
      %s83 = sphi 0, %s83
      %s85 = sphi 0, %s83
      %s86 = sphi 0, %s85
      %s100 = sphi 0, %s86
      %s106 = sphi 0, %s108
      %s109 = sphi 0, %s106
      %s110 = sphi 0, %s109
      %s126 = sphi 0, %s110
      %s132 = sphi 0, %s134
      %s135 = sphi 0, %s132
      %s136 = sphi 0, %s135
      %s152 = sphi 0, %s136
      %s158 = sphi 0, %s160
      %s161 = sphi 0, %s158
      %s162 = sphi 0, %s161
      %s178 = sphi 0, %s162
      %s184 = sphi 0, %s186
      %s187 = sphi 0, %s184
      %s188 = sphi 0, %s187
      %s204 = sphi 0, %s188
      %s208 = sphi 0, %s208
      %s210 = sphi 0, %s208
      %s211 = sphi 0, %s210
      %s225 = sphi 0, %s211
      %s231 = sphi 0, %s233
      %s234 = sphi 0, %s231
      %s235 = sphi 0, %s234
      %s251 = sphi 0, %s235
    $region4: #{tpu_custom_call.1} parent=1 // loop_header_branch
      %31 = sbr.rel (%p29) target = $region8
    $region5: #{tpu_custom_call.1} parent=1 // loop_body
      %s33 = ssub.s32 %s28, 1
      %s34 = ssub.s32 %s28, 2
      %s35 = sadd.s32 %s28, 1
      %s36 = ssub.s32 %s28, %s35
      %p37 = scmp.eq.s32.totalorder %s36, 0
      %s39 = sadd.s32 %s38, 1
      %s40 = scalar_select %p37, %s38, %s39
      %p43 = pneg %p37
      %p44 = scmp.eq.s32.totalorder %s28, 1
      %p45 = por %p43, %p44
      %p46 = scmp.ne.s32.totalorder %s38, %s41
      %p47 = scmp.eq.s32.totalorder %s28, 0
      %p48 = por %p46, %p47
      %p49 = scmp.ne.s32.totalorder %s38, %s41
      %p50 = scmp.eq.s32.totalorder %s33, 1
      %p51 = por %p49, %p50
      %p52 = scmp.ne.s32.totalorder %s41, %s42
      %p53 = scmp.eq.s32.totalorder %s33, 0
      %p54 = por %p52, %p53
      %p55 = scmp.ne.s32.totalorder %s41, %s42
      %p56 = scmp.eq.s32.totalorder %s34, 1
      %p57 = por %p55, %p56
      %p59 = scmp.ne.s32.totalorder %s42, %s58
      %p60 = scmp.eq.s32.totalorder %s34, 0
      %p61 = por %p59, %p60
      %s63 = sadd.s32 %s62, 1
      %p66 = scmp.eq.s32.totalorder %s28, 1
      %p67 = scmp.ne.s32.totalorder %s62, %s64
      %p68 = scmp.eq.s32.totalorder %s28, 0
      %p69 = por %p67, %p68
      %p70 = scmp.ne.s32.totalorder %s62, %s64
      %p71 = scmp.eq.s32.totalorder %s33, 1
      %p72 = por %p70, %p71
      %p73 = scmp.ne.s32.totalorder %s64, %s65
      %p74 = scmp.eq.s32.totalorder %s33, 0
      %p75 = por %p73, %p74
      %p76 = scmp.ne.s32.totalorder %s64, %s65
      %p77 = scmp.eq.s32.totalorder %s34, 1
      %p78 = por %p76, %p77
      %p80 = scmp.ne.s32.totalorder %s65, %s79
      %p81 = scmp.eq.s32.totalorder %s34, 0
      %p82 = por %p80, %p81
      %s84 = sadd.s32 %s83, 1
      %p87 = scmp.eq.s32.totalorder %s28, 1
      %p88 = scmp.ne.s32.totalorder %s83, %s85
      %p89 = scmp.eq.s32.totalorder %s28, 0
      %p90 = por %p88, %p89
      %p91 = scmp.ne.s32.totalorder %s83, %s85
      %p92 = scmp.eq.s32.totalorder %s33, 1
      %p93 = por %p91, %p92
      %p94 = scmp.ne.s32.totalorder %s85, %s86
      %p95 = scmp.eq.s32.totalorder %s33, 0
      %p96 = por %p94, %p95
      %p97 = scmp.ne.s32.totalorder %s85, %s86
      %p98 = scmp.eq.s32.totalorder %s34, 1
      %p99 = por %p97, %p98
      %p101 = scmp.ne.s32.totalorder %s86, %s100
      %p102 = scmp.eq.s32.totalorder %s34, 0
      %p103 = por %p101, %p102
      %s104 = ssub.s32 %s28, %s35
      %p105 = scmp.eq.s32.totalorder %s104, 0
      %s107 = sadd.s32 %s106, 1
      %s108 = scalar_select %p105, %s106, %s107
      %p111 = pneg %p105
      %p112 = scmp.eq.s32.totalorder %s28, 1
      %p113 = por %p111, %p112
      %p114 = scmp.ne.s32.totalorder %s106, %s109
      %p115 = scmp.eq.s32.totalorder %s28, 0
      %p116 = por %p114, %p115
      %p117 = scmp.ne.s32.totalorder %s106, %s109
      %p118 = scmp.eq.s32.totalorder %s33, 1
      %p119 = por %p117, %p118
      %p120 = scmp.ne.s32.totalorder %s109, %s110
      %p121 = scmp.eq.s32.totalorder %s33, 0
      %p122 = por %p120, %p121
      %p123 = scmp.ne.s32.totalorder %s109, %s110
      %p124 = scmp.eq.s32.totalorder %s34, 1
      %p125 = por %p123, %p124
      %p127 = scmp.ne.s32.totalorder %s110, %s126
      %p128 = scmp.eq.s32.totalorder %s34, 0
      %p129 = por %p127, %p128
      %s130 = ssub.s32 %s28, %s35
      %p131 = scmp.eq.s32.totalorder %s130, 0
      %s133 = sadd.s32 %s132, 1
      %s134 = scalar_select %p131, %s132, %s133
      %p137 = pneg %p131
      %p138 = scmp.eq.s32.totalorder %s28, 1
      %p139 = por %p137, %p138
      %p140 = scmp.ne.s32.totalorder %s132, %s135
      %p141 = scmp.eq.s32.totalorder %s28, 0
      %p142 = por %p140, %p141
      %p143 = scmp.ne.s32.totalorder %s132, %s135
      %p144 = scmp.eq.s32.totalorder %s33, 1
      %p145 = por %p143, %p144
      %p146 = scmp.ne.s32.totalorder %s135, %s136
      %p147 = scmp.eq.s32.totalorder %s33, 0
      %p148 = por %p146, %p147
      %p149 = scmp.ne.s32.totalorder %s135, %s136
      %p150 = scmp.eq.s32.totalorder %s34, 1
      %p151 = por %p149, %p150
      %p153 = scmp.ne.s32.totalorder %s136, %s152
      %p154 = scmp.eq.s32.totalorder %s34, 0
      %p155 = por %p153, %p154
      %s156 = ssub.s32 %s28, %s35
      %p157 = scmp.eq.s32.totalorder %s156, 0
      %s159 = sadd.s32 %s158, 1
      %s160 = scalar_select %p157, %s158, %s159
      %p163 = pneg %p157
      %p164 = scmp.eq.s32.totalorder %s28, 1
      %p165 = por %p163, %p164
      %p166 = scmp.ne.s32.totalorder %s158, %s161
      %p167 = scmp.eq.s32.totalorder %s28, 0
      %p168 = por %p166, %p167
      %p169 = scmp.ne.s32.totalorder %s158, %s161
      %p170 = scmp.eq.s32.totalorder %s33, 1
      %p171 = por %p169, %p170
      %p172 = scmp.ne.s32.totalorder %s161, %s162
      %p173 = scmp.eq.s32.totalorder %s33, 0
      %p174 = por %p172, %p173
      %p175 = scmp.ne.s32.totalorder %s161, %s162
      %p176 = scmp.eq.s32.totalorder %s34, 1
      %p177 = por %p175, %p176
      %p179 = scmp.ne.s32.totalorder %s162, %s178
      %p180 = scmp.eq.s32.totalorder %s34, 0
      %p181 = por %p179, %p180
      %s182 = ssub.s32 %s28, %s35
      %p183 = scmp.eq.s32.totalorder %s182, 0
      %s185 = sadd.s32 %s184, 1
      %s186 = scalar_select %p183, %s184, %s185
      %p189 = pneg %p183
      %p190 = scmp.eq.s32.totalorder %s28, 1
      %p191 = por %p189, %p190
      %p192 = scmp.ne.s32.totalorder %s184, %s187
      %p193 = scmp.eq.s32.totalorder %s28, 0
      %p194 = por %p192, %p193
      %p195 = scmp.ne.s32.totalorder %s184, %s187
      %p196 = scmp.eq.s32.totalorder %s33, 1
      %p197 = por %p195, %p196
      %p198 = scmp.ne.s32.totalorder %s187, %s188
      %p199 = scmp.eq.s32.totalorder %s33, 0
      %p200 = por %p198, %p199
      %p201 = scmp.ne.s32.totalorder %s187, %s188
      %p202 = scmp.eq.s32.totalorder %s34, 1
      %p203 = por %p201, %p202
      %p205 = scmp.ne.s32.totalorder %s188, %s204
      %p206 = scmp.eq.s32.totalorder %s34, 0
      %p207 = por %p205, %p206
      %s209 = sadd.s32 %s208, 1
      %p212 = scmp.eq.s32.totalorder %s28, 1
      %p213 = scmp.ne.s32.totalorder %s208, %s210
      %p214 = scmp.eq.s32.totalorder %s28, 0
      %p215 = por %p213, %p214
      %p216 = scmp.ne.s32.totalorder %s208, %s210
      %p217 = scmp.eq.s32.totalorder %s33, 1
      %p218 = por %p216, %p217
      %p219 = scmp.ne.s32.totalorder %s210, %s211
      %p220 = scmp.eq.s32.totalorder %s33, 0
      %p221 = por %p219, %p220
      %p222 = scmp.ne.s32.totalorder %s210, %s211
      %p223 = scmp.eq.s32.totalorder %s34, 1
      %p224 = por %p222, %p223
      %p226 = scmp.ne.s32.totalorder %s211, %s225
      %p227 = scmp.eq.s32.totalorder %s34, 0
      %p228 = por %p226, %p227
      %s229 = ssub.s32 %s28, %s35
      %p230 = scmp.eq.s32.totalorder %s229, 0
      %s232 = sadd.s32 %s231, 1
      %s233 = scalar_select %p230, %s231, %s232
      %p236 = pneg %p230
      %p237 = scmp.eq.s32.totalorder %s28, 1
      %p238 = por %p236, %p237
      %p239 = scmp.ne.s32.totalorder %s231, %s234
      %p240 = scmp.eq.s32.totalorder %s28, 0
      %p241 = por %p239, %p240
      %p242 = scmp.ne.s32.totalorder %s231, %s234
      %p243 = scmp.eq.s32.totalorder %s33, 1
      %p244 = por %p242, %p243
      %p245 = scmp.ne.s32.totalorder %s234, %s235
      %p246 = scmp.eq.s32.totalorder %s33, 0
      %p247 = por %p245, %p246
      %p248 = scmp.ne.s32.totalorder %s234, %s235
      %p249 = scmp.eq.s32.totalorder %s34, 1
      %p250 = por %p248, %p249
      %p252 = scmp.ne.s32.totalorder %s235, %s251
      %p253 = scmp.eq.s32.totalorder %s34, 0
      %p254 = por %p252, %p253
      %p255 = scmp.le.s32.totalorder 1, %s28
      %p256 = scmp.lt.s32.totalorder %s28, 3
      %p257 = pnand %p255, %p256
      %p258 = pneg %p257
      // Predicated region
      $region9: #{tpu_custom_call.1} parent=5 // pred_check
        _
      $region10: #{tpu_custom_call.1} parent=5 // pred_check_branch
        %260 = sbr.rel (%p257) target = $region12
      $region11: #{tpu_custom_call.1} parent=5 // pred_region
        %s261 = ssub.s32 %s28, 1
        // Predicated region
        $region13: #{tpu_custom_call.1} parent=11 // pred_check
          %p262 = pneg %p75
        $region14: #{tpu_custom_call.1} parent=11 // pred_check_branch
          %264 = sbr.rel (%p262) target = $region16
        $region15: #{tpu_custom_call.1} parent=11 // pred_region
          %s266 = ssub.s32 1152, 1152
          %267 = vsyncadd [#allocation7], %s266
          %s268 = sshll.u32 [#allocation6], 4
          %s269 = int_to_ptr.vmem [resolvable:$true] %s268
          %274 = dma.hbm_to_vmem [thread:$0]  %s1, 1152, %s269, [#allocation7], 64, 64, 4
        $region16: #{tpu_custom_call.1} parent=11 // pred_fallthru
          _
        // Predicated region
        $region17: #{tpu_custom_call.1} parent=11 // pred_check
          %p275 = pneg %p96
        $region18: #{tpu_custom_call.1} parent=11 // pred_check_branch
          %277 = sbr.rel (%p275) target = $region20
        $region19: #{tpu_custom_call.1} parent=11 // pred_region
          %s279 = ssub.s32 1152, 1152
          %280 = vsyncadd [#allocation7], %s279
          %s281 = sshll.u32 [#allocation8], 4
          %s282 = int_to_ptr.vmem [resolvable:$true] %s281
          %287 = dma.hbm_to_vmem [thread:$0]  %s2, 1152, %s282, [#allocation7], 64, 64, 4
        $region20: #{tpu_custom_call.1} parent=11 // pred_fallthru
          _
        // Predicated region
        $region21: #{tpu_custom_call.1} parent=11 // pred_check
          %p288 = pneg %p221
        $region22: #{tpu_custom_call.1} parent=11 // pred_check_branch
          %290 = sbr.rel (%p288) target = $region24
        $region23: #{tpu_custom_call.1} parent=11 // pred_region
          %s292 = ssub.s32 48, 48
          %293 = vsyncadd [#allocation16], %s292
          %s295 = sshll.u32 [#allocation15], 4
          %s296 = int_to_ptr.vmem [resolvable:$true] %s295
          %298 = dma.hbm_to_vmem [thread:$0]  %s7, 48, %s296, [#allocation16]
        $region24: #{tpu_custom_call.1} parent=11 // pred_fallthru
          _
      $region12: #{tpu_custom_call.1} parent=5 // pred_fallthru
        _
      %p299 = scmp.lt.s32.totalorder %s28, 2
      // Predicated region
      $region25: #{tpu_custom_call.1} parent=5 // pred_check
        %p300 = pneg %p299
      $region26: #{tpu_custom_call.1} parent=5 // pred_check_branch
        %302 = sbr.rel (%p300) target = $region28
      $region27: #{tpu_custom_call.1} parent=5 // pred_region
        // Predicated region
        $region29: #{tpu_custom_call.1} parent=27 // pred_check
          %p303 = pneg %p48
        $region30: #{tpu_custom_call.1} parent=27 // pred_check_branch
          %305 = sbr.rel (%p303) target = $region32
        $region31: #{tpu_custom_call.1} parent=27 // pred_region
          %s306 = sand.u32 %s38, 1
          %s307 = scalar_lea.sflag [#allocation4], %s306
          %s308 = sand.u32 %s38, 1
          %s309 = smul.addr %s308, 40
          %s310 = scalar_lea.vmem [#allocation3], %s309
          %s312 = ssub.s32 640, 640
          %313 = vsyncadd %s307, %s312
          %s314 = smul.addr %s28, 10
          %s315 = smul.addr %s314, 64
          %s316 = scalar_lea.hbm %s0, %s315
          %s317 = sshll.u32 %s310, 4
          %s318 = int_to_ptr.vmem [resolvable:$true] %s317
          %323 = dma.hbm_to_vmem [thread:$0]  %s316, 640, %s318, %s307, 320, 320, 20
        $region32: #{tpu_custom_call.1} parent=27 // pred_fallthru
          _
        // Predicated region
        $region33: #{tpu_custom_call.1} parent=27 // pred_check
          %p324 = pneg %p116
        $region34: #{tpu_custom_call.1} parent=27 // pred_check_branch
          %326 = sbr.rel (%p324) target = $region36
        $region35: #{tpu_custom_call.1} parent=27 // pred_region
          %s327 = sand.u32 %s28, 1
          %s328 = scalar_lea.sflag [#allocation10], %s327
          %s329 = sand.u32 %s106, 1
          %s330 = smul.addr %s329, 16
          %s331 = scalar_lea.vmem [#allocation9], %s330
          %s333 = ssub.s32 256, 256
          %334 = vsyncadd %s328, %s333
          %s335 = smul.addr %s28, 2
          %s336 = smul.addr %s335, 128
          %s337 = scalar_lea.hbm %s3, %s336
          %s338 = sshll.u32 %s331, 4
          %s339 = int_to_ptr.vmem [resolvable:$true] %s338
          %344 = dma.hbm_to_vmem [thread:$0]  %s337, 256, %s339, %s328, 128, 128, 8
        $region36: #{tpu_custom_call.1} parent=27 // pred_fallthru
          _
        // Predicated region
        $region37: #{tpu_custom_call.1} parent=27 // pred_check
          %p345 = pneg %p142
        $region38: #{tpu_custom_call.1} parent=27 // pred_check_branch
          %347 = sbr.rel (%p345) target = $region40
        $region39: #{tpu_custom_call.1} parent=27 // pred_region
          %s348 = sand.u32 %s28, 1
          %s349 = scalar_lea.sflag [#allocation10], %s348
          %s350 = sand.u32 %s132, 1
          %s351 = smul.addr %s350, 16
          %s352 = scalar_lea.vmem [#allocation11], %s351
          %s354 = ssub.s32 256, 256
          %355 = vsyncadd %s349, %s354
          %s356 = smul.addr %s28, 2
          %s357 = smul.addr %s356, 128
          %s358 = scalar_lea.hbm %s4, %s357
          %s359 = sshll.u32 %s352, 4
          %s360 = int_to_ptr.vmem [resolvable:$true] %s359
          %365 = dma.hbm_to_vmem [thread:$0]  %s358, 256, %s360, %s349, 128, 128, 8
        $region40: #{tpu_custom_call.1} parent=27 // pred_fallthru
          _
        // Predicated region
        $region41: #{tpu_custom_call.1} parent=27 // pred_check
          %p366 = pneg %p168
        $region42: #{tpu_custom_call.1} parent=27 // pred_check_branch
          %368 = sbr.rel (%p366) target = $region44
        $region43: #{tpu_custom_call.1} parent=27 // pred_region
          %s369 = sand.u32 %s28, 1
          %s370 = scalar_lea.sflag [#allocation13], %s369
          %s371 = sand.u32 %s158, 1
          %s372 = smul.addr %s371, 16
          %s373 = scalar_lea.vmem [#allocation12], %s372
          %s375 = ssub.s32 256, 256
          %376 = vsyncadd %s370, %s375
          %s377 = smul.addr %s28, 2
          %s378 = smul.addr %s377, 128
          %s379 = scalar_lea.hbm %s5, %s378
          %s380 = sshll.u32 %s373, 4
          %s381 = int_to_ptr.vmem [resolvable:$true] %s380
          %386 = dma.hbm_to_vmem [thread:$0]  %s379, 256, %s381, %s370, 128, 128, 8
        $region44: #{tpu_custom_call.1} parent=27 // pred_fallthru
          _
        // Predicated region
        $region45: #{tpu_custom_call.1} parent=27 // pred_check
          %p387 = pneg %p194
        $region46: #{tpu_custom_call.1} parent=27 // pred_check_branch
          %389 = sbr.rel (%p387) target = $region48
        $region47: #{tpu_custom_call.1} parent=27 // pred_region
          %s390 = sand.u32 %s28, 1
          %s391 = scalar_lea.sflag [#allocation13], %s390
          %s392 = sand.u32 %s184, 1
          %s393 = smul.addr %s392, 16
          %s394 = scalar_lea.vmem [#allocation14], %s393
          %s396 = ssub.s32 256, 256
          %397 = vsyncadd %s391, %s396
          %s398 = smul.addr %s28, 2
          %s399 = smul.addr %s398, 128
          %s400 = scalar_lea.hbm %s6, %s399
          %s401 = sshll.u32 %s394, 4
          %s402 = int_to_ptr.vmem [resolvable:$true] %s401
          %407 = dma.hbm_to_vmem [thread:$0]  %s400, 256, %s402, %s391, 128, 128, 8
        $region48: #{tpu_custom_call.1} parent=27 // pred_fallthru
          _
      $region28: #{tpu_custom_call.1} parent=5 // pred_fallthru
        _
      %p408 = scmp.le.s32.totalorder 1, %s28
      %p409 = scmp.lt.s32.totalorder %s28, 3
      %p410 = pnand %p408, %p409
      %p411 = pneg %p410
      // Predicated region
      $region49: #{tpu_custom_call.1} parent=5 // pred_check
        _
      $region50: #{tpu_custom_call.1} parent=5 // pred_check_branch
        %413 = sbr.rel (%p410) target = $region52
      $region51: #{tpu_custom_call.1} parent=5 // pred_region
        %s414 = ssub.s32 %s28, 1
        %s415 = sand.u32 %s41, 1
        %s416 = scalar_lea.sflag [#allocation4], %s415
        %s417 = sand.u32 %s41, 1
        %s418 = smul.addr %s417, 40
        %s419 = scalar_lea.vmem [#allocation3], %s418
        // Predicated region
        $region53: #{tpu_custom_call.1} parent=51 // pred_check
          %p420 = pneg %p54
        $region54: #{tpu_custom_call.1} parent=51 // pred_check_branch
          %422 = sbr.rel (%p420) target = $region56
        $region55: #{tpu_custom_call.1} parent=51 // pred_region
          %423 = dma.done %s416, 640
        $region56: #{tpu_custom_call.1} parent=51 // pred_fallthru
          _
        // Predicated region
        $region57: #{tpu_custom_call.1} parent=51 // pred_check
          %p424 = pneg %p75
        $region58: #{tpu_custom_call.1} parent=51 // pred_check_branch
          %426 = sbr.rel (%p424) target = $region60
        $region59: #{tpu_custom_call.1} parent=51 // pred_region
          %427 = dma.done [#allocation7], 1152
        $region60: #{tpu_custom_call.1} parent=51 // pred_fallthru
          _
        // Predicated region
        $region61: #{tpu_custom_call.1} parent=51 // pred_check
          %p428 = pneg %p96
        $region62: #{tpu_custom_call.1} parent=51 // pred_check_branch
          %430 = sbr.rel (%p428) target = $region64
        $region63: #{tpu_custom_call.1} parent=51 // pred_region
          %431 = dma.done [#allocation7], 1152
        $region64: #{tpu_custom_call.1} parent=51 // pred_fallthru
          _
        %s432 = sand.u32 %s33, 1
        %s433 = scalar_lea.sflag [#allocation10], %s432
        %s434 = sand.u32 %s109, 1
        %s435 = smul.addr %s434, 16
        %s436 = scalar_lea.vmem [#allocation9], %s435
        // Predicated region
        $region65: #{tpu_custom_call.1} parent=51 // pred_check
          %p437 = pneg %p122
        $region66: #{tpu_custom_call.1} parent=51 // pred_check_branch
          %439 = sbr.rel (%p437) target = $region68
        $region67: #{tpu_custom_call.1} parent=51 // pred_region
          %440 = dma.done %s433, 256
        $region68: #{tpu_custom_call.1} parent=51 // pred_fallthru
          _
        %s441 = sand.u32 %s33, 1
        %s442 = scalar_lea.sflag [#allocation10], %s441
        %s443 = sand.u32 %s135, 1
        %s444 = smul.addr %s443, 16
        %s445 = scalar_lea.vmem [#allocation11], %s444
        // Predicated region
        $region69: #{tpu_custom_call.1} parent=51 // pred_check
          %p446 = pneg %p148
        $region70: #{tpu_custom_call.1} parent=51 // pred_check_branch
          %448 = sbr.rel (%p446) target = $region72
        $region71: #{tpu_custom_call.1} parent=51 // pred_region
          %449 = dma.done %s442, 256
        $region72: #{tpu_custom_call.1} parent=51 // pred_fallthru
          _
        %s450 = sand.u32 %s33, 1
        %s451 = scalar_lea.sflag [#allocation13], %s450
        %s452 = sand.u32 %s161, 1
        %s453 = smul.addr %s452, 16
        %s454 = scalar_lea.vmem [#allocation12], %s453
        // Predicated region
        $region73: #{tpu_custom_call.1} parent=51 // pred_check
          %p455 = pneg %p174
        $region74: #{tpu_custom_call.1} parent=51 // pred_check_branch
          %457 = sbr.rel (%p455) target = $region76
        $region75: #{tpu_custom_call.1} parent=51 // pred_region
          %458 = dma.done %s451, 256
        $region76: #{tpu_custom_call.1} parent=51 // pred_fallthru
          _
        %s459 = sand.u32 %s33, 1
        %s460 = scalar_lea.sflag [#allocation13], %s459
        %s461 = sand.u32 %s187, 1
        %s462 = smul.addr %s461, 16
        %s463 = scalar_lea.vmem [#allocation14], %s462
        // Predicated region
        $region77: #{tpu_custom_call.1} parent=51 // pred_check
          %p464 = pneg %p200
        $region78: #{tpu_custom_call.1} parent=51 // pred_check_branch
          %466 = sbr.rel (%p464) target = $region80
        $region79: #{tpu_custom_call.1} parent=51 // pred_region
          %467 = dma.done %s460, 256
        $region80: #{tpu_custom_call.1} parent=51 // pred_fallthru
          _
        // Predicated region
        $region81: #{tpu_custom_call.1} parent=51 // pred_check
          %p468 = pneg %p221
        $region82: #{tpu_custom_call.1} parent=51 // pred_check_branch
          %470 = sbr.rel (%p468) target = $region84
        $region83: #{tpu_custom_call.1} parent=51 // pred_region
          %471 = dma.done [#allocation16], 48
        $region84: #{tpu_custom_call.1} parent=51 // pred_fallthru
          _
        %s472 = sand.u32 %s41, 1
        %s473 = scalar_lea.sflag [#allocation4], %s472
        %s474 = sand.u32 %s41, 1
        %s475 = smul.addr %s474, 40
        %s476 = scalar_lea.vmem [#allocation3], %s475
        %p477 = pneg %p54
        %p478 = pneg %p51
        %p479 = pneg %p75
        %p480 = pneg %p72
        %p481 = pneg %p96
        %p482 = pneg %p93
        %s483 = sand.u32 %s33, 1
        %s484 = scalar_lea.sflag [#allocation10], %s483
        %s485 = sand.u32 %s109, 1
        %s486 = smul.addr %s485, 16
        %s487 = scalar_lea.vmem [#allocation9], %s486
        %p488 = pneg %p122
        %p489 = pneg %p119
        %s490 = sand.u32 %s33, 1
        %s491 = scalar_lea.sflag [#allocation10], %s490
        %s492 = sand.u32 %s135, 1
        %s493 = smul.addr %s492, 16
        %s494 = scalar_lea.vmem [#allocation11], %s493
        %p495 = pneg %p148
        %p496 = pneg %p145
        %s497 = sand.u32 %s33, 1
        %s498 = scalar_lea.sflag [#allocation13], %s497
        %s499 = sand.u32 %s161, 1
        %s500 = smul.addr %s499, 16
        %s501 = scalar_lea.vmem [#allocation12], %s500
        %p502 = pneg %p174
        %p503 = pneg %p171
        %s504 = sand.u32 %s33, 1
        %s505 = scalar_lea.sflag [#allocation13], %s504
        %s506 = sand.u32 %s187, 1
        %s507 = smul.addr %s506, 16
        %s508 = scalar_lea.vmem [#allocation14], %s507
        %p509 = pneg %p200
        %p510 = pneg %p197
        %p511 = pneg %p221
        %p512 = pneg %p218
        %p513 = pneg %p247
        %p514 = pneg %p244
        %s515 = sand.u32 %s234, 1
        %s516 = scalar_lea.sflag [#allocation5], %s515
        %s517 = sand.u32 %s234, 1
        %s518 = smul.addr %s517, 48
        %s519 = scalar_lea.vmem [#allocation17], %s518
        %v521 = vld [vmem:[%s419] sm:$0xff]
        %v522 = vld [vmem:[%s419 + $0x8] sm:$0xff]
        %v523 = vld [vmem:[%s419 + $0x10] sm:$0xf]
        %v524 = vld [vmem:[%s419 + $0x14] sm:$0xff]
        %v525 = vld [vmem:[%s419 + $0x1c] sm:$0xff]
        %v526 = vld [vmem:[%s419 + $0x24] sm:$0xf]
        %v527 = vld [vmem:[#allocation6] sm:$0xf]
        %v528 = vld [vmem:[#allocation6 + $0x4] sm:$0xf]
        %s529 = scalar_lea.vmem [#allocation6], 8
        %v530 = vld [vmem:[%s529] sm:$0xf]
        %v531 = vld [vmem:[%s529 + $0x4] sm:$0xf]
        %v534 = vunpack.c.l.b16 %v530
        %v535 = vunpack.c.l.b16 %v531
        %v536 = vpack.c.b16 %v535, %v534
        %v541 = vunpack.c.l.b16 %v521
        %v542 = vunpack.c.h.b16 %v521
        %v543 = vunpack.c.l.b16 %v522
        %v544 = vunpack.c.h.b16 %v522
        %v545 = vunpack.c.l.b16 %v524
        %v546 = vunpack.c.h.b16 %v524
        %v547 = vunpack.c.l.b16 %v525
        %v548 = vunpack.c.h.b16 %v525
        %v549 = vpack.c.b16 %v545, %v541
        %v550 = vpack.c.b16 %v546, %v542
        %v551 = vpack.c.b16 %v547, %v543
        %v552 = vpack.c.b16 %v548, %v544
        %553 = vrot.lane.b32.xlu0 %v549, 18
        %v554 = vpop.permute.xlu0 %553
        %555 = vrot.lane.b32.xlu0 %v550, 18
        %v556 = vpop.permute.xlu0 %555
        %557 = vrot.lane.b32.xlu0 %v551, 18
        %v558 = vpop.permute.xlu0 %557
        %559 = vrot.lane.b32.xlu0 %v552, 18
        %v560 = vpop.permute.xlu0 %559
        %vm561 = vcmask 146432
        %v562 = vsel %vm561, %v554, %v556
        %v563 = vsel %vm561, %v556, %v558
        %v564 = vsel %vm561, %v558, %v560
        %vm568 = vcmask 130048
        %v570 = vsel %vm568, %v536, 0
        %572 = vmatprep.subr.bf16.mxu0 %v563
        %573 = vmatpush1.bf16.msra.mxu0 %v562
        %574 = vmatprep.subr.bf16.mxu0 0
        %575 = vmatpush1.bf16.msra.mxu0 0
        %576 = vmatprep.subr.bf16.mxu0 0
        %577 = vmatpush1.bf16.msra.mxu0 0
        %578 = vmatprep.subr.bf16.mxu0 0
        %579 = vmatpush1.bf16.msra.mxu0 0
        %580 = vmatprep.subr.bf16.mxu0 0
        %581 = vmatpush1.bf16.msra.mxu0 0
        %582 = vmatprep.subr.bf16.mxu0 0
        %583 = vmatpush1.bf16.msra.mxu0 0
        %584 = vmatprep.subr.bf16.mxu0 0
        %585 = vmatpush1.bf16.msra.mxu0 0
        %586 = vmatprep.subr.bf16.mxu0 0
        %587 = vmatpush1.bf16.msra.mxu0 0
        %588 = vmatprep.subr.bf16.mxu0 0
        %589 = vmatpush1.bf16.msra.mxu0 0
        %590 = vmatprep.subr.bf16.mxu0 0
        %591 = vmatpush1.bf16.msra.mxu0 0
        %592 = vmatprep.subr.bf16.mxu0 0
        %593 = vmatpush1.bf16.msra.mxu0 0
        %594 = vmatprep.subr.bf16.mxu0 0
        %595 = vmatpush1.bf16.msra.mxu0 0
        %596 = vmatprep.subr.bf16.mxu0 0
        %597 = vmatpush1.bf16.msra.mxu0 0
        %598 = vmatprep.subr.bf16.mxu0 0
        %599 = vmatpush1.bf16.msra.mxu0 0
        %600 = vmatprep.subr.bf16.mxu0 0
        %601 = vmatpush1.bf16.msra.mxu0 0
        %602 = vmatprep.subr.bf16.mxu0 0
        %603 = vmatpush1.bf16.msra.mxu0 0
        %604 = vmatprep.mubr.bf16.mxu0 0
        %605 = vmatmul.mubr.bf16.gmra.mrb[0].mxu0 %v570
        %v606 = vpop.f32.mrb[0].mxu0
        %v607 = vadd.f32 0.0, %v606
        %v608 = vpop.f32.mrb[0].mxu0
        %v609 = vadd.f32 0.0, %v608
        %v610 = vpop.f32.mrb[0].mxu0
        %v611 = vadd.f32 0.0, %v610
        %v612 = vpop.f32.mrb[0].mxu0
        %v613 = vadd.f32 0.0, %v612
        %614 = vdwg.mxu0
        %615 = vmatprep.subr.bf16.mxu0 0
        %616 = vmatpush1.bf16.msra.mxu0 %v564
        %617 = vmatprep.subr.bf16.mxu0 0
        %618 = vmatpush1.bf16.msra.mxu0 0
        %619 = vmatprep.subr.bf16.mxu0 0
        %620 = vmatpush1.bf16.msra.mxu0 0
        %621 = vmatprep.subr.bf16.mxu0 0
        %622 = vmatpush1.bf16.msra.mxu0 0
        %623 = vmatprep.subr.bf16.mxu0 0
        %624 = vmatpush1.bf16.msra.mxu0 0
        %625 = vmatprep.subr.bf16.mxu0 0
        %626 = vmatpush1.bf16.msra.mxu0 0
        %627 = vmatprep.subr.bf16.mxu0 0
        %628 = vmatpush1.bf16.msra.mxu0 0
        %629 = vmatprep.subr.bf16.mxu0 0
        %630 = vmatpush1.bf16.msra.mxu0 0
        %631 = vmatprep.subr.bf16.mxu0 0
        %632 = vmatpush1.bf16.msra.mxu0 0
        %633 = vmatprep.subr.bf16.mxu0 0
        %634 = vmatpush1.bf16.msra.mxu0 0
        %635 = vmatprep.subr.bf16.mxu0 0
        %636 = vmatpush1.bf16.msra.mxu0 0
        %637 = vmatprep.subr.bf16.mxu0 0
        %638 = vmatpush1.bf16.msra.mxu0 0
        %639 = vmatprep.subr.bf16.mxu0 0
        %640 = vmatpush1.bf16.msra.mxu0 0
        %641 = vmatprep.subr.bf16.mxu0 0
        %642 = vmatpush1.bf16.msra.mxu0 0
        %643 = vmatprep.subr.bf16.mxu0 0
        %644 = vmatpush1.bf16.msra.mxu0 0
        %645 = vmatprep.subr.bf16.mxu0 0
        %646 = vmatpush1.bf16.msra.mxu0 0
        %647 = vmatprep.mubr.bf16.mxu0 0
        %648 = vmatmul.mubr.bf16.gmra.mrb[0].mxu0 %v570
        %v649 = vpop.f32.mrb[0].mxu0
        %v650 = vadd.f32 0.0, %v649
        %v651 = vpop.f32.mrb[0].mxu0
        %v652 = vpop.f32.mrb[0].mxu0
        %v653 = vadd.f32 0.0, %v652
        %v654 = vpop.f32.mrb[0].mxu0
        %655 = vdwg.mxu0
        %v658 = vunpack.c.l.b16 %v527
        %v659 = vunpack.c.l.b16 %v528
        %v660 = vpack.c.b16 %v659, %v658
        %661 = vrot.lane.b32.xlu0 %v549, 19
        %v662 = vpop.permute.xlu0 %661
        %663 = vrot.lane.b32.xlu0 %v550, 19
        %v664 = vpop.permute.xlu0 %663
        %665 = vrot.lane.b32.xlu0 %v551, 19
        %v666 = vpop.permute.xlu0 %665
        %667 = vrot.lane.b32.xlu0 %v552, 19
        %v668 = vpop.permute.xlu0 %667
        %vm669 = vcmask 154624
        %v670 = vsel %vm669, %v662, %v664
        %v671 = vsel %vm669, %v664, %v666
        %v672 = vsel %vm669, %v666, %v668
        %v677 = vsel %vm568, %v660, 0
        %679 = vmatprep.subr.bf16.mxu0 %v671
        %680 = vmatpush1.bf16.msra.mxu0 %v670
        %681 = vmatprep.subr.bf16.mxu0 0
        %682 = vmatpush1.bf16.msra.mxu0 0
        %683 = vmatprep.subr.bf16.mxu0 0
        %684 = vmatpush1.bf16.msra.mxu0 0
        %685 = vmatprep.subr.bf16.mxu0 0
        %686 = vmatpush1.bf16.msra.mxu0 0
        %687 = vmatprep.subr.bf16.mxu0 0
        %688 = vmatpush1.bf16.msra.mxu0 0
        %689 = vmatprep.subr.bf16.mxu0 0
        %690 = vmatpush1.bf16.msra.mxu0 0
        %691 = vmatprep.subr.bf16.mxu0 0
        %692 = vmatpush1.bf16.msra.mxu0 0
        %693 = vmatprep.subr.bf16.mxu0 0
        %694 = vmatpush1.bf16.msra.mxu0 0
        %695 = vmatprep.subr.bf16.mxu0 0
        %696 = vmatpush1.bf16.msra.mxu0 0
        %697 = vmatprep.subr.bf16.mxu0 0
        %698 = vmatpush1.bf16.msra.mxu0 0
        %699 = vmatprep.subr.bf16.mxu0 0
        %700 = vmatpush1.bf16.msra.mxu0 0
        %701 = vmatprep.subr.bf16.mxu0 0
        %702 = vmatpush1.bf16.msra.mxu0 0
        %703 = vmatprep.subr.bf16.mxu0 0
        %704 = vmatpush1.bf16.msra.mxu0 0
        %705 = vmatprep.subr.bf16.mxu0 0
        %706 = vmatpush1.bf16.msra.mxu0 0
        %707 = vmatprep.subr.bf16.mxu0 0
        %708 = vmatpush1.bf16.msra.mxu0 0
        %709 = vmatprep.subr.bf16.mxu0 0
        %710 = vmatpush1.bf16.msra.mxu0 0
        %711 = vmatprep.mubr.bf16.mxu0 0
        %712 = vmatmul.mubr.bf16.gmra.mrb[0].mxu0 %v677
        %v713 = vpop.f32.mrb[0].mxu0
        %v714 = vadd.f32 %v607, %v713
        %v715 = vpop.f32.mrb[0].mxu0
        %v716 = vadd.f32 %v609, %v715
        %v717 = vpop.f32.mrb[0].mxu0
        %v718 = vadd.f32 %v611, %v717
        %v719 = vpop.f32.mrb[0].mxu0
        %v720 = vadd.f32 %v613, %v719
        %721 = vdwg.mxu0
        %722 = vmatprep.subr.bf16.mxu0 0
        %723 = vmatpush1.bf16.msra.mxu0 %v672
        %724 = vmatprep.subr.bf16.mxu0 0
        %725 = vmatpush1.bf16.msra.mxu0 0
        %726 = vmatprep.subr.bf16.mxu0 0
        %727 = vmatpush1.bf16.msra.mxu0 0
        %728 = vmatprep.subr.bf16.mxu0 0
        %729 = vmatpush1.bf16.msra.mxu0 0
        %730 = vmatprep.subr.bf16.mxu0 0
        %731 = vmatpush1.bf16.msra.mxu0 0
        %732 = vmatprep.subr.bf16.mxu0 0
        %733 = vmatpush1.bf16.msra.mxu0 0
        %734 = vmatprep.subr.bf16.mxu0 0
        %735 = vmatpush1.bf16.msra.mxu0 0
        %736 = vmatprep.subr.bf16.mxu0 0
        %737 = vmatpush1.bf16.msra.mxu0 0
        %738 = vmatprep.subr.bf16.mxu0 0
        %739 = vmatpush1.bf16.msra.mxu0 0
        %740 = vmatprep.subr.bf16.mxu0 0
        %741 = vmatpush1.bf16.msra.mxu0 0
        %742 = vmatprep.subr.bf16.mxu0 0
        %743 = vmatpush1.bf16.msra.mxu0 0
        %744 = vmatprep.subr.bf16.mxu0 0
        %745 = vmatpush1.bf16.msra.mxu0 0
        %746 = vmatprep.subr.bf16.mxu0 0
        %747 = vmatpush1.bf16.msra.mxu0 0
        %748 = vmatprep.subr.bf16.mxu0 0
        %749 = vmatpush1.bf16.msra.mxu0 0
        %750 = vmatprep.subr.bf16.mxu0 0
        %751 = vmatpush1.bf16.msra.mxu0 0
        %752 = vmatprep.subr.bf16.mxu0 0
        %753 = vmatpush1.bf16.msra.mxu0 0
        %754 = vmatprep.mubr.bf16.mxu0 0
        %755 = vmatmul.mubr.bf16.gmra.mrb[0].mxu0 %v677
        %v756 = vpop.f32.mrb[0].mxu0
        %v757 = vadd.f32 %v650, %v756
        %v758 = vpop.f32.mrb[0].mxu0
        %v759 = vpop.f32.mrb[0].mxu0
        %v760 = vadd.f32 %v653, %v759
        %v761 = vpop.f32.mrb[0].mxu0
        %762 = vdwg.mxu0
        %s763 = scalar_lea.vmem [#allocation6], 16
        %v764 = vld [vmem:[%s763] sm:$0xf]
        %v765 = vld [vmem:[%s763 + $0x4] sm:$0xf]
        %v768 = vunpack.c.l.b16 %v764
        %v769 = vunpack.c.l.b16 %v765
        %v770 = vpack.c.b16 %v769, %v768
        %771 = vrot.lane.b32.xlu0 %v549, 17
        %v772 = vpop.permute.xlu0 %771
        %773 = vrot.lane.b32.xlu0 %v550, 17
        %v774 = vpop.permute.xlu0 %773
        %775 = vrot.lane.b32.xlu0 %v551, 17
        %v776 = vpop.permute.xlu0 %775
        %777 = vrot.lane.b32.xlu0 %v552, 17
        %v778 = vpop.permute.xlu0 %777
        %vm779 = vcmask 138240
        %v780 = vsel %vm779, %v772, %v774
        %v781 = vsel %vm779, %v774, %v776
        %v782 = vsel %vm779, %v776, %v778
        %v787 = vsel %vm568, %v770, 0
        %789 = vmatprep.subr.bf16.mxu0 %v781
        %790 = vmatpush1.bf16.msra.mxu0 %v780
        %791 = vmatprep.subr.bf16.mxu0 0
        %792 = vmatpush1.bf16.msra.mxu0 0
        %793 = vmatprep.subr.bf16.mxu0 0
        %794 = vmatpush1.bf16.msra.mxu0 0
        %795 = vmatprep.subr.bf16.mxu0 0
        %796 = vmatpush1.bf16.msra.mxu0 0
        %797 = vmatprep.subr.bf16.mxu0 0
        %798 = vmatpush1.bf16.msra.mxu0 0
        %799 = vmatprep.subr.bf16.mxu0 0
        %800 = vmatpush1.bf16.msra.mxu0 0
        %801 = vmatprep.subr.bf16.mxu0 0
        %802 = vmatpush1.bf16.msra.mxu0 0
        %803 = vmatprep.subr.bf16.mxu0 0
        %804 = vmatpush1.bf16.msra.mxu0 0
        %805 = vmatprep.subr.bf16.mxu0 0
        %806 = vmatpush1.bf16.msra.mxu0 0
        %807 = vmatprep.subr.bf16.mxu0 0
        %808 = vmatpush1.bf16.msra.mxu0 0
        %809 = vmatprep.subr.bf16.mxu0 0
        %810 = vmatpush1.bf16.msra.mxu0 0
        %811 = vmatprep.subr.bf16.mxu0 0
        %812 = vmatpush1.bf16.msra.mxu0 0
        %813 = vmatprep.subr.bf16.mxu0 0
        %814 = vmatpush1.bf16.msra.mxu0 0
        %815 = vmatprep.subr.bf16.mxu0 0
        %816 = vmatpush1.bf16.msra.mxu0 0
        %817 = vmatprep.subr.bf16.mxu0 0
        %818 = vmatpush1.bf16.msra.mxu0 0
        %819 = vmatprep.subr.bf16.mxu0 0
        %820 = vmatpush1.bf16.msra.mxu0 0
        %821 = vmatprep.mubr.bf16.mxu0 0
        %822 = vmatmul.mubr.bf16.gmra.mrb[0].mxu0 %v787
        %v823 = vpop.f32.mrb[0].mxu0
        %v824 = vadd.f32 0.0, %v823
        %v825 = vpop.f32.mrb[0].mxu0
        %v826 = vadd.f32 0.0, %v825
        %v827 = vpop.f32.mrb[0].mxu0
        %v828 = vadd.f32 0.0, %v827
        %v829 = vpop.f32.mrb[0].mxu0
        %v830 = vadd.f32 0.0, %v829
        %831 = vdwg.mxu0
        %832 = vmatprep.subr.bf16.mxu0 0
        %833 = vmatpush1.bf16.msra.mxu0 %v782
        %834 = vmatprep.subr.bf16.mxu0 0
        %835 = vmatpush1.bf16.msra.mxu0 0
        %836 = vmatprep.subr.bf16.mxu0 0
        %837 = vmatpush1.bf16.msra.mxu0 0
        %838 = vmatprep.subr.bf16.mxu0 0
        %839 = vmatpush1.bf16.msra.mxu0 0
        %840 = vmatprep.subr.bf16.mxu0 0
        %841 = vmatpush1.bf16.msra.mxu0 0
        %842 = vmatprep.subr.bf16.mxu0 0
        %843 = vmatpush1.bf16.msra.mxu0 0
        %844 = vmatprep.subr.bf16.mxu0 0
        %845 = vmatpush1.bf16.msra.mxu0 0
        %846 = vmatprep.subr.bf16.mxu0 0
        %847 = vmatpush1.bf16.msra.mxu0 0
        %848 = vmatprep.subr.bf16.mxu0 0
        %849 = vmatpush1.bf16.msra.mxu0 0
        %850 = vmatprep.subr.bf16.mxu0 0
        %851 = vmatpush1.bf16.msra.mxu0 0
        %852 = vmatprep.subr.bf16.mxu0 0
        %853 = vmatpush1.bf16.msra.mxu0 0
        %854 = vmatprep.subr.bf16.mxu0 0
        %855 = vmatpush1.bf16.msra.mxu0 0
        %856 = vmatprep.subr.bf16.mxu0 0
        %857 = vmatpush1.bf16.msra.mxu0 0
        %858 = vmatprep.subr.bf16.mxu0 0
        %859 = vmatpush1.bf16.msra.mxu0 0
        %860 = vmatprep.subr.bf16.mxu0 0
        %861 = vmatpush1.bf16.msra.mxu0 0
        %862 = vmatprep.subr.bf16.mxu0 0
        %863 = vmatpush1.bf16.msra.mxu0 0
        %864 = vmatprep.mubr.bf16.mxu0 0
        %865 = vmatmul.mubr.bf16.gmra.mrb[0].mxu0 %v787
        %v866 = vpop.f32.mrb[0].mxu0
        %v867 = vadd.f32 0.0, %v866
        %v868 = vpop.f32.mrb[0].mxu0
        %v869 = vpop.f32.mrb[0].mxu0
        %v870 = vadd.f32 0.0, %v869
        %v871 = vpop.f32.mrb[0].mxu0
        %872 = vdwg.mxu0
        %v873 = vadd.f32 %v714, %v824
        %v874 = vadd.f32 %v716, %v826
        %v875 = vadd.f32 %v757, %v867
        %v876 = vadd.f32 %v718, %v828
        %v877 = vadd.f32 %v720, %v830
        %v878 = vadd.f32 %v760, %v870
        %s879 = scalar_lea.vmem [#allocation6], 24
        %v880 = vld [vmem:[%s879] sm:$0xf]
        %v881 = vld [vmem:[%s879 + $0x4] sm:$0xf]
        %v884 = vunpack.c.l.b16 %v880
        %v885 = vunpack.c.l.b16 %v881
        %v886 = vpack.c.b16 %v885, %v884
        %887 = vrot.lane.b32.xlu0 %v549, 1
        %v888 = vpop.permute.xlu0 %887
        %889 = vrot.lane.b32.xlu0 %v550, 1
        %v890 = vpop.permute.xlu0 %889
        %891 = vrot.lane.b32.xlu0 %v551, 1
        %v892 = vpop.permute.xlu0 %891
        %893 = vrot.lane.b32.xlu0 %v552, 1
        %v894 = vpop.permute.xlu0 %893
        %vm895 = vcmask 7168
        %v896 = vsel %vm895, %v888, %v890
        %v897 = vsel %vm895, %v890, %v892
        %v898 = vsel %vm895, %v892, %v894
        %v903 = vsel %vm568, %v886, 0
        %905 = vmatprep.subr.bf16.mxu0 %v897
        %906 = vmatpush1.bf16.msra.mxu0 %v896
        %907 = vmatprep.subr.bf16.mxu0 0
        %908 = vmatpush1.bf16.msra.mxu0 0
        %909 = vmatprep.subr.bf16.mxu0 0
        %910 = vmatpush1.bf16.msra.mxu0 0
        %911 = vmatprep.subr.bf16.mxu0 0
        %912 = vmatpush1.bf16.msra.mxu0 0
        %913 = vmatprep.subr.bf16.mxu0 0
        %914 = vmatpush1.bf16.msra.mxu0 0
        %915 = vmatprep.subr.bf16.mxu0 0
        %916 = vmatpush1.bf16.msra.mxu0 0
        %917 = vmatprep.subr.bf16.mxu0 0
        %918 = vmatpush1.bf16.msra.mxu0 0
        %919 = vmatprep.subr.bf16.mxu0 0
        %920 = vmatpush1.bf16.msra.mxu0 0
        %921 = vmatprep.subr.bf16.mxu0 0
        %922 = vmatpush1.bf16.msra.mxu0 0
        %923 = vmatprep.subr.bf16.mxu0 0
        %924 = vmatpush1.bf16.msra.mxu0 0
        %925 = vmatprep.subr.bf16.mxu0 0
        %926 = vmatpush1.bf16.msra.mxu0 0
        %927 = vmatprep.subr.bf16.mxu0 0
        %928 = vmatpush1.bf16.msra.mxu0 0
        %929 = vmatprep.subr.bf16.mxu0 0
        %930 = vmatpush1.bf16.msra.mxu0 0
        %931 = vmatprep.subr.bf16.mxu0 0
        %932 = vmatpush1.bf16.msra.mxu0 0
        %933 = vmatprep.subr.bf16.mxu0 0
        %934 = vmatpush1.bf16.msra.mxu0 0
        %935 = vmatprep.subr.bf16.mxu0 0
        %936 = vmatpush1.bf16.msra.mxu0 0
        %937 = vmatprep.mubr.bf16.mxu0 0
        %938 = vmatmul.mubr.bf16.gmra.mrb[0].mxu0 %v903
        %v939 = vpop.f32.mrb[0].mxu0
        %v940 = vadd.f32 0.0, %v939
        %v941 = vpop.f32.mrb[0].mxu0
        %v942 = vadd.f32 0.0, %v941
        %v943 = vpop.f32.mrb[0].mxu0
        %v944 = vadd.f32 0.0, %v943
        %v945 = vpop.f32.mrb[0].mxu0
        %v946 = vadd.f32 0.0, %v945
        %947 = vdwg.mxu0
        %948 = vmatprep.subr.bf16.mxu0 0
        %949 = vmatpush1.bf16.msra.mxu0 %v898
        %950 = vmatprep.subr.bf16.mxu0 0
        %951 = vmatpush1.bf16.msra.mxu0 0
        %952 = vmatprep.subr.bf16.mxu0 0
        %953 = vmatpush1.bf16.msra.mxu0 0
        %954 = vmatprep.subr.bf16.mxu0 0
        %955 = vmatpush1.bf16.msra.mxu0 0
        %956 = vmatprep.subr.bf16.mxu0 0
        %957 = vmatpush1.bf16.msra.mxu0 0
        %958 = vmatprep.subr.bf16.mxu0 0
        %959 = vmatpush1.bf16.msra.mxu0 0
        %960 = vmatprep.subr.bf16.mxu0 0
        %961 = vmatpush1.bf16.msra.mxu0 0
        %962 = vmatprep.subr.bf16.mxu0 0
        %963 = vmatpush1.bf16.msra.mxu0 0
        %964 = vmatprep.subr.bf16.mxu0 0
        %965 = vmatpush1.bf16.msra.mxu0 0
        %966 = vmatprep.subr.bf16.mxu0 0
        %967 = vmatpush1.bf16.msra.mxu0 0
        %968 = vmatprep.subr.bf16.mxu0 0
        %969 = vmatpush1.bf16.msra.mxu0 0
        %970 = vmatprep.subr.bf16.mxu0 0
        %971 = vmatpush1.bf16.msra.mxu0 0
        %972 = vmatprep.subr.bf16.mxu0 0
        %973 = vmatpush1.bf16.msra.mxu0 0
        %974 = vmatprep.subr.bf16.mxu0 0
        %975 = vmatpush1.bf16.msra.mxu0 0
        %976 = vmatprep.subr.bf16.mxu0 0
        %977 = vmatpush1.bf16.msra.mxu0 0
        %978 = vmatprep.subr.bf16.mxu0 0
        %979 = vmatpush1.bf16.msra.mxu0 0
        %980 = vmatprep.mubr.bf16.mxu0 0
        %981 = vmatmul.mubr.bf16.gmra.mrb[0].mxu0 %v903
        %v982 = vpop.f32.mrb[0].mxu0
        %v983 = vadd.f32 0.0, %v982
        %v984 = vpop.f32.mrb[0].mxu0
        %v985 = vpop.f32.mrb[0].mxu0
        %v986 = vadd.f32 0.0, %v985
        %v987 = vpop.f32.mrb[0].mxu0
        %988 = vdwg.mxu0
        %v989 = vadd.f32 %v873, %v940
        %v990 = vadd.f32 %v874, %v942
        %v991 = vadd.f32 %v875, %v983
        %v992 = vadd.f32 %v876, %v944
        %v993 = vadd.f32 %v877, %v946
        %v994 = vadd.f32 %v878, %v986
        %s995 = scalar_lea.vmem [#allocation6], 32
        %v996 = vld [vmem:[%s995] sm:$0xf]
        %v997 = vld [vmem:[%s995 + $0x4] sm:$0xf]
        %v1000 = vunpack.c.l.b16 %v996
        %v1001 = vunpack.c.l.b16 %v997
        %v1002 = vpack.c.b16 %v1001, %v1000
        %v1007 = vsel %vm568, %v1002, 0
        %1009 = vmatprep.subr.bf16.mxu0 %v551
        %1010 = vmatpush1.bf16.msra.mxu0 %v550
        %1011 = vmatprep.subr.bf16.mxu0 0
        %1012 = vmatpush1.bf16.msra.mxu0 0
        %1013 = vmatprep.subr.bf16.mxu0 0
        %1014 = vmatpush1.bf16.msra.mxu0 0
        %1015 = vmatprep.subr.bf16.mxu0 0
        %1016 = vmatpush1.bf16.msra.mxu0 0
        %1017 = vmatprep.subr.bf16.mxu0 0
        %1018 = vmatpush1.bf16.msra.mxu0 0
        %1019 = vmatprep.subr.bf16.mxu0 0
        %1020 = vmatpush1.bf16.msra.mxu0 0
        %1021 = vmatprep.subr.bf16.mxu0 0
        %1022 = vmatpush1.bf16.msra.mxu0 0
        %1023 = vmatprep.subr.bf16.mxu0 0
        %1024 = vmatpush1.bf16.msra.mxu0 0
        %1025 = vmatprep.subr.bf16.mxu0 0
        %1026 = vmatpush1.bf16.msra.mxu0 0
        %1027 = vmatprep.subr.bf16.mxu0 0
        %1028 = vmatpush1.bf16.msra.mxu0 0
        %1029 = vmatprep.subr.bf16.mxu0 0
        %1030 = vmatpush1.bf16.msra.mxu0 0
        %1031 = vmatprep.subr.bf16.mxu0 0
        %1032 = vmatpush1.bf16.msra.mxu0 0
        %1033 = vmatprep.subr.bf16.mxu0 0
        %1034 = vmatpush1.bf16.msra.mxu0 0
        %1035 = vmatprep.subr.bf16.mxu0 0
        %1036 = vmatpush1.bf16.msra.mxu0 0
        %1037 = vmatprep.subr.bf16.mxu0 0
        %1038 = vmatpush1.bf16.msra.mxu0 0
        %1039 = vmatprep.subr.bf16.mxu0 0
        %1040 = vmatpush1.bf16.msra.mxu0 0
        %1041 = vmatprep.mubr.bf16.mxu0 0
        %1042 = vmatmul.mubr.bf16.gmra.mrb[0].mxu0 %v1007
        %v1043 = vpop.f32.mrb[0].mxu0
        %v1044 = vadd.f32 0.0, %v1043
        %v1045 = vpop.f32.mrb[0].mxu0
        %v1046 = vadd.f32 0.0, %v1045
        %v1047 = vpop.f32.mrb[0].mxu0
        %v1048 = vadd.f32 0.0, %v1047
        %v1049 = vpop.f32.mrb[0].mxu0
        %v1050 = vadd.f32 0.0, %v1049
        %1051 = vdwg.mxu0
        %1052 = vmatprep.subr.bf16.mxu0 0
        %1053 = vmatpush1.bf16.msra.mxu0 %v552
        %1054 = vmatprep.subr.bf16.mxu0 0
        %1055 = vmatpush1.bf16.msra.mxu0 0
        %1056 = vmatprep.subr.bf16.mxu0 0
        %1057 = vmatpush1.bf16.msra.mxu0 0
        %1058 = vmatprep.subr.bf16.mxu0 0
        %1059 = vmatpush1.bf16.msra.mxu0 0
        %1060 = vmatprep.subr.bf16.mxu0 0
        %1061 = vmatpush1.bf16.msra.mxu0 0
        %1062 = vmatprep.subr.bf16.mxu0 0
        %1063 = vmatpush1.bf16.msra.mxu0 0
        %1064 = vmatprep.subr.bf16.mxu0 0
        %1065 = vmatpush1.bf16.msra.mxu0 0
        %1066 = vmatprep.subr.bf16.mxu0 0
        %1067 = vmatpush1.bf16.msra.mxu0 0
        %1068 = vmatprep.subr.bf16.mxu0 0
        %1069 = vmatpush1.bf16.msra.mxu0 0
        %1070 = vmatprep.subr.bf16.mxu0 0
        %1071 = vmatpush1.bf16.msra.mxu0 0
        %1072 = vmatprep.subr.bf16.mxu0 0
        %1073 = vmatpush1.bf16.msra.mxu0 0
        %1074 = vmatprep.subr.bf16.mxu0 0
        %1075 = vmatpush1.bf16.msra.mxu0 0
        %1076 = vmatprep.subr.bf16.mxu0 0
        %1077 = vmatpush1.bf16.msra.mxu0 0
        %1078 = vmatprep.subr.bf16.mxu0 0
        %1079 = vmatpush1.bf16.msra.mxu0 0
        %1080 = vmatprep.subr.bf16.mxu0 0
        %1081 = vmatpush1.bf16.msra.mxu0 0
        %1082 = vmatprep.subr.bf16.mxu0 0
        %1083 = vmatpush1.bf16.msra.mxu0 0
        %1084 = vmatprep.mubr.bf16.mxu0 0
        %1085 = vmatmul.mubr.bf16.gmra.mrb[0].mxu0 %v1007
        %v1086 = vpop.f32.mrb[0].mxu0
        %v1087 = vadd.f32 0.0, %v1086
        %v1088 = vpop.f32.mrb[0].mxu0
        %v1089 = vpop.f32.mrb[0].mxu0
        %v1090 = vadd.f32 0.0, %v1089
        %v1091 = vpop.f32.mrb[0].mxu0
        %1092 = vdwg.mxu0
        %v1093 = vadd.f32 %v989, %v1044
        %v1094 = vadd.f32 %v990, %v1046
        %v1095 = vadd.f32 %v991, %v1087
        %v1096 = vadd.f32 %v992, %v1048
        %v1097 = vadd.f32 %v993, %v1050
        %v1098 = vadd.f32 %v994, %v1090
        %s1099 = scalar_lea.vmem [#allocation6], 40
        %v1100 = vld [vmem:[%s1099] sm:$0xf]
        %v1101 = vld [vmem:[%s1099 + $0x4] sm:$0xf]
        %v1104 = vunpack.c.l.b16 %v1100
        %v1105 = vunpack.c.l.b16 %v1101
        %v1106 = vpack.c.b16 %v1105, %v1104
        %v1109 = vunpack.c.l.b16 %v523
        %v1110 = vunpack.c.l.b16 %v526
        %v1111 = vpack.c.b16 %v1110, %v1109
        %1112 = vrot.lane.b32.xlu0 %v550, 127
        %v1113 = vpop.permute.xlu0 %1112
        %1114 = vrot.lane.b32.xlu0 %v551, 127
        %v1115 = vpop.permute.xlu0 %1114
        %1116 = vrot.lane.b32.xlu0 %v552, 127
        %v1117 = vpop.permute.xlu0 %1116
        %1118 = vrot.lane.b32.xlu0 %v1111, 127
        %v1119 = vpop.permute.xlu0 %1118
        %vm1120 = vcmask 1039360
        %v1121 = vsel %vm1120, %v1113, %v1115
        %v1122 = vsel %vm1120, %v1115, %v1117
        %v1123 = vsel %vm1120, %v1117, %v1119
        %v1128 = vsel %vm568, %v1106, 0
        %1130 = vmatprep.subr.bf16.mxu0 %v1122
        %1131 = vmatpush1.bf16.msra.mxu0 %v1121
        %1132 = vmatprep.subr.bf16.mxu0 0
        %1133 = vmatpush1.bf16.msra.mxu0 0
        %1134 = vmatprep.subr.bf16.mxu0 0
        %1135 = vmatpush1.bf16.msra.mxu0 0
        %1136 = vmatprep.subr.bf16.mxu0 0
        %1137 = vmatpush1.bf16.msra.mxu0 0
        %1138 = vmatprep.subr.bf16.mxu0 0
        %1139 = vmatpush1.bf16.msra.mxu0 0
        %1140 = vmatprep.subr.bf16.mxu0 0
        %1141 = vmatpush1.bf16.msra.mxu0 0
        %1142 = vmatprep.subr.bf16.mxu0 0
        %1143 = vmatpush1.bf16.msra.mxu0 0
        %1144 = vmatprep.subr.bf16.mxu0 0
        %1145 = vmatpush1.bf16.msra.mxu0 0
        %1146 = vmatprep.subr.bf16.mxu0 0
        %1147 = vmatpush1.bf16.msra.mxu0 0
        %1148 = vmatprep.subr.bf16.mxu0 0
        %1149 = vmatpush1.bf16.msra.mxu0 0
        %1150 = vmatprep.subr.bf16.mxu0 0
        %1151 = vmatpush1.bf16.msra.mxu0 0
        %1152 = vmatprep.subr.bf16.mxu0 0
        %1153 = vmatpush1.bf16.msra.mxu0 0
        %1154 = vmatprep.subr.bf16.mxu0 0
        %1155 = vmatpush1.bf16.msra.mxu0 0
        %1156 = vmatprep.subr.bf16.mxu0 0
        %1157 = vmatpush1.bf16.msra.mxu0 0
        %1158 = vmatprep.subr.bf16.mxu0 0
        %1159 = vmatpush1.bf16.msra.mxu0 0
        %1160 = vmatprep.subr.bf16.mxu0 0
        %1161 = vmatpush1.bf16.msra.mxu0 0
        %1162 = vmatprep.mubr.bf16.mxu0 0
        %1163 = vmatmul.mubr.bf16.gmra.mrb[0].mxu0 %v1128
        %v1164 = vpop.f32.mrb[0].mxu0
        %v1165 = vadd.f32 0.0, %v1164
        %v1166 = vpop.f32.mrb[0].mxu0
        %v1167 = vadd.f32 0.0, %v1166
        %v1168 = vpop.f32.mrb[0].mxu0
        %v1169 = vadd.f32 0.0, %v1168
        %v1170 = vpop.f32.mrb[0].mxu0
        %v1171 = vadd.f32 0.0, %v1170
        %1172 = vdwg.mxu0
        %1173 = vmatprep.subr.bf16.mxu0 0
        %1174 = vmatpush1.bf16.msra.mxu0 %v1123
        %1175 = vmatprep.subr.bf16.mxu0 0
        %1176 = vmatpush1.bf16.msra.mxu0 0
        %1177 = vmatprep.subr.bf16.mxu0 0
        %1178 = vmatpush1.bf16.msra.mxu0 0
        %1179 = vmatprep.subr.bf16.mxu0 0
        %1180 = vmatpush1.bf16.msra.mxu0 0
        %1181 = vmatprep.subr.bf16.mxu0 0
        %1182 = vmatpush1.bf16.msra.mxu0 0
        %1183 = vmatprep.subr.bf16.mxu0 0
        %1184 = vmatpush1.bf16.msra.mxu0 0
        %1185 = vmatprep.subr.bf16.mxu0 0
        %1186 = vmatpush1.bf16.msra.mxu0 0
        %1187 = vmatprep.subr.bf16.mxu0 0
        %1188 = vmatpush1.bf16.msra.mxu0 0
        %1189 = vmatprep.subr.bf16.mxu0 0
        %1190 = vmatpush1.bf16.msra.mxu0 0
        %1191 = vmatprep.subr.bf16.mxu0 0
        %1192 = vmatpush1.bf16.msra.mxu0 0
        %1193 = vmatprep.subr.bf16.mxu0 0
        %1194 = vmatpush1.bf16.msra.mxu0 0
        %1195 = vmatprep.subr.bf16.mxu0 0
        %1196 = vmatpush1.bf16.msra.mxu0 0
        %1197 = vmatprep.subr.bf16.mxu0 0
        %1198 = vmatpush1.bf16.msra.mxu0 0
        %1199 = vmatprep.subr.bf16.mxu0 0
        %1200 = vmatpush1.bf16.msra.mxu0 0
        %1201 = vmatprep.subr.bf16.mxu0 0
        %1202 = vmatpush1.bf16.msra.mxu0 0
        %1203 = vmatprep.subr.bf16.mxu0 0
        %1204 = vmatpush1.bf16.msra.mxu0 0
        %1205 = vmatprep.mubr.bf16.mxu0 0
        %1206 = vmatmul.mubr.bf16.gmra.mrb[0].mxu0 %v1128
        %v1207 = vpop.f32.mrb[0].mxu0
        %v1208 = vadd.f32 0.0, %v1207
        %v1209 = vpop.f32.mrb[0].mxu0
        %v1210 = vpop.f32.mrb[0].mxu0
        %v1211 = vadd.f32 0.0, %v1210
        %v1212 = vpop.f32.mrb[0].mxu0
        %1213 = vdwg.mxu0
        %v1214 = vadd.f32 %v1093, %v1165
        %v1215 = vadd.f32 %v1094, %v1167
        %v1216 = vadd.f32 %v1095, %v1208
        %v1217 = vadd.f32 %v1096, %v1169
        %v1218 = vadd.f32 %v1097, %v1171
        %v1219 = vadd.f32 %v1098, %v1211
        %s1220 = scalar_lea.vmem [#allocation6], 48
        %v1221 = vld [vmem:[%s1220] sm:$0xf]
        %v1222 = vld [vmem:[%s1220 + $0x4] sm:$0xf]
        %v1225 = vunpack.c.l.b16 %v1221
        %v1226 = vunpack.c.l.b16 %v1222
        %v1227 = vpack.c.b16 %v1226, %v1225
        %1228 = vrot.lane.b32.xlu0 %v550, 111
        %v1229 = vpop.permute.xlu0 %1228
        %1230 = vrot.lane.b32.xlu0 %v551, 111
        %v1231 = vpop.permute.xlu0 %1230
        %1232 = vrot.lane.b32.xlu0 %v552, 111
        %v1233 = vpop.permute.xlu0 %1232
        %1234 = vrot.lane.b32.xlu0 %v1111, 111
        %v1235 = vpop.permute.xlu0 %1234
        %vm1236 = vcmask 908288
        %v1237 = vsel %vm1236, %v1229, %v1231
        %v1238 = vsel %vm1236, %v1231, %v1233
        %v1239 = vsel %vm1236, %v1233, %v1235
        %v1244 = vsel %vm568, %v1227, 0
        %1246 = vmatprep.subr.bf16.mxu0 %v1238
        %1247 = vmatpush1.bf16.msra.mxu0 %v1237
        %1248 = vmatprep.subr.bf16.mxu0 0
        %1249 = vmatpush1.bf16.msra.mxu0 0
        %1250 = vmatprep.subr.bf16.mxu0 0
        %1251 = vmatpush1.bf16.msra.mxu0 0
        %1252 = vmatprep.subr.bf16.mxu0 0
        %1253 = vmatpush1.bf16.msra.mxu0 0
        %1254 = vmatprep.subr.bf16.mxu0 0
        %1255 = vmatpush1.bf16.msra.mxu0 0
        %1256 = vmatprep.subr.bf16.mxu0 0
        %1257 = vmatpush1.bf16.msra.mxu0 0
        %1258 = vmatprep.subr.bf16.mxu0 0
        %1259 = vmatpush1.bf16.msra.mxu0 0
        %1260 = vmatprep.subr.bf16.mxu0 0
        %1261 = vmatpush1.bf16.msra.mxu0 0
        %1262 = vmatprep.subr.bf16.mxu0 0
        %1263 = vmatpush1.bf16.msra.mxu0 0
        %1264 = vmatprep.subr.bf16.mxu0 0
        %1265 = vmatpush1.bf16.msra.mxu0 0
        %1266 = vmatprep.subr.bf16.mxu0 0
        %1267 = vmatpush1.bf16.msra.mxu0 0
        %1268 = vmatprep.subr.bf16.mxu0 0
        %1269 = vmatpush1.bf16.msra.mxu0 0
        %1270 = vmatprep.subr.bf16.mxu0 0
        %1271 = vmatpush1.bf16.msra.mxu0 0
        %1272 = vmatprep.subr.bf16.mxu0 0
        %1273 = vmatpush1.bf16.msra.mxu0 0
        %1274 = vmatprep.subr.bf16.mxu0 0
        %1275 = vmatpush1.bf16.msra.mxu0 0
        %1276 = vmatprep.subr.bf16.mxu0 0
        %1277 = vmatpush1.bf16.msra.mxu0 0
        %1278 = vmatprep.mubr.bf16.mxu0 0
        %1279 = vmatmul.mubr.bf16.gmra.mrb[0].mxu0 %v1244
        %v1280 = vpop.f32.mrb[0].mxu0
        %v1281 = vadd.f32 0.0, %v1280
        %v1282 = vpop.f32.mrb[0].mxu0
        %v1283 = vadd.f32 0.0, %v1282
        %v1284 = vpop.f32.mrb[0].mxu0
        %v1285 = vadd.f32 0.0, %v1284
        %v1286 = vpop.f32.mrb[0].mxu0
        %v1287 = vadd.f32 0.0, %v1286
        %1288 = vdwg.mxu0
        %1289 = vmatprep.subr.bf16.mxu0 0
        %1290 = vmatpush1.bf16.msra.mxu0 %v1239
        %1291 = vmatprep.subr.bf16.mxu0 0
        %1292 = vmatpush1.bf16.msra.mxu0 0
        %1293 = vmatprep.subr.bf16.mxu0 0
        %1294 = vmatpush1.bf16.msra.mxu0 0
        %1295 = vmatprep.subr.bf16.mxu0 0
        %1296 = vmatpush1.bf16.msra.mxu0 0
        %1297 = vmatprep.subr.bf16.mxu0 0
        %1298 = vmatpush1.bf16.msra.mxu0 0
        %1299 = vmatprep.subr.bf16.mxu0 0
        %1300 = vmatpush1.bf16.msra.mxu0 0
        %1301 = vmatprep.subr.bf16.mxu0 0
        %1302 = vmatpush1.bf16.msra.mxu0 0
        %1303 = vmatprep.subr.bf16.mxu0 0
        %1304 = vmatpush1.bf16.msra.mxu0 0
        %1305 = vmatprep.subr.bf16.mxu0 0
        %1306 = vmatpush1.bf16.msra.mxu0 0
        %1307 = vmatprep.subr.bf16.mxu0 0
        %1308 = vmatpush1.bf16.msra.mxu0 0
        %1309 = vmatprep.subr.bf16.mxu0 0
        %1310 = vmatpush1.bf16.msra.mxu0 0
        %1311 = vmatprep.subr.bf16.mxu0 0
        %1312 = vmatpush1.bf16.msra.mxu0 0
        %1313 = vmatprep.subr.bf16.mxu0 0
        %1314 = vmatpush1.bf16.msra.mxu0 0
        %1315 = vmatprep.subr.bf16.mxu0 0
        %1316 = vmatpush1.bf16.msra.mxu0 0
        %1317 = vmatprep.subr.bf16.mxu0 0
        %1318 = vmatpush1.bf16.msra.mxu0 0
        %1319 = vmatprep.subr.bf16.mxu0 0
        %1320 = vmatpush1.bf16.msra.mxu0 0
        %1321 = vmatprep.mubr.bf16.mxu0 0
        %1322 = vmatmul.mubr.bf16.gmra.mrb[0].mxu0 %v1244
        %v1323 = vpop.f32.mrb[0].mxu0
        %v1324 = vadd.f32 0.0, %v1323
        %v1325 = vpop.f32.mrb[0].mxu0
        %v1326 = vpop.f32.mrb[0].mxu0
        %v1327 = vadd.f32 0.0, %v1326
        %v1328 = vpop.f32.mrb[0].mxu0
        %1329 = vdwg.mxu0
        %v1330 = vadd.f32 %v1214, %v1281
        %v1331 = vadd.f32 %v1215, %v1283
        %v1332 = vadd.f32 %v1216, %v1324
        %v1333 = vadd.f32 %v1217, %v1285
        %v1334 = vadd.f32 %v1218, %v1287
        %v1335 = vadd.f32 %v1219, %v1327
        %s1336 = scalar_lea.vmem [#allocation6], 56
        %v1337 = vld [vmem:[%s1336] sm:$0xf]
        %v1338 = vld [vmem:[%s1336 + $0x4] sm:$0xf]
        %v1341 = vunpack.c.l.b16 %v1337
        %v1342 = vunpack.c.l.b16 %v1338
        %v1343 = vpack.c.b16 %v1342, %v1341
        %1344 = vrot.lane.b32.xlu0 %v550, 110
        %v1345 = vpop.permute.xlu0 %1344
        %1346 = vrot.lane.b32.xlu0 %v551, 110
        %v1347 = vpop.permute.xlu0 %1346
        %1348 = vrot.lane.b32.xlu0 %v552, 110
        %v1349 = vpop.permute.xlu0 %1348
        %1350 = vrot.lane.b32.xlu0 %v1111, 110
        %v1351 = vpop.permute.xlu0 %1350
        %vm1352 = vcmask 900096
        %v1353 = vsel %vm1352, %v1345, %v1347
        %v1354 = vsel %vm1352, %v1347, %v1349
        %v1355 = vsel %vm1352, %v1349, %v1351
        %v1360 = vsel %vm568, %v1343, 0
        %1362 = vmatprep.subr.bf16.mxu0 %v1354
        %1363 = vmatpush1.bf16.msra.mxu0 %v1353
        %1364 = vmatprep.subr.bf16.mxu0 0
        %1365 = vmatpush1.bf16.msra.mxu0 0
        %1366 = vmatprep.subr.bf16.mxu0 0
        %1367 = vmatpush1.bf16.msra.mxu0 0
        %1368 = vmatprep.subr.bf16.mxu0 0
        %1369 = vmatpush1.bf16.msra.mxu0 0
        %1370 = vmatprep.subr.bf16.mxu0 0
        %1371 = vmatpush1.bf16.msra.mxu0 0
        %1372 = vmatprep.subr.bf16.mxu0 0
        %1373 = vmatpush1.bf16.msra.mxu0 0
        %1374 = vmatprep.subr.bf16.mxu0 0
        %1375 = vmatpush1.bf16.msra.mxu0 0
        %1376 = vmatprep.subr.bf16.mxu0 0
        %1377 = vmatpush1.bf16.msra.mxu0 0
        %1378 = vmatprep.subr.bf16.mxu0 0
        %1379 = vmatpush1.bf16.msra.mxu0 0
        %1380 = vmatprep.subr.bf16.mxu0 0
        %1381 = vmatpush1.bf16.msra.mxu0 0
        %1382 = vmatprep.subr.bf16.mxu0 0
        %1383 = vmatpush1.bf16.msra.mxu0 0
        %1384 = vmatprep.subr.bf16.mxu0 0
        %1385 = vmatpush1.bf16.msra.mxu0 0
        %1386 = vmatprep.subr.bf16.mxu0 0
        %1387 = vmatpush1.bf16.msra.mxu0 0
        %1388 = vmatprep.subr.bf16.mxu0 0
        %1389 = vmatpush1.bf16.msra.mxu0 0
        %1390 = vmatprep.subr.bf16.mxu0 0
        %1391 = vmatpush1.bf16.msra.mxu0 0
        %1392 = vmatprep.subr.bf16.mxu0 0
        %1393 = vmatpush1.bf16.msra.mxu0 0
        %1394 = vmatprep.mubr.bf16.mxu0 0
        %1395 = vmatmul.mubr.bf16.gmra.mrb[0].mxu0 %v1360
        %v1396 = vpop.f32.mrb[0].mxu0
        %v1397 = vadd.f32 0.0, %v1396
        %v1398 = vpop.f32.mrb[0].mxu0
        %v1399 = vadd.f32 0.0, %v1398
        %v1400 = vpop.f32.mrb[0].mxu0
        %v1401 = vadd.f32 0.0, %v1400
        %v1402 = vpop.f32.mrb[0].mxu0
        %v1403 = vadd.f32 0.0, %v1402
        %1404 = vdwg.mxu0
        %1405 = vmatprep.subr.bf16.mxu0 0
        %1406 = vmatpush1.bf16.msra.mxu0 %v1355
        %1407 = vmatprep.subr.bf16.mxu0 0
        %1408 = vmatpush1.bf16.msra.mxu0 0
        %1409 = vmatprep.subr.bf16.mxu0 0
        %1410 = vmatpush1.bf16.msra.mxu0 0
        %1411 = vmatprep.subr.bf16.mxu0 0
        %1412 = vmatpush1.bf16.msra.mxu0 0
        %1413 = vmatprep.subr.bf16.mxu0 0
        %1414 = vmatpush1.bf16.msra.mxu0 0
        %1415 = vmatprep.subr.bf16.mxu0 0
        %1416 = vmatpush1.bf16.msra.mxu0 0
        %1417 = vmatprep.subr.bf16.mxu0 0
        %1418 = vmatpush1.bf16.msra.mxu0 0
        %1419 = vmatprep.subr.bf16.mxu0 0
        %1420 = vmatpush1.bf16.msra.mxu0 0
        %1421 = vmatprep.subr.bf16.mxu0 0
        %1422 = vmatpush1.bf16.msra.mxu0 0
        %1423 = vmatprep.subr.bf16.mxu0 0
        %1424 = vmatpush1.bf16.msra.mxu0 0
        %1425 = vmatprep.subr.bf16.mxu0 0
        %1426 = vmatpush1.bf16.msra.mxu0 0
        %1427 = vmatprep.subr.bf16.mxu0 0
        %1428 = vmatpush1.bf16.msra.mxu0 0
        %1429 = vmatprep.subr.bf16.mxu0 0
        %1430 = vmatpush1.bf16.msra.mxu0 0
        %1431 = vmatprep.subr.bf16.mxu0 0
        %1432 = vmatpush1.bf16.msra.mxu0 0
        %1433 = vmatprep.subr.bf16.mxu0 0
        %1434 = vmatpush1.bf16.msra.mxu0 0
        %1435 = vmatprep.subr.bf16.mxu0 0
        %1436 = vmatpush1.bf16.msra.mxu0 0
        %1437 = vmatprep.mubr.bf16.mxu0 0
        %1438 = vmatmul.mubr.bf16.gmra.mrb[0].mxu0 %v1360
        %v1439 = vpop.f32.mrb[0].mxu0
        %v1440 = vadd.f32 0.0, %v1439
        %v1441 = vpop.f32.mrb[0].mxu0
        %v1442 = vpop.f32.mrb[0].mxu0
        %v1443 = vadd.f32 0.0, %v1442
        %v1444 = vpop.f32.mrb[0].mxu0
        %1445 = vdwg.mxu0
        %v1446 = vadd.f32 %v1330, %v1397
        %v1447 = vadd.f32 %v1331, %v1399
        %v1448 = vadd.f32 %v1332, %v1440
        %v1449 = vadd.f32 %v1333, %v1401
        %v1450 = vadd.f32 %v1334, %v1403
        %v1451 = vadd.f32 %v1335, %v1443
        %s1452 = scalar_lea.vmem [#allocation6], 64
        %v1453 = vld [vmem:[%s1452] sm:$0xf]
        %v1454 = vld [vmem:[%s1452 + $0x4] sm:$0xf]
        %v1457 = vunpack.c.l.b16 %v1453
        %v1458 = vunpack.c.l.b16 %v1454
        %v1459 = vpack.c.b16 %v1458, %v1457
        %1460 = vrot.lane.b32.xlu0 %v550, 109
        %v1461 = vpop.permute.xlu0 %1460
        %1462 = vrot.lane.b32.xlu0 %v551, 109
        %v1463 = vpop.permute.xlu0 %1462
        %1464 = vrot.lane.b32.xlu0 %v552, 109
        %v1465 = vpop.permute.xlu0 %1464
        %1466 = vrot.lane.b32.xlu0 %v1111, 109
        %v1467 = vpop.permute.xlu0 %1466
        %vm1468 = vcmask 891904
        %v1469 = vsel %vm1468, %v1461, %v1463
        %v1470 = vsel %vm1468, %v1463, %v1465
        %v1471 = vsel %vm1468, %v1465, %v1467
        %v1476 = vsel %vm568, %v1459, 0
        %1478 = vmatprep.subr.bf16.mxu0 %v1470
        %1479 = vmatpush1.bf16.msra.mxu0 %v1469
        %1480 = vmatprep.subr.bf16.mxu0 0
        %1481 = vmatpush1.bf16.msra.mxu0 0
        %1482 = vmatprep.subr.bf16.mxu0 0
        %1483 = vmatpush1.bf16.msra.mxu0 0
        %1484 = vmatprep.subr.bf16.mxu0 0
        %1485 = vmatpush1.bf16.msra.mxu0 0
        %1486 = vmatprep.subr.bf16.mxu0 0
        %1487 = vmatpush1.bf16.msra.mxu0 0
        %1488 = vmatprep.subr.bf16.mxu0 0
        %1489 = vmatpush1.bf16.msra.mxu0 0
        %1490 = vmatprep.subr.bf16.mxu0 0
        %1491 = vmatpush1.bf16.msra.mxu0 0
        %1492 = vmatprep.subr.bf16.mxu0 0
        %1493 = vmatpush1.bf16.msra.mxu0 0
        %1494 = vmatprep.subr.bf16.mxu0 0
        %1495 = vmatpush1.bf16.msra.mxu0 0
        %1496 = vmatprep.subr.bf16.mxu0 0
        %1497 = vmatpush1.bf16.msra.mxu0 0
        %1498 = vmatprep.subr.bf16.mxu0 0
        %1499 = vmatpush1.bf16.msra.mxu0 0
        %1500 = vmatprep.subr.bf16.mxu0 0
        %1501 = vmatpush1.bf16.msra.mxu0 0
        %1502 = vmatprep.subr.bf16.mxu0 0
        %1503 = vmatpush1.bf16.msra.mxu0 0
        %1504 = vmatprep.subr.bf16.mxu0 0
        %1505 = vmatpush1.bf16.msra.mxu0 0
        %1506 = vmatprep.subr.bf16.mxu0 0
        %1507 = vmatpush1.bf16.msra.mxu0 0
        %1508 = vmatprep.subr.bf16.mxu0 0
        %1509 = vmatpush1.bf16.msra.mxu0 0
        %1510 = vmatprep.mubr.bf16.mxu0 0
        %1511 = vmatmul.mubr.bf16.gmra.mrb[0].mxu0 %v1476
        %v1512 = vpop.f32.mrb[0].mxu0
        %v1513 = vadd.f32 0.0, %v1512
        %v1514 = vpop.f32.mrb[0].mxu0
        %v1515 = vadd.f32 0.0, %v1514
        %v1516 = vpop.f32.mrb[0].mxu0
        %v1517 = vadd.f32 0.0, %v1516
        %v1518 = vpop.f32.mrb[0].mxu0
        %v1519 = vadd.f32 0.0, %v1518
        %1520 = vdwg.mxu0
        %1521 = vmatprep.subr.bf16.mxu0 0
        %1522 = vmatpush1.bf16.msra.mxu0 %v1471
        %1523 = vmatprep.subr.bf16.mxu0 0
        %1524 = vmatpush1.bf16.msra.mxu0 0
        %1525 = vmatprep.subr.bf16.mxu0 0
        %1526 = vmatpush1.bf16.msra.mxu0 0
        %1527 = vmatprep.subr.bf16.mxu0 0
        %1528 = vmatpush1.bf16.msra.mxu0 0
        %1529 = vmatprep.subr.bf16.mxu0 0
        %1530 = vmatpush1.bf16.msra.mxu0 0
        %1531 = vmatprep.subr.bf16.mxu0 0
        %1532 = vmatpush1.bf16.msra.mxu0 0
        %1533 = vmatprep.subr.bf16.mxu0 0
        %1534 = vmatpush1.bf16.msra.mxu0 0
        %1535 = vmatprep.subr.bf16.mxu0 0
        %1536 = vmatpush1.bf16.msra.mxu0 0
        %1537 = vmatprep.subr.bf16.mxu0 0
        %1538 = vmatpush1.bf16.msra.mxu0 0
        %1539 = vmatprep.subr.bf16.mxu0 0
        %1540 = vmatpush1.bf16.msra.mxu0 0
        %1541 = vmatprep.subr.bf16.mxu0 0
        %1542 = vmatpush1.bf16.msra.mxu0 0
        %1543 = vmatprep.subr.bf16.mxu0 0
        %1544 = vmatpush1.bf16.msra.mxu0 0
        %1545 = vmatprep.subr.bf16.mxu0 0
        %1546 = vmatpush1.bf16.msra.mxu0 0
        %1547 = vmatprep.subr.bf16.mxu0 0
        %1548 = vmatpush1.bf16.msra.mxu0 0
        %1549 = vmatprep.subr.bf16.mxu0 0
        %1550 = vmatpush1.bf16.msra.mxu0 0
        %1551 = vmatprep.subr.bf16.mxu0 0
        %1552 = vmatpush1.bf16.msra.mxu0 0
        %1553 = vmatprep.mubr.bf16.mxu0 0
        %1554 = vmatmul.mubr.bf16.gmra.mrb[0].mxu0 %v1476
        %v1555 = vpop.f32.mrb[0].mxu0
        %v1556 = vadd.f32 0.0, %v1555
        %v1557 = vpop.f32.mrb[0].mxu0
        %v1558 = vpop.f32.mrb[0].mxu0
        %v1559 = vadd.f32 0.0, %v1558
        %v1560 = vpop.f32.mrb[0].mxu0
        %1561 = vdwg.mxu0
        %v1562 = vadd.f32 %v1446, %v1513
        %v1563 = vadd.f32 %v1447, %v1515
        %v1564 = vadd.f32 %v1448, %v1556
        %v1565 = vadd.f32 %v1449, %v1517
        %v1566 = vadd.f32 %v1450, %v1519
        %v1567 = vadd.f32 %v1451, %v1559
        %v1568 = vld [vmem:[%s436] sm:$0xff]
        %v1569 = vld [vmem:[%s436 + $0x8] sm:$0xff]
        %1571 = vset.pattern.permute.xlu0 0
        %1572 = vperm.xlu0 %1571, %v1568
        %v1573 = vpop.permute.xlu0 %1572
        %1576 = vset.pattern.permute.xlu0 0
        %1577 = vperm.xlu0 %1576, %v1569
        %v1578 = vpop.permute.xlu0 %1577
        %v1580 = vmul.f32 %v1562, %v1573
        %v1581 = vmul.f32 %v1563, %v1573
        %v1582 = vmul.f32 %v1564, %v1573
        %v1583 = vmul.f32 %v1565, %v1578
        %v1584 = vmul.f32 %v1566, %v1578
        %v1585 = vmul.f32 %v1567, %v1578
        %v1586 = vld [vmem:[%s445] sm:$0xff]
        %v1587 = vld [vmem:[%s445 + $0x8] sm:$0xff]
        %1589 = vset.pattern.permute.xlu0 0
        %1590 = vperm.xlu0 %1589, %v1586
        %v1591 = vpop.permute.xlu0 %1590
        %1594 = vset.pattern.permute.xlu0 0
        %1595 = vperm.xlu0 %1594, %v1587
        %v1596 = vpop.permute.xlu0 %1595
        %v1598 = vadd.f32 %v1580, %v1591
        %v1599 = vadd.f32 %v1581, %v1591
        %v1600 = vadd.f32 %v1582, %v1591
        %v1601 = vadd.f32 %v1583, %v1596
        %v1602 = vadd.f32 %v1584, %v1596
        %v1603 = vadd.f32 %v1585, %v1596
        %v1604 = vmax.f32 %v1598, 0.0
        %v1605 = vmax.f32 %v1599, 0.0
        %v1606 = vmax.f32 %v1600, 0.0
        %v1607 = vmax.f32 %v1601, 0.0
        %v1608 = vmax.f32 %v1602, 0.0
        %v1609 = vmax.f32 %v1603, 0.0
        %v1610 = vld [vmem:[#allocation15] sm:$0x7]
        %v1612 = vlaneseq
        %v1613 = vshrl.u32 %v1612, 7
        %v1614 = vsub.s32 0, %v1613
        %v1615 = vrot.slane %v1610, %v1614
        %v1616 = vlaneseq
        %v1617 = vshrl.u32 %v1616, 7
        %v1618 = vsub.s32 1, %v1617
        %v1619 = vrot.slane %v1610, %v1618
        %v1620 = vlaneseq
        %v1621 = vshrl.u32 %v1620, 7
        %v1622 = vsub.s32 2, %v1621
        %v1623 = vrot.slane %v1610, %v1622
        %v1627 = vmul.f32 %v1604, %v1615
        %v1628 = vmul.f32 %v1605, %v1619
        %v1629 = vmul.f32 %v1606, %v1623
        %v1630 = vmul.f32 %v1607, %v1615
        %v1631 = vmul.f32 %v1608, %v1619
        %v1632 = vmul.f32 %v1609, %v1623
        %1633 = vst [vmem:[#allocation2] sm:$0xff] 0
        %1634 = vst [vmem:[#allocation2 + $0x8] sm:$0xff] 0
        %1635 = vst [vmem:[#allocation2 + $0x10] sm:$0xff] 0
        %1636 = vst [vmem:[#allocation2 + $0x18] sm:$0xff] 0
        %1637 = vst [vmem:[#allocation2 + $0x20] sm:$0xff] 0
        %v1638 = vpack.c.bf16 %v1630, %v1627
        %v1639 = vpack.c.bf16 %v1631, %v1628
        %v1640 = vpack.c.bf16 %v1632, %v1629
        %1641 = vst [vmem:[#allocation2 + $0x8] sm:$0xff] %v1638
        %1642 = vst [vmem:[#allocation2 + $0x10] sm:$0xff] %v1639
        %1643 = vst [vmem:[#allocation2 + $0x18] sm:$0xff] %v1640
        %v1644 = vld [vmem:[#allocation2] sm:$0xff]
        %v1645 = vld [vmem:[#allocation2 + $0x8] sm:$0xff]
        %v1646 = vld [vmem:[#allocation2 + $0x10] sm:$0xff]
        %v1647 = vld [vmem:[#allocation2 + $0x18] sm:$0xff]
        %v1648 = vld [vmem:[#allocation2 + $0x20] sm:$0xff]
        %v1649 = vld [vmem:[#allocation8] sm:$0xf]
        %v1650 = vld [vmem:[#allocation8 + $0x4] sm:$0xf]
        %s1651 = scalar_lea.vmem [#allocation8], 8
        %v1652 = vld [vmem:[%s1651] sm:$0xf]
        %v1653 = vld [vmem:[%s1651 + $0x4] sm:$0xf]
        %v1656 = vunpack.c.l.b16 %v1652
        %v1657 = vunpack.c.l.b16 %v1653
        %v1658 = vpack.c.b16 %v1657, %v1656
        %1663 = vrot.lane.b32.xlu0 %v1644, 18
        %v1664 = vpop.permute.xlu0 %1663
        %1665 = vrot.lane.b32.xlu0 %v1645, 18
        %v1666 = vpop.permute.xlu0 %1665
        %1667 = vrot.lane.b32.xlu0 %v1646, 18
        %v1668 = vpop.permute.xlu0 %1667
        %1669 = vrot.lane.b32.xlu0 %v1647, 18
        %v1670 = vpop.permute.xlu0 %1669
        %v1671 = vsel %vm561, %v1664, %v1666
        %v1672 = vsel %vm561, %v1666, %v1668
        %v1673 = vsel %vm561, %v1668, %v1670
        %v1678 = vsel %vm568, %v1658, 0
        %1680 = vmatprep.subr.bf16.mxu0 %v1672
        %1681 = vmatpush1.bf16.msra.mxu0 %v1671
        %1682 = vmatprep.subr.bf16.mxu0 0
        %1683 = vmatpush1.bf16.msra.mxu0 0
        %1684 = vmatprep.subr.bf16.mxu0 0
        %1685 = vmatpush1.bf16.msra.mxu0 0
        %1686 = vmatprep.subr.bf16.mxu0 0
        %1687 = vmatpush1.bf16.msra.mxu0 0
        %1688 = vmatprep.subr.bf16.mxu0 0
        %1689 = vmatpush1.bf16.msra.mxu0 0
        %1690 = vmatprep.subr.bf16.mxu0 0
        %1691 = vmatpush1.bf16.msra.mxu0 0
        %1692 = vmatprep.subr.bf16.mxu0 0
        %1693 = vmatpush1.bf16.msra.mxu0 0
        %1694 = vmatprep.subr.bf16.mxu0 0
        %1695 = vmatpush1.bf16.msra.mxu0 0
        %1696 = vmatprep.subr.bf16.mxu0 0
        %1697 = vmatpush1.bf16.msra.mxu0 0
        %1698 = vmatprep.subr.bf16.mxu0 0
        %1699 = vmatpush1.bf16.msra.mxu0 0
        %1700 = vmatprep.subr.bf16.mxu0 0
        %1701 = vmatpush1.bf16.msra.mxu0 0
        %1702 = vmatprep.subr.bf16.mxu0 0
        %1703 = vmatpush1.bf16.msra.mxu0 0
        %1704 = vmatprep.subr.bf16.mxu0 0
        %1705 = vmatpush1.bf16.msra.mxu0 0
        %1706 = vmatprep.subr.bf16.mxu0 0
        %1707 = vmatpush1.bf16.msra.mxu0 0
        %1708 = vmatprep.subr.bf16.mxu0 0
        %1709 = vmatpush1.bf16.msra.mxu0 0
        %1710 = vmatprep.subr.bf16.mxu0 0
        %1711 = vmatpush1.bf16.msra.mxu0 0
        %1712 = vmatprep.mubr.bf16.mxu0 0
        %1713 = vmatmul.mubr.bf16.gmra.mrb[0].mxu0 %v1678
        %v1714 = vpop.f32.mrb[0].mxu0
        %v1715 = vadd.f32 0.0, %v1714
        %v1716 = vpop.f32.mrb[0].mxu0
        %v1717 = vadd.f32 0.0, %v1716
        %v1718 = vpop.f32.mrb[0].mxu0
        %v1719 = vadd.f32 0.0, %v1718
        %v1720 = vpop.f32.mrb[0].mxu0
        %v1721 = vadd.f32 0.0, %v1720
        %1722 = vdwg.mxu0
        %1723 = vmatprep.subr.bf16.mxu0 0
        %1724 = vmatpush1.bf16.msra.mxu0 %v1673
        %1725 = vmatprep.subr.bf16.mxu0 0
        %1726 = vmatpush1.bf16.msra.mxu0 0
        %1727 = vmatprep.subr.bf16.mxu0 0
        %1728 = vmatpush1.bf16.msra.mxu0 0
        %1729 = vmatprep.subr.bf16.mxu0 0
        %1730 = vmatpush1.bf16.msra.mxu0 0
        %1731 = vmatprep.subr.bf16.mxu0 0
        %1732 = vmatpush1.bf16.msra.mxu0 0
        %1733 = vmatprep.subr.bf16.mxu0 0
        %1734 = vmatpush1.bf16.msra.mxu0 0
        %1735 = vmatprep.subr.bf16.mxu0 0
        %1736 = vmatpush1.bf16.msra.mxu0 0
        %1737 = vmatprep.subr.bf16.mxu0 0
        %1738 = vmatpush1.bf16.msra.mxu0 0
        %1739 = vmatprep.subr.bf16.mxu0 0
        %1740 = vmatpush1.bf16.msra.mxu0 0
        %1741 = vmatprep.subr.bf16.mxu0 0
        %1742 = vmatpush1.bf16.msra.mxu0 0
        %1743 = vmatprep.subr.bf16.mxu0 0
        %1744 = vmatpush1.bf16.msra.mxu0 0
        %1745 = vmatprep.subr.bf16.mxu0 0
        %1746 = vmatpush1.bf16.msra.mxu0 0
        %1747 = vmatprep.subr.bf16.mxu0 0
        %1748 = vmatpush1.bf16.msra.mxu0 0
        %1749 = vmatprep.subr.bf16.mxu0 0
        %1750 = vmatpush1.bf16.msra.mxu0 0
        %1751 = vmatprep.subr.bf16.mxu0 0
        %1752 = vmatpush1.bf16.msra.mxu0 0
        %1753 = vmatprep.subr.bf16.mxu0 0
        %1754 = vmatpush1.bf16.msra.mxu0 0
        %1755 = vmatprep.mubr.bf16.mxu0 0
        %1756 = vmatmul.mubr.bf16.gmra.mrb[0].mxu0 %v1678
        %v1757 = vpop.f32.mrb[0].mxu0
        %v1758 = vadd.f32 0.0, %v1757
        %v1759 = vpop.f32.mrb[0].mxu0
        %v1760 = vpop.f32.mrb[0].mxu0
        %v1761 = vadd.f32 0.0, %v1760
        %v1762 = vpop.f32.mrb[0].mxu0
        %1763 = vdwg.mxu0
        %v1766 = vunpack.c.l.b16 %v1649
        %v1767 = vunpack.c.l.b16 %v1650
        %v1768 = vpack.c.b16 %v1767, %v1766
        %1769 = vrot.lane.b32.xlu0 %v1644, 19
        %v1770 = vpop.permute.xlu0 %1769
        %1771 = vrot.lane.b32.xlu0 %v1645, 19
        %v1772 = vpop.permute.xlu0 %1771
        %1773 = vrot.lane.b32.xlu0 %v1646, 19
        %v1774 = vpop.permute.xlu0 %1773
        %1775 = vrot.lane.b32.xlu0 %v1647, 19
        %v1776 = vpop.permute.xlu0 %1775
        %v1777 = vsel %vm669, %v1770, %v1772
        %v1778 = vsel %vm669, %v1772, %v1774
        %v1779 = vsel %vm669, %v1774, %v1776
        %v1784 = vsel %vm568, %v1768, 0
        %1786 = vmatprep.subr.bf16.mxu0 %v1778
        %1787 = vmatpush1.bf16.msra.mxu0 %v1777
        %1788 = vmatprep.subr.bf16.mxu0 0
        %1789 = vmatpush1.bf16.msra.mxu0 0
        %1790 = vmatprep.subr.bf16.mxu0 0
        %1791 = vmatpush1.bf16.msra.mxu0 0
        %1792 = vmatprep.subr.bf16.mxu0 0
        %1793 = vmatpush1.bf16.msra.mxu0 0
        %1794 = vmatprep.subr.bf16.mxu0 0
        %1795 = vmatpush1.bf16.msra.mxu0 0
        %1796 = vmatprep.subr.bf16.mxu0 0
        %1797 = vmatpush1.bf16.msra.mxu0 0
        %1798 = vmatprep.subr.bf16.mxu0 0
        %1799 = vmatpush1.bf16.msra.mxu0 0
        %1800 = vmatprep.subr.bf16.mxu0 0
        %1801 = vmatpush1.bf16.msra.mxu0 0
        %1802 = vmatprep.subr.bf16.mxu0 0
        %1803 = vmatpush1.bf16.msra.mxu0 0
        %1804 = vmatprep.subr.bf16.mxu0 0
        %1805 = vmatpush1.bf16.msra.mxu0 0
        %1806 = vmatprep.subr.bf16.mxu0 0
        %1807 = vmatpush1.bf16.msra.mxu0 0
        %1808 = vmatprep.subr.bf16.mxu0 0
        %1809 = vmatpush1.bf16.msra.mxu0 0
        %1810 = vmatprep.subr.bf16.mxu0 0
        %1811 = vmatpush1.bf16.msra.mxu0 0
        %1812 = vmatprep.subr.bf16.mxu0 0
        %1813 = vmatpush1.bf16.msra.mxu0 0
        %1814 = vmatprep.subr.bf16.mxu0 0
        %1815 = vmatpush1.bf16.msra.mxu0 0
        %1816 = vmatprep.subr.bf16.mxu0 0
        %1817 = vmatpush1.bf16.msra.mxu0 0
        %1818 = vmatprep.mubr.bf16.mxu0 0
        %1819 = vmatmul.mubr.bf16.gmra.mrb[0].mxu0 %v1784
        %v1820 = vpop.f32.mrb[0].mxu0
        %v1821 = vadd.f32 %v1715, %v1820
        %v1822 = vpop.f32.mrb[0].mxu0
        %v1823 = vadd.f32 %v1717, %v1822
        %v1824 = vpop.f32.mrb[0].mxu0
        %v1825 = vadd.f32 %v1719, %v1824
        %v1826 = vpop.f32.mrb[0].mxu0
        %v1827 = vadd.f32 %v1721, %v1826
        %1828 = vdwg.mxu0
        %1829 = vmatprep.subr.bf16.mxu0 0
        %1830 = vmatpush1.bf16.msra.mxu0 %v1779
        %1831 = vmatprep.subr.bf16.mxu0 0
        %1832 = vmatpush1.bf16.msra.mxu0 0
        %1833 = vmatprep.subr.bf16.mxu0 0
        %1834 = vmatpush1.bf16.msra.mxu0 0
        %1835 = vmatprep.subr.bf16.mxu0 0
        %1836 = vmatpush1.bf16.msra.mxu0 0
        %1837 = vmatprep.subr.bf16.mxu0 0
        %1838 = vmatpush1.bf16.msra.mxu0 0
        %1839 = vmatprep.subr.bf16.mxu0 0
        %1840 = vmatpush1.bf16.msra.mxu0 0
        %1841 = vmatprep.subr.bf16.mxu0 0
        %1842 = vmatpush1.bf16.msra.mxu0 0
        %1843 = vmatprep.subr.bf16.mxu0 0
        %1844 = vmatpush1.bf16.msra.mxu0 0
        %1845 = vmatprep.subr.bf16.mxu0 0
        %1846 = vmatpush1.bf16.msra.mxu0 0
        %1847 = vmatprep.subr.bf16.mxu0 0
        %1848 = vmatpush1.bf16.msra.mxu0 0
        %1849 = vmatprep.subr.bf16.mxu0 0
        %1850 = vmatpush1.bf16.msra.mxu0 0
        %1851 = vmatprep.subr.bf16.mxu0 0
        %1852 = vmatpush1.bf16.msra.mxu0 0
        %1853 = vmatprep.subr.bf16.mxu0 0
        %1854 = vmatpush1.bf16.msra.mxu0 0
        %1855 = vmatprep.subr.bf16.mxu0 0
        %1856 = vmatpush1.bf16.msra.mxu0 0
        %1857 = vmatprep.subr.bf16.mxu0 0
        %1858 = vmatpush1.bf16.msra.mxu0 0
        %1859 = vmatprep.subr.bf16.mxu0 0
        %1860 = vmatpush1.bf16.msra.mxu0 0
        %1861 = vmatprep.mubr.bf16.mxu0 0
        %1862 = vmatmul.mubr.bf16.gmra.mrb[0].mxu0 %v1784
        %v1863 = vpop.f32.mrb[0].mxu0
        %v1864 = vadd.f32 %v1758, %v1863
        %v1865 = vpop.f32.mrb[0].mxu0
        %v1866 = vpop.f32.mrb[0].mxu0
        %v1867 = vadd.f32 %v1761, %v1866
        %v1868 = vpop.f32.mrb[0].mxu0
        %1869 = vdwg.mxu0
        %s1870 = scalar_lea.vmem [#allocation8], 16
        %v1871 = vld [vmem:[%s1870] sm:$0xf]
        %v1872 = vld [vmem:[%s1870 + $0x4] sm:$0xf]
        %v1875 = vunpack.c.l.b16 %v1871
        %v1876 = vunpack.c.l.b16 %v1872
        %v1877 = vpack.c.b16 %v1876, %v1875
        %1878 = vrot.lane.b32.xlu0 %v1644, 17
        %v1879 = vpop.permute.xlu0 %1878
        %1880 = vrot.lane.b32.xlu0 %v1645, 17
        %v1881 = vpop.permute.xlu0 %1880
        %1882 = vrot.lane.b32.xlu0 %v1646, 17
        %v1883 = vpop.permute.xlu0 %1882
        %1884 = vrot.lane.b32.xlu0 %v1647, 17
        %v1885 = vpop.permute.xlu0 %1884
        %v1886 = vsel %vm779, %v1879, %v1881
        %v1887 = vsel %vm779, %v1881, %v1883
        %v1888 = vsel %vm779, %v1883, %v1885
        %v1893 = vsel %vm568, %v1877, 0
        %1895 = vmatprep.subr.bf16.mxu0 %v1887
        %1896 = vmatpush1.bf16.msra.mxu0 %v1886
        %1897 = vmatprep.subr.bf16.mxu0 0
        %1898 = vmatpush1.bf16.msra.mxu0 0
        %1899 = vmatprep.subr.bf16.mxu0 0
        %1900 = vmatpush1.bf16.msra.mxu0 0
        %1901 = vmatprep.subr.bf16.mxu0 0
        %1902 = vmatpush1.bf16.msra.mxu0 0
        %1903 = vmatprep.subr.bf16.mxu0 0
        %1904 = vmatpush1.bf16.msra.mxu0 0
        %1905 = vmatprep.subr.bf16.mxu0 0
        %1906 = vmatpush1.bf16.msra.mxu0 0
        %1907 = vmatprep.subr.bf16.mxu0 0
        %1908 = vmatpush1.bf16.msra.mxu0 0
        %1909 = vmatprep.subr.bf16.mxu0 0
        %1910 = vmatpush1.bf16.msra.mxu0 0
        %1911 = vmatprep.subr.bf16.mxu0 0
        %1912 = vmatpush1.bf16.msra.mxu0 0
        %1913 = vmatprep.subr.bf16.mxu0 0
        %1914 = vmatpush1.bf16.msra.mxu0 0
        %1915 = vmatprep.subr.bf16.mxu0 0
        %1916 = vmatpush1.bf16.msra.mxu0 0
        %1917 = vmatprep.subr.bf16.mxu0 0
        %1918 = vmatpush1.bf16.msra.mxu0 0
        %1919 = vmatprep.subr.bf16.mxu0 0
        %1920 = vmatpush1.bf16.msra.mxu0 0
        %1921 = vmatprep.subr.bf16.mxu0 0
        %1922 = vmatpush1.bf16.msra.mxu0 0
        %1923 = vmatprep.subr.bf16.mxu0 0
        %1924 = vmatpush1.bf16.msra.mxu0 0
        %1925 = vmatprep.subr.bf16.mxu0 0
        %1926 = vmatpush1.bf16.msra.mxu0 0
        %1927 = vmatprep.mubr.bf16.mxu0 0
        %1928 = vmatmul.mubr.bf16.gmra.mrb[0].mxu0 %v1893
        %v1929 = vpop.f32.mrb[0].mxu0
        %v1930 = vadd.f32 0.0, %v1929
        %v1931 = vpop.f32.mrb[0].mxu0
        %v1932 = vadd.f32 0.0, %v1931
        %v1933 = vpop.f32.mrb[0].mxu0
        %v1934 = vadd.f32 0.0, %v1933
        %v1935 = vpop.f32.mrb[0].mxu0
        %v1936 = vadd.f32 0.0, %v1935
        %1937 = vdwg.mxu0
        %1938 = vmatprep.subr.bf16.mxu0 0
        %1939 = vmatpush1.bf16.msra.mxu0 %v1888
        %1940 = vmatprep.subr.bf16.mxu0 0
        %1941 = vmatpush1.bf16.msra.mxu0 0
        %1942 = vmatprep.subr.bf16.mxu0 0
        %1943 = vmatpush1.bf16.msra.mxu0 0
        %1944 = vmatprep.subr.bf16.mxu0 0
        %1945 = vmatpush1.bf16.msra.mxu0 0
        %1946 = vmatprep.subr.bf16.mxu0 0
        %1947 = vmatpush1.bf16.msra.mxu0 0
        %1948 = vmatprep.subr.bf16.mxu0 0
        %1949 = vmatpush1.bf16.msra.mxu0 0
        %1950 = vmatprep.subr.bf16.mxu0 0
        %1951 = vmatpush1.bf16.msra.mxu0 0
        %1952 = vmatprep.subr.bf16.mxu0 0
        %1953 = vmatpush1.bf16.msra.mxu0 0
        %1954 = vmatprep.subr.bf16.mxu0 0
        %1955 = vmatpush1.bf16.msra.mxu0 0
        %1956 = vmatprep.subr.bf16.mxu0 0
        %1957 = vmatpush1.bf16.msra.mxu0 0
        %1958 = vmatprep.subr.bf16.mxu0 0
        %1959 = vmatpush1.bf16.msra.mxu0 0
        %1960 = vmatprep.subr.bf16.mxu0 0
        %1961 = vmatpush1.bf16.msra.mxu0 0
        %1962 = vmatprep.subr.bf16.mxu0 0
        %1963 = vmatpush1.bf16.msra.mxu0 0
        %1964 = vmatprep.subr.bf16.mxu0 0
        %1965 = vmatpush1.bf16.msra.mxu0 0
        %1966 = vmatprep.subr.bf16.mxu0 0
        %1967 = vmatpush1.bf16.msra.mxu0 0
        %1968 = vmatprep.subr.bf16.mxu0 0
        %1969 = vmatpush1.bf16.msra.mxu0 0
        %1970 = vmatprep.mubr.bf16.mxu0 0
        %1971 = vmatmul.mubr.bf16.gmra.mrb[0].mxu0 %v1893
        %v1972 = vpop.f32.mrb[0].mxu0
        %v1973 = vadd.f32 0.0, %v1972
        %v1974 = vpop.f32.mrb[0].mxu0
        %v1975 = vpop.f32.mrb[0].mxu0
        %v1976 = vadd.f32 0.0, %v1975
        %v1977 = vpop.f32.mrb[0].mxu0
        %1978 = vdwg.mxu0
        %v1979 = vadd.f32 %v1821, %v1930
        %v1980 = vadd.f32 %v1823, %v1932
        %v1981 = vadd.f32 %v1864, %v1973
        %v1982 = vadd.f32 %v1825, %v1934
        %v1983 = vadd.f32 %v1827, %v1936
        %v1984 = vadd.f32 %v1867, %v1976
        %s1985 = scalar_lea.vmem [#allocation8], 24
        %v1986 = vld [vmem:[%s1985] sm:$0xf]
        %v1987 = vld [vmem:[%s1985 + $0x4] sm:$0xf]
        %v1990 = vunpack.c.l.b16 %v1986
        %v1991 = vunpack.c.l.b16 %v1987
        %v1992 = vpack.c.b16 %v1991, %v1990
        %1993 = vrot.lane.b32.xlu0 %v1644, 1
        %v1994 = vpop.permute.xlu0 %1993
        %1995 = vrot.lane.b32.xlu0 %v1645, 1
        %v1996 = vpop.permute.xlu0 %1995
        %1997 = vrot.lane.b32.xlu0 %v1646, 1
        %v1998 = vpop.permute.xlu0 %1997
        %1999 = vrot.lane.b32.xlu0 %v1647, 1
        %v2000 = vpop.permute.xlu0 %1999
        %v2001 = vsel %vm895, %v1994, %v1996
        %v2002 = vsel %vm895, %v1996, %v1998
        %v2003 = vsel %vm895, %v1998, %v2000
        %v2008 = vsel %vm568, %v1992, 0
        %2010 = vmatprep.subr.bf16.mxu0 %v2002
        %2011 = vmatpush1.bf16.msra.mxu0 %v2001
        %2012 = vmatprep.subr.bf16.mxu0 0
        %2013 = vmatpush1.bf16.msra.mxu0 0
        %2014 = vmatprep.subr.bf16.mxu0 0
        %2015 = vmatpush1.bf16.msra.mxu0 0
        %2016 = vmatprep.subr.bf16.mxu0 0
        %2017 = vmatpush1.bf16.msra.mxu0 0
        %2018 = vmatprep.subr.bf16.mxu0 0
        %2019 = vmatpush1.bf16.msra.mxu0 0
        %2020 = vmatprep.subr.bf16.mxu0 0
        %2021 = vmatpush1.bf16.msra.mxu0 0
        %2022 = vmatprep.subr.bf16.mxu0 0
        %2023 = vmatpush1.bf16.msra.mxu0 0
        %2024 = vmatprep.subr.bf16.mxu0 0
        %2025 = vmatpush1.bf16.msra.mxu0 0
        %2026 = vmatprep.subr.bf16.mxu0 0
        %2027 = vmatpush1.bf16.msra.mxu0 0
        %2028 = vmatprep.subr.bf16.mxu0 0
        %2029 = vmatpush1.bf16.msra.mxu0 0
        %2030 = vmatprep.subr.bf16.mxu0 0
        %2031 = vmatpush1.bf16.msra.mxu0 0
        %2032 = vmatprep.subr.bf16.mxu0 0
        %2033 = vmatpush1.bf16.msra.mxu0 0
        %2034 = vmatprep.subr.bf16.mxu0 0
        %2035 = vmatpush1.bf16.msra.mxu0 0
        %2036 = vmatprep.subr.bf16.mxu0 0
        %2037 = vmatpush1.bf16.msra.mxu0 0
        %2038 = vmatprep.subr.bf16.mxu0 0
        %2039 = vmatpush1.bf16.msra.mxu0 0
        %2040 = vmatprep.subr.bf16.mxu0 0
        %2041 = vmatpush1.bf16.msra.mxu0 0
        %2042 = vmatprep.mubr.bf16.mxu0 0
        %2043 = vmatmul.mubr.bf16.gmra.mrb[0].mxu0 %v2008
        %v2044 = vpop.f32.mrb[0].mxu0
        %v2045 = vadd.f32 0.0, %v2044
        %v2046 = vpop.f32.mrb[0].mxu0
        %v2047 = vadd.f32 0.0, %v2046
        %v2048 = vpop.f32.mrb[0].mxu0
        %v2049 = vadd.f32 0.0, %v2048
        %v2050 = vpop.f32.mrb[0].mxu0
        %v2051 = vadd.f32 0.0, %v2050
        %2052 = vdwg.mxu0
        %2053 = vmatprep.subr.bf16.mxu0 0
        %2054 = vmatpush1.bf16.msra.mxu0 %v2003
        %2055 = vmatprep.subr.bf16.mxu0 0
        %2056 = vmatpush1.bf16.msra.mxu0 0
        %2057 = vmatprep.subr.bf16.mxu0 0
        %2058 = vmatpush1.bf16.msra.mxu0 0
        %2059 = vmatprep.subr.bf16.mxu0 0
        %2060 = vmatpush1.bf16.msra.mxu0 0
        %2061 = vmatprep.subr.bf16.mxu0 0
        %2062 = vmatpush1.bf16.msra.mxu0 0
        %2063 = vmatprep.subr.bf16.mxu0 0
        %2064 = vmatpush1.bf16.msra.mxu0 0
        %2065 = vmatprep.subr.bf16.mxu0 0
        %2066 = vmatpush1.bf16.msra.mxu0 0
        %2067 = vmatprep.subr.bf16.mxu0 0
        %2068 = vmatpush1.bf16.msra.mxu0 0
        %2069 = vmatprep.subr.bf16.mxu0 0
        %2070 = vmatpush1.bf16.msra.mxu0 0
        %2071 = vmatprep.subr.bf16.mxu0 0
        %2072 = vmatpush1.bf16.msra.mxu0 0
        %2073 = vmatprep.subr.bf16.mxu0 0
        %2074 = vmatpush1.bf16.msra.mxu0 0
        %2075 = vmatprep.subr.bf16.mxu0 0
        %2076 = vmatpush1.bf16.msra.mxu0 0
        %2077 = vmatprep.subr.bf16.mxu0 0
        %2078 = vmatpush1.bf16.msra.mxu0 0
        %2079 = vmatprep.subr.bf16.mxu0 0
        %2080 = vmatpush1.bf16.msra.mxu0 0
        %2081 = vmatprep.subr.bf16.mxu0 0
        %2082 = vmatpush1.bf16.msra.mxu0 0
        %2083 = vmatprep.subr.bf16.mxu0 0
        %2084 = vmatpush1.bf16.msra.mxu0 0
        %2085 = vmatprep.mubr.bf16.mxu0 0
        %2086 = vmatmul.mubr.bf16.gmra.mrb[0].mxu0 %v2008
        %v2087 = vpop.f32.mrb[0].mxu0
        %v2088 = vadd.f32 0.0, %v2087
        %v2089 = vpop.f32.mrb[0].mxu0
        %v2090 = vpop.f32.mrb[0].mxu0
        %v2091 = vadd.f32 0.0, %v2090
        %v2092 = vpop.f32.mrb[0].mxu0
        %2093 = vdwg.mxu0
        %v2094 = vadd.f32 %v1979, %v2045
        %v2095 = vadd.f32 %v1980, %v2047
        %v2096 = vadd.f32 %v1981, %v2088
        %v2097 = vadd.f32 %v1982, %v2049
        %v2098 = vadd.f32 %v1983, %v2051
        %v2099 = vadd.f32 %v1984, %v2091
        %s2100 = scalar_lea.vmem [#allocation8], 32
        %v2101 = vld [vmem:[%s2100] sm:$0xf]
        %v2102 = vld [vmem:[%s2100 + $0x4] sm:$0xf]
        %v2105 = vunpack.c.l.b16 %v2101
        %v2106 = vunpack.c.l.b16 %v2102
        %v2107 = vpack.c.b16 %v2106, %v2105
        %v2109 = vsel %vm568, %v2107, 0
        %2111 = vmatprep.subr.bf16.mxu0 %v1646
        %2112 = vmatpush1.bf16.msra.mxu0 %v1645
        %2113 = vmatprep.subr.bf16.mxu0 0
        %2114 = vmatpush1.bf16.msra.mxu0 0
        %2115 = vmatprep.subr.bf16.mxu0 0
        %2116 = vmatpush1.bf16.msra.mxu0 0
        %2117 = vmatprep.subr.bf16.mxu0 0
        %2118 = vmatpush1.bf16.msra.mxu0 0
        %2119 = vmatprep.subr.bf16.mxu0 0
        %2120 = vmatpush1.bf16.msra.mxu0 0
        %2121 = vmatprep.subr.bf16.mxu0 0
        %2122 = vmatpush1.bf16.msra.mxu0 0
        %2123 = vmatprep.subr.bf16.mxu0 0
        %2124 = vmatpush1.bf16.msra.mxu0 0
        %2125 = vmatprep.subr.bf16.mxu0 0
        %2126 = vmatpush1.bf16.msra.mxu0 0
        %2127 = vmatprep.subr.bf16.mxu0 0
        %2128 = vmatpush1.bf16.msra.mxu0 0
        %2129 = vmatprep.subr.bf16.mxu0 0
        %2130 = vmatpush1.bf16.msra.mxu0 0
        %2131 = vmatprep.subr.bf16.mxu0 0
        %2132 = vmatpush1.bf16.msra.mxu0 0
        %2133 = vmatprep.subr.bf16.mxu0 0
        %2134 = vmatpush1.bf16.msra.mxu0 0
        %2135 = vmatprep.subr.bf16.mxu0 0
        %2136 = vmatpush1.bf16.msra.mxu0 0
        %2137 = vmatprep.subr.bf16.mxu0 0
        %2138 = vmatpush1.bf16.msra.mxu0 0
        %2139 = vmatprep.subr.bf16.mxu0 0
        %2140 = vmatpush1.bf16.msra.mxu0 0
        %2141 = vmatprep.subr.bf16.mxu0 0
        %2142 = vmatpush1.bf16.msra.mxu0 0
        %2143 = vmatprep.mubr.bf16.mxu0 0
        %2144 = vmatmul.mubr.bf16.gmra.mrb[0].mxu0 %v2109
        %v2145 = vpop.f32.mrb[0].mxu0
        %v2146 = vadd.f32 0.0, %v2145
        %v2147 = vpop.f32.mrb[0].mxu0
        %v2148 = vadd.f32 0.0, %v2147
        %v2149 = vpop.f32.mrb[0].mxu0
        %v2150 = vadd.f32 0.0, %v2149
        %v2151 = vpop.f32.mrb[0].mxu0
        %v2152 = vadd.f32 0.0, %v2151
        %2153 = vdwg.mxu0
        %2154 = vmatprep.subr.bf16.mxu0 0
        %2155 = vmatpush1.bf16.msra.mxu0 %v1647
        %2156 = vmatprep.subr.bf16.mxu0 0
        %2157 = vmatpush1.bf16.msra.mxu0 0
        %2158 = vmatprep.subr.bf16.mxu0 0
        %2159 = vmatpush1.bf16.msra.mxu0 0
        %2160 = vmatprep.subr.bf16.mxu0 0
        %2161 = vmatpush1.bf16.msra.mxu0 0
        %2162 = vmatprep.subr.bf16.mxu0 0
        %2163 = vmatpush1.bf16.msra.mxu0 0
        %2164 = vmatprep.subr.bf16.mxu0 0
        %2165 = vmatpush1.bf16.msra.mxu0 0
        %2166 = vmatprep.subr.bf16.mxu0 0
        %2167 = vmatpush1.bf16.msra.mxu0 0
        %2168 = vmatprep.subr.bf16.mxu0 0
        %2169 = vmatpush1.bf16.msra.mxu0 0
        %2170 = vmatprep.subr.bf16.mxu0 0
        %2171 = vmatpush1.bf16.msra.mxu0 0
        %2172 = vmatprep.subr.bf16.mxu0 0
        %2173 = vmatpush1.bf16.msra.mxu0 0
        %2174 = vmatprep.subr.bf16.mxu0 0
        %2175 = vmatpush1.bf16.msra.mxu0 0
        %2176 = vmatprep.subr.bf16.mxu0 0
        %2177 = vmatpush1.bf16.msra.mxu0 0
        %2178 = vmatprep.subr.bf16.mxu0 0
        %2179 = vmatpush1.bf16.msra.mxu0 0
        %2180 = vmatprep.subr.bf16.mxu0 0
        %2181 = vmatpush1.bf16.msra.mxu0 0
        %2182 = vmatprep.subr.bf16.mxu0 0
        %2183 = vmatpush1.bf16.msra.mxu0 0
        %2184 = vmatprep.subr.bf16.mxu0 0
        %2185 = vmatpush1.bf16.msra.mxu0 0
        %2186 = vmatprep.mubr.bf16.mxu0 0
        %2187 = vmatmul.mubr.bf16.gmra.mrb[0].mxu0 %v2109
        %v2188 = vpop.f32.mrb[0].mxu0
        %v2189 = vadd.f32 0.0, %v2188
        %v2190 = vpop.f32.mrb[0].mxu0
        %v2191 = vpop.f32.mrb[0].mxu0
        %v2192 = vadd.f32 0.0, %v2191
        %v2193 = vpop.f32.mrb[0].mxu0
        %2194 = vdwg.mxu0
        %v2195 = vadd.f32 %v2094, %v2146
        %v2196 = vadd.f32 %v2095, %v2148
        %v2197 = vadd.f32 %v2096, %v2189
        %v2198 = vadd.f32 %v2097, %v2150
        %v2199 = vadd.f32 %v2098, %v2152
        %v2200 = vadd.f32 %v2099, %v2192
        %s2201 = scalar_lea.vmem [#allocation8], 40
        %v2202 = vld [vmem:[%s2201] sm:$0xf]
        %v2203 = vld [vmem:[%s2201 + $0x4] sm:$0xf]
        %v2206 = vunpack.c.l.b16 %v2202
        %v2207 = vunpack.c.l.b16 %v2203
        %v2208 = vpack.c.b16 %v2207, %v2206
        %2210 = vrot.lane.b32.xlu0 %v1645, 127
        %v2211 = vpop.permute.xlu0 %2210
        %2212 = vrot.lane.b32.xlu0 %v1646, 127
        %v2213 = vpop.permute.xlu0 %2212
        %2214 = vrot.lane.b32.xlu0 %v1647, 127
        %v2215 = vpop.permute.xlu0 %2214
        %2216 = vrot.lane.b32.xlu0 %v1648, 127
        %v2217 = vpop.permute.xlu0 %2216
        %v2218 = vsel %vm1120, %v2211, %v2213
        %v2219 = vsel %vm1120, %v2213, %v2215
        %v2220 = vsel %vm1120, %v2215, %v2217
        %v2225 = vsel %vm568, %v2208, 0
        %2227 = vmatprep.subr.bf16.mxu0 %v2219
        %2228 = vmatpush1.bf16.msra.mxu0 %v2218
        %2229 = vmatprep.subr.bf16.mxu0 0
        %2230 = vmatpush1.bf16.msra.mxu0 0
        %2231 = vmatprep.subr.bf16.mxu0 0
        %2232 = vmatpush1.bf16.msra.mxu0 0
        %2233 = vmatprep.subr.bf16.mxu0 0
        %2234 = vmatpush1.bf16.msra.mxu0 0
        %2235 = vmatprep.subr.bf16.mxu0 0
        %2236 = vmatpush1.bf16.msra.mxu0 0
        %2237 = vmatprep.subr.bf16.mxu0 0
        %2238 = vmatpush1.bf16.msra.mxu0 0
        %2239 = vmatprep.subr.bf16.mxu0 0
        %2240 = vmatpush1.bf16.msra.mxu0 0
        %2241 = vmatprep.subr.bf16.mxu0 0
        %2242 = vmatpush1.bf16.msra.mxu0 0
        %2243 = vmatprep.subr.bf16.mxu0 0
        %2244 = vmatpush1.bf16.msra.mxu0 0
        %2245 = vmatprep.subr.bf16.mxu0 0
        %2246 = vmatpush1.bf16.msra.mxu0 0
        %2247 = vmatprep.subr.bf16.mxu0 0
        %2248 = vmatpush1.bf16.msra.mxu0 0
        %2249 = vmatprep.subr.bf16.mxu0 0
        %2250 = vmatpush1.bf16.msra.mxu0 0
        %2251 = vmatprep.subr.bf16.mxu0 0
        %2252 = vmatpush1.bf16.msra.mxu0 0
        %2253 = vmatprep.subr.bf16.mxu0 0
        %2254 = vmatpush1.bf16.msra.mxu0 0
        %2255 = vmatprep.subr.bf16.mxu0 0
        %2256 = vmatpush1.bf16.msra.mxu0 0
        %2257 = vmatprep.subr.bf16.mxu0 0
        %2258 = vmatpush1.bf16.msra.mxu0 0
        %2259 = vmatprep.mubr.bf16.mxu0 0
        %2260 = vmatmul.mubr.bf16.gmra.mrb[0].mxu0 %v2225
        %v2261 = vpop.f32.mrb[0].mxu0
        %v2262 = vadd.f32 0.0, %v2261
        %v2263 = vpop.f32.mrb[0].mxu0
        %v2264 = vadd.f32 0.0, %v2263
        %v2265 = vpop.f32.mrb[0].mxu0
        %v2266 = vadd.f32 0.0, %v2265
        %v2267 = vpop.f32.mrb[0].mxu0
        %v2268 = vadd.f32 0.0, %v2267
        %2269 = vdwg.mxu0
        %2270 = vmatprep.subr.bf16.mxu0 0
        %2271 = vmatpush1.bf16.msra.mxu0 %v2220
        %2272 = vmatprep.subr.bf16.mxu0 0
        %2273 = vmatpush1.bf16.msra.mxu0 0
        %2274 = vmatprep.subr.bf16.mxu0 0
        %2275 = vmatpush1.bf16.msra.mxu0 0
        %2276 = vmatprep.subr.bf16.mxu0 0
        %2277 = vmatpush1.bf16.msra.mxu0 0
        %2278 = vmatprep.subr.bf16.mxu0 0
        %2279 = vmatpush1.bf16.msra.mxu0 0
        %2280 = vmatprep.subr.bf16.mxu0 0
        %2281 = vmatpush1.bf16.msra.mxu0 0
        %2282 = vmatprep.subr.bf16.mxu0 0
        %2283 = vmatpush1.bf16.msra.mxu0 0
        %2284 = vmatprep.subr.bf16.mxu0 0
        %2285 = vmatpush1.bf16.msra.mxu0 0
        %2286 = vmatprep.subr.bf16.mxu0 0
        %2287 = vmatpush1.bf16.msra.mxu0 0
        %2288 = vmatprep.subr.bf16.mxu0 0
        %2289 = vmatpush1.bf16.msra.mxu0 0
        %2290 = vmatprep.subr.bf16.mxu0 0
        %2291 = vmatpush1.bf16.msra.mxu0 0
        %2292 = vmatprep.subr.bf16.mxu0 0
        %2293 = vmatpush1.bf16.msra.mxu0 0
        %2294 = vmatprep.subr.bf16.mxu0 0
        %2295 = vmatpush1.bf16.msra.mxu0 0
        %2296 = vmatprep.subr.bf16.mxu0 0
        %2297 = vmatpush1.bf16.msra.mxu0 0
        %2298 = vmatprep.subr.bf16.mxu0 0
        %2299 = vmatpush1.bf16.msra.mxu0 0
        %2300 = vmatprep.subr.bf16.mxu0 0
        %2301 = vmatpush1.bf16.msra.mxu0 0
        %2302 = vmatprep.mubr.bf16.mxu0 0
        %2303 = vmatmul.mubr.bf16.gmra.mrb[0].mxu0 %v2225
        %v2304 = vpop.f32.mrb[0].mxu0
        %v2305 = vadd.f32 0.0, %v2304
        %v2306 = vpop.f32.mrb[0].mxu0
        %v2307 = vpop.f32.mrb[0].mxu0
        %v2308 = vadd.f32 0.0, %v2307
        %v2309 = vpop.f32.mrb[0].mxu0
        %2310 = vdwg.mxu0
        %v2311 = vadd.f32 %v2195, %v2262
        %v2312 = vadd.f32 %v2196, %v2264
        %v2313 = vadd.f32 %v2197, %v2305
        %v2314 = vadd.f32 %v2198, %v2266
        %v2315 = vadd.f32 %v2199, %v2268
        %v2316 = vadd.f32 %v2200, %v2308
        %s2317 = scalar_lea.vmem [#allocation8], 48
        %v2318 = vld [vmem:[%s2317] sm:$0xf]
        %v2319 = vld [vmem:[%s2317 + $0x4] sm:$0xf]
        %v2322 = vunpack.c.l.b16 %v2318
        %v2323 = vunpack.c.l.b16 %v2319
        %v2324 = vpack.c.b16 %v2323, %v2322
        %2325 = vrot.lane.b32.xlu0 %v1645, 111
        %v2326 = vpop.permute.xlu0 %2325
        %2327 = vrot.lane.b32.xlu0 %v1646, 111
        %v2328 = vpop.permute.xlu0 %2327
        %2329 = vrot.lane.b32.xlu0 %v1647, 111
        %v2330 = vpop.permute.xlu0 %2329
        %2331 = vrot.lane.b32.xlu0 %v1648, 111
        %v2332 = vpop.permute.xlu0 %2331
        %v2333 = vsel %vm1236, %v2326, %v2328
        %v2334 = vsel %vm1236, %v2328, %v2330
        %v2335 = vsel %vm1236, %v2330, %v2332
        %v2340 = vsel %vm568, %v2324, 0
        %2342 = vmatprep.subr.bf16.mxu0 %v2334
        %2343 = vmatpush1.bf16.msra.mxu0 %v2333
        %2344 = vmatprep.subr.bf16.mxu0 0
        %2345 = vmatpush1.bf16.msra.mxu0 0
        %2346 = vmatprep.subr.bf16.mxu0 0
        %2347 = vmatpush1.bf16.msra.mxu0 0
        %2348 = vmatprep.subr.bf16.mxu0 0
        %2349 = vmatpush1.bf16.msra.mxu0 0
        %2350 = vmatprep.subr.bf16.mxu0 0
        %2351 = vmatpush1.bf16.msra.mxu0 0
        %2352 = vmatprep.subr.bf16.mxu0 0
        %2353 = vmatpush1.bf16.msra.mxu0 0
        %2354 = vmatprep.subr.bf16.mxu0 0
        %2355 = vmatpush1.bf16.msra.mxu0 0
        %2356 = vmatprep.subr.bf16.mxu0 0
        %2357 = vmatpush1.bf16.msra.mxu0 0
        %2358 = vmatprep.subr.bf16.mxu0 0
        %2359 = vmatpush1.bf16.msra.mxu0 0
        %2360 = vmatprep.subr.bf16.mxu0 0
        %2361 = vmatpush1.bf16.msra.mxu0 0
        %2362 = vmatprep.subr.bf16.mxu0 0
        %2363 = vmatpush1.bf16.msra.mxu0 0
        %2364 = vmatprep.subr.bf16.mxu0 0
        %2365 = vmatpush1.bf16.msra.mxu0 0
        %2366 = vmatprep.subr.bf16.mxu0 0
        %2367 = vmatpush1.bf16.msra.mxu0 0
        %2368 = vmatprep.subr.bf16.mxu0 0
        %2369 = vmatpush1.bf16.msra.mxu0 0
        %2370 = vmatprep.subr.bf16.mxu0 0
        %2371 = vmatpush1.bf16.msra.mxu0 0
        %2372 = vmatprep.subr.bf16.mxu0 0
        %2373 = vmatpush1.bf16.msra.mxu0 0
        %2374 = vmatprep.mubr.bf16.mxu0 0
        %2375 = vmatmul.mubr.bf16.gmra.mrb[0].mxu0 %v2340
        %v2376 = vpop.f32.mrb[0].mxu0
        %v2377 = vadd.f32 0.0, %v2376
        %v2378 = vpop.f32.mrb[0].mxu0
        %v2379 = vadd.f32 0.0, %v2378
        %v2380 = vpop.f32.mrb[0].mxu0
        %v2381 = vadd.f32 0.0, %v2380
        %v2382 = vpop.f32.mrb[0].mxu0
        %v2383 = vadd.f32 0.0, %v2382
        %2384 = vdwg.mxu0
        %2385 = vmatprep.subr.bf16.mxu0 0
        %2386 = vmatpush1.bf16.msra.mxu0 %v2335
        %2387 = vmatprep.subr.bf16.mxu0 0
        %2388 = vmatpush1.bf16.msra.mxu0 0
        %2389 = vmatprep.subr.bf16.mxu0 0
        %2390 = vmatpush1.bf16.msra.mxu0 0
        %2391 = vmatprep.subr.bf16.mxu0 0
        %2392 = vmatpush1.bf16.msra.mxu0 0
        %2393 = vmatprep.subr.bf16.mxu0 0
        %2394 = vmatpush1.bf16.msra.mxu0 0
        %2395 = vmatprep.subr.bf16.mxu0 0
        %2396 = vmatpush1.bf16.msra.mxu0 0
        %2397 = vmatprep.subr.bf16.mxu0 0
        %2398 = vmatpush1.bf16.msra.mxu0 0
        %2399 = vmatprep.subr.bf16.mxu0 0
        %2400 = vmatpush1.bf16.msra.mxu0 0
        %2401 = vmatprep.subr.bf16.mxu0 0
        %2402 = vmatpush1.bf16.msra.mxu0 0
        %2403 = vmatprep.subr.bf16.mxu0 0
        %2404 = vmatpush1.bf16.msra.mxu0 0
        %2405 = vmatprep.subr.bf16.mxu0 0
        %2406 = vmatpush1.bf16.msra.mxu0 0
        %2407 = vmatprep.subr.bf16.mxu0 0
        %2408 = vmatpush1.bf16.msra.mxu0 0
        %2409 = vmatprep.subr.bf16.mxu0 0
        %2410 = vmatpush1.bf16.msra.mxu0 0
        %2411 = vmatprep.subr.bf16.mxu0 0
        %2412 = vmatpush1.bf16.msra.mxu0 0
        %2413 = vmatprep.subr.bf16.mxu0 0
        %2414 = vmatpush1.bf16.msra.mxu0 0
        %2415 = vmatprep.subr.bf16.mxu0 0
        %2416 = vmatpush1.bf16.msra.mxu0 0
        %2417 = vmatprep.mubr.bf16.mxu0 0
        %2418 = vmatmul.mubr.bf16.gmra.mrb[0].mxu0 %v2340
        %v2419 = vpop.f32.mrb[0].mxu0
        %v2420 = vadd.f32 0.0, %v2419
        %v2421 = vpop.f32.mrb[0].mxu0
        %v2422 = vpop.f32.mrb[0].mxu0
        %v2423 = vadd.f32 0.0, %v2422
        %v2424 = vpop.f32.mrb[0].mxu0
        %2425 = vdwg.mxu0
        %v2426 = vadd.f32 %v2311, %v2377
        %v2427 = vadd.f32 %v2312, %v2379
        %v2428 = vadd.f32 %v2313, %v2420
        %v2429 = vadd.f32 %v2314, %v2381
        %v2430 = vadd.f32 %v2315, %v2383
        %v2431 = vadd.f32 %v2316, %v2423
        %s2432 = scalar_lea.vmem [#allocation8], 56
        %v2433 = vld [vmem:[%s2432] sm:$0xf]
        %v2434 = vld [vmem:[%s2432 + $0x4] sm:$0xf]
        %v2437 = vunpack.c.l.b16 %v2433
        %v2438 = vunpack.c.l.b16 %v2434
        %v2439 = vpack.c.b16 %v2438, %v2437
        %2440 = vrot.lane.b32.xlu0 %v1645, 110
        %v2441 = vpop.permute.xlu0 %2440
        %2442 = vrot.lane.b32.xlu0 %v1646, 110
        %v2443 = vpop.permute.xlu0 %2442
        %2444 = vrot.lane.b32.xlu0 %v1647, 110
        %v2445 = vpop.permute.xlu0 %2444
        %2446 = vrot.lane.b32.xlu0 %v1648, 110
        %v2447 = vpop.permute.xlu0 %2446
        %v2448 = vsel %vm1352, %v2441, %v2443
        %v2449 = vsel %vm1352, %v2443, %v2445
        %v2450 = vsel %vm1352, %v2445, %v2447
        %v2455 = vsel %vm568, %v2439, 0
        %2457 = vmatprep.subr.bf16.mxu0 %v2449
        %2458 = vmatpush1.bf16.msra.mxu0 %v2448
        %2459 = vmatprep.subr.bf16.mxu0 0
        %2460 = vmatpush1.bf16.msra.mxu0 0
        %2461 = vmatprep.subr.bf16.mxu0 0
        %2462 = vmatpush1.bf16.msra.mxu0 0
        %2463 = vmatprep.subr.bf16.mxu0 0
        %2464 = vmatpush1.bf16.msra.mxu0 0
        %2465 = vmatprep.subr.bf16.mxu0 0
        %2466 = vmatpush1.bf16.msra.mxu0 0
        %2467 = vmatprep.subr.bf16.mxu0 0
        %2468 = vmatpush1.bf16.msra.mxu0 0
        %2469 = vmatprep.subr.bf16.mxu0 0
        %2470 = vmatpush1.bf16.msra.mxu0 0
        %2471 = vmatprep.subr.bf16.mxu0 0
        %2472 = vmatpush1.bf16.msra.mxu0 0
        %2473 = vmatprep.subr.bf16.mxu0 0
        %2474 = vmatpush1.bf16.msra.mxu0 0
        %2475 = vmatprep.subr.bf16.mxu0 0
        %2476 = vmatpush1.bf16.msra.mxu0 0
        %2477 = vmatprep.subr.bf16.mxu0 0
        %2478 = vmatpush1.bf16.msra.mxu0 0
        %2479 = vmatprep.subr.bf16.mxu0 0
        %2480 = vmatpush1.bf16.msra.mxu0 0
        %2481 = vmatprep.subr.bf16.mxu0 0
        %2482 = vmatpush1.bf16.msra.mxu0 0
        %2483 = vmatprep.subr.bf16.mxu0 0
        %2484 = vmatpush1.bf16.msra.mxu0 0
        %2485 = vmatprep.subr.bf16.mxu0 0
        %2486 = vmatpush1.bf16.msra.mxu0 0
        %2487 = vmatprep.subr.bf16.mxu0 0
        %2488 = vmatpush1.bf16.msra.mxu0 0
        %2489 = vmatprep.mubr.bf16.mxu0 0
        %2490 = vmatmul.mubr.bf16.gmra.mrb[0].mxu0 %v2455
        %v2491 = vpop.f32.mrb[0].mxu0
        %v2492 = vadd.f32 0.0, %v2491
        %v2493 = vpop.f32.mrb[0].mxu0
        %v2494 = vadd.f32 0.0, %v2493
        %v2495 = vpop.f32.mrb[0].mxu0
        %v2496 = vadd.f32 0.0, %v2495
        %v2497 = vpop.f32.mrb[0].mxu0
        %v2498 = vadd.f32 0.0, %v2497
        %2499 = vdwg.mxu0
        %2500 = vmatprep.subr.bf16.mxu0 0
        %2501 = vmatpush1.bf16.msra.mxu0 %v2450
        %2502 = vmatprep.subr.bf16.mxu0 0
        %2503 = vmatpush1.bf16.msra.mxu0 0
        %2504 = vmatprep.subr.bf16.mxu0 0
        %2505 = vmatpush1.bf16.msra.mxu0 0
        %2506 = vmatprep.subr.bf16.mxu0 0
        %2507 = vmatpush1.bf16.msra.mxu0 0
        %2508 = vmatprep.subr.bf16.mxu0 0
        %2509 = vmatpush1.bf16.msra.mxu0 0
        %2510 = vmatprep.subr.bf16.mxu0 0
        %2511 = vmatpush1.bf16.msra.mxu0 0
        %2512 = vmatprep.subr.bf16.mxu0 0
        %2513 = vmatpush1.bf16.msra.mxu0 0
        %2514 = vmatprep.subr.bf16.mxu0 0
        %2515 = vmatpush1.bf16.msra.mxu0 0
        %2516 = vmatprep.subr.bf16.mxu0 0
        %2517 = vmatpush1.bf16.msra.mxu0 0
        %2518 = vmatprep.subr.bf16.mxu0 0
        %2519 = vmatpush1.bf16.msra.mxu0 0
        %2520 = vmatprep.subr.bf16.mxu0 0
        %2521 = vmatpush1.bf16.msra.mxu0 0
        %2522 = vmatprep.subr.bf16.mxu0 0
        %2523 = vmatpush1.bf16.msra.mxu0 0
        %2524 = vmatprep.subr.bf16.mxu0 0
        %2525 = vmatpush1.bf16.msra.mxu0 0
        %2526 = vmatprep.subr.bf16.mxu0 0
        %2527 = vmatpush1.bf16.msra.mxu0 0
        %2528 = vmatprep.subr.bf16.mxu0 0
        %2529 = vmatpush1.bf16.msra.mxu0 0
        %2530 = vmatprep.subr.bf16.mxu0 0
        %2531 = vmatpush1.bf16.msra.mxu0 0
        %2532 = vmatprep.mubr.bf16.mxu0 0
        %2533 = vmatmul.mubr.bf16.gmra.mrb[0].mxu0 %v2455
        %v2534 = vpop.f32.mrb[0].mxu0
        %v2535 = vadd.f32 0.0, %v2534
        %v2536 = vpop.f32.mrb[0].mxu0
        %v2537 = vpop.f32.mrb[0].mxu0
        %v2538 = vadd.f32 0.0, %v2537
        %v2539 = vpop.f32.mrb[0].mxu0
        %2540 = vdwg.mxu0
        %v2541 = vadd.f32 %v2426, %v2492
        %v2542 = vadd.f32 %v2427, %v2494
        %v2543 = vadd.f32 %v2428, %v2535
        %v2544 = vadd.f32 %v2429, %v2496
        %v2545 = vadd.f32 %v2430, %v2498
        %v2546 = vadd.f32 %v2431, %v2538
        %s2547 = scalar_lea.vmem [#allocation8], 64
        %v2548 = vld [vmem:[%s2547] sm:$0xf]
        %v2549 = vld [vmem:[%s2547 + $0x4] sm:$0xf]
        %v2552 = vunpack.c.l.b16 %v2548
        %v2553 = vunpack.c.l.b16 %v2549
        %v2554 = vpack.c.b16 %v2553, %v2552
        %2555 = vrot.lane.b32.xlu0 %v1645, 109
        %v2556 = vpop.permute.xlu0 %2555
        %2557 = vrot.lane.b32.xlu0 %v1646, 109
        %v2558 = vpop.permute.xlu0 %2557
        %2559 = vrot.lane.b32.xlu0 %v1647, 109
        %v2560 = vpop.permute.xlu0 %2559
        %2561 = vrot.lane.b32.xlu0 %v1648, 109
        %v2562 = vpop.permute.xlu0 %2561
        %v2563 = vsel %vm1468, %v2556, %v2558
        %v2564 = vsel %vm1468, %v2558, %v2560
        %v2565 = vsel %vm1468, %v2560, %v2562
        %v2570 = vsel %vm568, %v2554, 0
        %2572 = vmatprep.subr.bf16.mxu0 %v2564
        %2573 = vmatpush1.bf16.msra.mxu0 %v2563
        %2574 = vmatprep.subr.bf16.mxu0 0
        %2575 = vmatpush1.bf16.msra.mxu0 0
        %2576 = vmatprep.subr.bf16.mxu0 0
        %2577 = vmatpush1.bf16.msra.mxu0 0
        %2578 = vmatprep.subr.bf16.mxu0 0
        %2579 = vmatpush1.bf16.msra.mxu0 0
        %2580 = vmatprep.subr.bf16.mxu0 0
        %2581 = vmatpush1.bf16.msra.mxu0 0
        %2582 = vmatprep.subr.bf16.mxu0 0
        %2583 = vmatpush1.bf16.msra.mxu0 0
        %2584 = vmatprep.subr.bf16.mxu0 0
        %2585 = vmatpush1.bf16.msra.mxu0 0
        %2586 = vmatprep.subr.bf16.mxu0 0
        %2587 = vmatpush1.bf16.msra.mxu0 0
        %2588 = vmatprep.subr.bf16.mxu0 0
        %2589 = vmatpush1.bf16.msra.mxu0 0
        %2590 = vmatprep.subr.bf16.mxu0 0
        %2591 = vmatpush1.bf16.msra.mxu0 0
        %2592 = vmatprep.subr.bf16.mxu0 0
        %2593 = vmatpush1.bf16.msra.mxu0 0
        %2594 = vmatprep.subr.bf16.mxu0 0
        %2595 = vmatpush1.bf16.msra.mxu0 0
        %2596 = vmatprep.subr.bf16.mxu0 0
        %2597 = vmatpush1.bf16.msra.mxu0 0
        %2598 = vmatprep.subr.bf16.mxu0 0
        %2599 = vmatpush1.bf16.msra.mxu0 0
        %2600 = vmatprep.subr.bf16.mxu0 0
        %2601 = vmatpush1.bf16.msra.mxu0 0
        %2602 = vmatprep.subr.bf16.mxu0 0
        %2603 = vmatpush1.bf16.msra.mxu0 0
        %2604 = vmatprep.mubr.bf16.mxu0 0
        %2605 = vmatmul.mubr.bf16.gmra.mrb[0].mxu0 %v2570
        %v2606 = vpop.f32.mrb[0].mxu0
        %v2607 = vadd.f32 0.0, %v2606
        %v2608 = vpop.f32.mrb[0].mxu0
        %v2609 = vadd.f32 0.0, %v2608
        %v2610 = vpop.f32.mrb[0].mxu0
        %v2611 = vadd.f32 0.0, %v2610
        %v2612 = vpop.f32.mrb[0].mxu0
        %v2613 = vadd.f32 0.0, %v2612
        %2614 = vdwg.mxu0
        %2615 = vmatprep.subr.bf16.mxu0 0
        %2616 = vmatpush1.bf16.msra.mxu0 %v2565
        %2617 = vmatprep.subr.bf16.mxu0 0
        %2618 = vmatpush1.bf16.msra.mxu0 0
        %2619 = vmatprep.subr.bf16.mxu0 0
        %2620 = vmatpush1.bf16.msra.mxu0 0
        %2621 = vmatprep.subr.bf16.mxu0 0
        %2622 = vmatpush1.bf16.msra.mxu0 0
        %2623 = vmatprep.subr.bf16.mxu0 0
        %2624 = vmatpush1.bf16.msra.mxu0 0
        %2625 = vmatprep.subr.bf16.mxu0 0
        %2626 = vmatpush1.bf16.msra.mxu0 0
        %2627 = vmatprep.subr.bf16.mxu0 0
        %2628 = vmatpush1.bf16.msra.mxu0 0
        %2629 = vmatprep.subr.bf16.mxu0 0
        %2630 = vmatpush1.bf16.msra.mxu0 0
        %2631 = vmatprep.subr.bf16.mxu0 0
        %2632 = vmatpush1.bf16.msra.mxu0 0
        %2633 = vmatprep.subr.bf16.mxu0 0
        %2634 = vmatpush1.bf16.msra.mxu0 0
        %2635 = vmatprep.subr.bf16.mxu0 0
        %2636 = vmatpush1.bf16.msra.mxu0 0
        %2637 = vmatprep.subr.bf16.mxu0 0
        %2638 = vmatpush1.bf16.msra.mxu0 0
        %2639 = vmatprep.subr.bf16.mxu0 0
        %2640 = vmatpush1.bf16.msra.mxu0 0
        %2641 = vmatprep.subr.bf16.mxu0 0
        %2642 = vmatpush1.bf16.msra.mxu0 0
        %2643 = vmatprep.subr.bf16.mxu0 0
        %2644 = vmatpush1.bf16.msra.mxu0 0
        %2645 = vmatprep.subr.bf16.mxu0 0
        %2646 = vmatpush1.bf16.msra.mxu0 0
        %2647 = vmatprep.mubr.bf16.mxu0 0
        %2648 = vmatmul.mubr.bf16.gmra.mrb[0].mxu0 %v2570
        %v2649 = vpop.f32.mrb[0].mxu0
        %v2650 = vadd.f32 0.0, %v2649
        %v2651 = vpop.f32.mrb[0].mxu0
        %v2652 = vpop.f32.mrb[0].mxu0
        %v2653 = vadd.f32 0.0, %v2652
        %v2654 = vpop.f32.mrb[0].mxu0
        %2655 = vdwg.mxu0
        %v2656 = vadd.f32 %v2541, %v2607
        %v2657 = vadd.f32 %v2542, %v2609
        %v2658 = vadd.f32 %v2543, %v2650
        %v2659 = vadd.f32 %v2544, %v2611
        %v2660 = vadd.f32 %v2545, %v2613
        %v2661 = vadd.f32 %v2546, %v2653
        %v2662 = vld [vmem:[%s454] sm:$0xff]
        %v2663 = vld [vmem:[%s454 + $0x8] sm:$0xff]
        %2665 = vset.pattern.permute.xlu0 0
        %2666 = vperm.xlu0 %2665, %v2662
        %v2667 = vpop.permute.xlu0 %2666
        %2670 = vset.pattern.permute.xlu0 0
        %2671 = vperm.xlu0 %2670, %v2663
        %v2672 = vpop.permute.xlu0 %2671
        %v2674 = vmul.f32 %v2656, %v2667
        %v2675 = vmul.f32 %v2657, %v2667
        %v2676 = vmul.f32 %v2658, %v2667
        %v2677 = vmul.f32 %v2659, %v2672
        %v2678 = vmul.f32 %v2660, %v2672
        %v2679 = vmul.f32 %v2661, %v2672
        %v2680 = vld [vmem:[%s463] sm:$0xff]
        %v2681 = vld [vmem:[%s463 + $0x8] sm:$0xff]
        %2683 = vset.pattern.permute.xlu0 0
        %2684 = vperm.xlu0 %2683, %v2680
        %v2685 = vpop.permute.xlu0 %2684
        %2688 = vset.pattern.permute.xlu0 0
        %2689 = vperm.xlu0 %2688, %v2681
        %v2690 = vpop.permute.xlu0 %2689
        %v2692 = vadd.f32 %v2674, %v2685
        %v2693 = vadd.f32 %v2675, %v2685
        %v2694 = vadd.f32 %v2676, %v2685
        %v2695 = vadd.f32 %v2677, %v2690
        %v2696 = vadd.f32 %v2678, %v2690
        %v2697 = vadd.f32 %v2679, %v2690
        %v2698 = vmax.f32 %v2692, 0.0
        %v2699 = vmax.f32 %v2693, 0.0
        %v2700 = vmax.f32 %v2694, 0.0
        %v2701 = vmax.f32 %v2695, 0.0
        %v2702 = vmax.f32 %v2696, 0.0
        %v2703 = vmax.f32 %v2697, 0.0
        %2704 = vst [vmem:[%s519] sm:$0xff] %v2698
        %2705 = vst [vmem:[%s519 + $0x8] sm:$0xff] %v2699
        %2706 = vst [vmem:[%s519 + $0x10] sm:$0xff] %v2700
        %2707 = vst [vmem:[%s519 + $0x18] sm:$0xff] %v2701
        %2708 = vst [vmem:[%s519 + $0x20] sm:$0xff] %v2702
        %2709 = vst [vmem:[%s519 + $0x28] sm:$0xff] %v2703
        %s2710 = sand.u32 %s234, 1
        %s2711 = scalar_lea.sflag [#allocation5], %s2710
        %s2712 = sand.u32 %s234, 1
        %s2713 = smul.addr %s2712, 48
        %s2714 = scalar_lea.vmem [#allocation17], %s2713
        // Predicated region
        $region85: #{tpu_custom_call.1} parent=51 // pred_check
          %p2715 = pneg %p244
        $region86: #{tpu_custom_call.1} parent=51 // pred_check_branch
          %2717 = sbr.rel (%p2715) target = $region88
        $region87: #{tpu_custom_call.1} parent=51 // pred_region
          %s2719 = ssub.s32 768, 768
          %2720 = vsyncadd %s2711, %s2719
          %s2721 = smul.addr %s33, 6
          %s2722 = smul.addr %s2721, 128
          %s2723 = scalar_lea.hbm %s8, %s2722
          %s2724 = sshll.u32 %s2714, 4
          %s2725 = int_to_ptr.vmem [resolvable:$true] %s2724
          %2730 = dma.vmem_to_hbm [thread:$0]  %s2725, 768, %s2723, %s2711, 384, 384, 24
        $region88: #{tpu_custom_call.1} parent=51 // pred_fallthru
          _
      $region52: #{tpu_custom_call.1} parent=5 // pred_fallthru
        _
      %p2731 = scmp.le.s32.totalorder 2, %s28
      // Predicated region
      $region89: #{tpu_custom_call.1} parent=5 // pred_check
        %p2732 = pneg %p2731
      $region90: #{tpu_custom_call.1} parent=5 // pred_check_branch
        %2734 = sbr.rel (%p2732) target = $region92
      $region91: #{tpu_custom_call.1} parent=5 // pred_region
        %s2735 = ssub.s32 %s28, 2
        // Predicated region
        $region93: #{tpu_custom_call.1} parent=91 // pred_check
          %p2736 = pneg %p250
        $region94: #{tpu_custom_call.1} parent=91 // pred_check_branch
          %2738 = sbr.rel (%p2736) target = $region96
        $region95: #{tpu_custom_call.1} parent=91 // pred_region
          %s2739 = sand.u32 %s235, 1
          %s2740 = scalar_lea.sflag [#allocation5], %s2739
          %s2741 = sand.u32 %s235, 1
          %s2742 = smul.addr %s2741, 48
          %s2743 = scalar_lea.vmem [#allocation17], %s2742
          %2744 = dma.done %s2740, 768
        $region96: #{tpu_custom_call.1} parent=91 // pred_fallthru
          _
      $region92: #{tpu_custom_call.1} parent=5 // pred_fallthru
        _
    $region6: #{tpu_custom_call.1} parent=1 // loop_footer
      %s32 = sadd.s32 1, %s28
    $region7: #{tpu_custom_call.1} parent=1 // loop_footer_branch
      %27 = sbr.rel target = $region3
    $region8: #{tpu_custom_call.1} parent=1 // loop_exit
      _
    %2745 = vsyncpa [#allocation4], 1
    %s2746 = scalar_lea.sflag [#allocation4], 1
    %2747 = vsyncpa %s2746, 1
    %2748 = vsyncpa [#allocation7], 1
    %2749 = vsyncpa [#allocation10], 1
    %s2750 = scalar_lea.sflag [#allocation10], 1
    %2751 = vsyncpa %s2750, 1
    %2752 = vsyncpa [#allocation13], 1
    %s2753 = scalar_lea.sflag [#allocation13], 1
    %2754 = vsyncpa %s2753, 1
    %2755 = vsyncpa [#allocation16], 1
    %2756 = vsyncpa [#allocation5], 1
    %s2757 = scalar_lea.sflag [#allocation5], 1
    %2758 = vsyncpa %s2757, 1

</llo_original>
